<compile_context>
chip_gen: v7x
topology: tpu7x:2x2x1
jax: 0.10.0
libtpu: 0.0.40
codegen_flags: <defaults>
</compile_context>

<pallas_src>
import jax
import jax.numpy as jnp
from jax.experimental import pallas as pl
from jax.experimental.pallas import tpu as pltpu

EFF_DIM = 1280
VIT_DIM = 768
NUM_CLASSES = 11
NC_PAD = 128          # lane-dense padded head width
PATCH = 16
PP = PATCH * PATCH    # 256 pixels per patch per channel


def hybrid_kernel(pt_ref, weff_ref, beff_ref, wvit_ref, bvit_ref,
                  wfce_ref, wfcv_ref, bfc_ref, out_ref):
    # ---- ViT-like branch: pool tokens FIRST (linearity), then one small 2-D matmul ----
    # mean_p(patches @ Wv + bv) == mean_p(patches) @ Wv + bv
    patch_mean = jnp.mean(pt_ref[...].astype(jnp.float32), axis=1)          # (TB, C*256) f32
    feat_vit = (jnp.dot(patch_mean.astype(jnp.bfloat16), wvit_ref[...],
                        preferred_element_type=jnp.float32)
                + bvit_ref[...])                                             # (TB, 768) f32

    # ---- EfficientNet-like branch ----
    # Global average pool over H*W per channel == per-channel mean of patch_mean, so the image is
    # read only once. Project with C broadcast mul-adds on the VPU (skip a depth-C MXU matmul).
    C = weff_ref.shape[0]
    tb = patch_mean.shape[0]
    acc = jnp.zeros((tb, EFF_DIM), jnp.float32)
    for c in range(C):  # C is small and static
        pooled_c = jnp.mean(patch_mean[:, c * PP:(c + 1) * PP],
                            axis=-1, keepdims=True)                          # (TB, 1)
        acc = acc + pooled_c * weff_ref[c:c + 1, :]                          # (TB,1)*(1,1280)
    feat_eff = jnp.maximum(acc + beff_ref[...], 0.0)                         # (TB, 1280) f32

    # ---- Fusion head: concat + Linear == sum of two partial matmuls; 128-lane padded output ----
    logits = (jnp.dot(feat_eff.astype(jnp.bfloat16), wfce_ref[...],
                      preferred_element_type=jnp.float32)
              + jnp.dot(feat_vit.astype(jnp.bfloat16), wfcv_ref[...],
                        preferred_element_type=jnp.float32)
              + bfc_ref[...])
    out_ref[...] = logits.astype(out_ref.dtype)


def make_params(key, in_channels):
    patch_dim = in_channels * PATCH * PATCH
    k = jax.random.split(key, 4)
    w_eff = jax.random.normal(k[0], (in_channels, EFF_DIM), jnp.float32) * 0.02
    b_eff = jnp.zeros((1, EFF_DIM), jnp.float32)
    w_vit = jax.random.normal(k[1], (patch_dim, VIT_DIM), jnp.float32) * 0.02
    b_vit = jnp.zeros((1, VIT_DIM), jnp.float32)
    w_fc = jax.random.normal(k[2], (EFF_DIM + VIT_DIM, NUM_CLASSES), jnp.float32) * 0.02
    b_fc = jax.random.normal(k[3], (1, NUM_CLASSES), jnp.float32) * 0.02
    # Split fc so concat + matmul == sum of two partial matmuls.
    return (w_eff, b_eff, w_vit, b_vit, w_fc[:EFF_DIM], w_fc[EFF_DIM:], b_fc)


def hybrid_forward(x_nchw, params, tb=8):
    B, C, H, W = x_nchw.shape
    assert H % PATCH == 0 and W % PATCH == 0
    P = (H // PATCH) * (W // PATCH)
    PD = C * PATCH * PATCH
    w_eff, b_eff, w_vit, b_vit, w_fc_eff, w_fc_vit, b_fc = params

    # ViT-style im2col; single image-sized operand for the kernel, cast to bf16 (halves HBM bytes).
    patches = (x_nchw.reshape(B, C, H // PATCH, PATCH, W // PATCH, PATCH)
               .transpose(0, 2, 4, 1, 3, 5)
               .reshape(B, P, PD)).astype(jnp.bfloat16)

    TB = min(tb, B)
    B_pad = pl.cdiv(B, TB) * TB
    if B_pad != B:
        patches = jnp.pad(patches, ((0, B_pad - B), (0, 0), (0, 0)))

    # Pad the 11-class head to a lane-dense 128-wide output; padded columns are exactly zero.
    pad_c = NC_PAD - NUM_CLASSES
    w_fc_eff_p = jnp.pad(w_fc_eff, ((0, 0), (0, pad_c))).astype(jnp.bfloat16)
    w_fc_vit_p = jnp.pad(w_fc_vit, ((0, 0), (0, pad_c))).astype(jnp.bfloat16)
    b_fc_p = jnp.pad(b_fc, ((0, 0), (0, pad_c)))          # f32
    w_vit_b = w_vit.astype(jnp.bfloat16)                  # big weight -> bf16 MXU input

    out = pl.pallas_call(
        hybrid_kernel,
        out_shape=jax.ShapeDtypeStruct((B_pad, NC_PAD), jnp.float32),
        grid=(B_pad // TB,),
        in_specs=[
            pl.BlockSpec((TB, P, PD), lambda i: (i, 0, 0)),        # patches: per-batch-tile stream
            pl.BlockSpec((C, EFF_DIM), lambda i: (0, 0)),          # w_eff (f32, VPU path)
            pl.BlockSpec((1, EFF_DIM), lambda i: (0, 0)),          # b_eff
            pl.BlockSpec((PD, VIT_DIM), lambda i: (0, 0)),         # w_vit (bf16, resident)
            pl.BlockSpec((1, VIT_DIM), lambda i: (0, 0)),          # b_vit
            pl.BlockSpec((EFF_DIM, NC_PAD), lambda i: (0, 0)),     # w_fc (eff half, bf16)
            pl.BlockSpec((VIT_DIM, NC_PAD), lambda i: (0, 0)),     # w_fc (vit half, bf16)
            pl.BlockSpec((1, NC_PAD), lambda i: (0, 0)),           # b_fc
        ],
        out_specs=pl.BlockSpec((TB, NC_PAD), lambda i: (i, 0)),
        compiler_params=pltpu.CompilerParams(
            dimension_semantics=("parallel",)),
    )(patches, w_eff, b_eff, w_vit_b, b_vit, w_fc_eff_p, w_fc_vit_p, b_fc_p)

    return out[:B, :NUM_CLASSES]


def hybrid_forward_ref(x_nchw, params):
    """Pure-JAX f32 reference with identical semantics (token-projection order preserved)."""
    B, C, H, W = x_nchw.shape
    P = (H // PATCH) * (W // PATCH)
    PD = C * PATCH * PATCH
    w_eff, b_eff, w_vit, b_vit, w_fc_eff, w_fc_vit, b_fc = params

    pooled = jnp.mean(x_nchw.reshape(B, C, H * W), axis=-1)
    feat_eff = jnp.maximum(pooled @ w_eff + b_eff, 0.0)

    patches = (x_nchw.reshape(B, C, H // PATCH, PATCH, W // PATCH, PATCH)
               .transpose(0, 2, 4, 1, 3, 5)
               .reshape(B, P, PD))
    feat_vit = jnp.mean(patches @ w_vit + b_vit, axis=1)

    fused = jnp.concatenate([feat_eff, feat_vit], axis=1)
    w_fc = jnp.concatenate([w_fc_eff, w_fc_vit], axis=0)
    return fused @ w_fc + b_fc


if __name__ == "__main__":
    key = jax.random.PRNGKey(0)
    k_x, k_p = jax.random.split(key)

    B, C, H, W = 2, 3, 32, 32   # small RGB images (NCHW, as in the PyTorch module)
    x = jax.random.normal(k_x, (B, C, H, W), jnp.float32)
    params = make_params(k_p, C)

    out = jax.block_until_ready(hybrid_forward(x, params))
    assert out.shape == (B, NUM_CLASSES)

    ref = jax.block_until_ready(hybrid_forward_ref(x, params))
    # bf16 MXU inputs + pool-before-project reordering change float rounding/order -> wider tol.
    assert jnp.allclose(out, ref, rtol=5e-2, atol=5e-3), "kernel/reference mismatch"

    print("KERNEL_OK")
</pallas_src>

<mosaic_0001>
module attributes {stable_mosaic.version = 11 : i64} {
  func.func @hybrid_kernel(%arg0: i32, %arg1: memref<2x4x768xbf16, #tpu.memory_space<vmem>>, %arg2: memref<3x1280xf32, #tpu.memory_space<vmem>>, %arg3: memref<1x1280xf32, #tpu.memory_space<vmem>>, %arg4: memref<768x768xbf16, #tpu.memory_space<vmem>>, %arg5: memref<1x768xf32, #tpu.memory_space<vmem>>, %arg6: memref<1280x128xbf16, #tpu.memory_space<vmem>>, %arg7: memref<768x128xbf16, #tpu.memory_space<vmem>>, %arg8: memref<1x128xf32, #tpu.memory_space<vmem>>, %arg9: memref<2x128xf32, #tpu.memory_space<vmem>>) attributes {dimension_semantics = [#tpu.dimension_semantics<parallel>], iteration_bounds = array<i64: 1>, scalar_prefetch = 0 : i64, scratch_operands = 0 : i64, tpu.core_type = #tpu.core_type<tc>, window_params = [{transform_indices = @transform_0, window_bounds = array<i64: 2, 4, 768>}, {pipeline_mode = #tpu.pipeline_mode<synchronous>, transform_indices = @transform_1, window_bounds = array<i64: 3, 1280>}, {pipeline_mode = #tpu.pipeline_mode<synchronous>, transform_indices = @transform_2, window_bounds = array<i64: 1, 1280>}, {pipeline_mode = #tpu.pipeline_mode<synchronous>, transform_indices = @transform_3, window_bounds = array<i64: 768, 768>}, {pipeline_mode = #tpu.pipeline_mode<synchronous>, transform_indices = @transform_4, window_bounds = array<i64: 1, 768>}, {pipeline_mode = #tpu.pipeline_mode<synchronous>, transform_indices = @transform_5, window_bounds = array<i64: 1280, 128>}, {pipeline_mode = #tpu.pipeline_mode<synchronous>, transform_indices = @transform_6, window_bounds = array<i64: 768, 128>}, {pipeline_mode = #tpu.pipeline_mode<synchronous>, transform_indices = @transform_7, window_bounds = array<i64: 1, 128>}, {transform_indices = @transform_8, window_bounds = array<i64: 2, 128>}]} {
    %c0 = arith.constant 0 : index
    %c0_0 = arith.constant 0 : index
    %c0_1 = arith.constant 0 : index
    %0 = vector.load %arg1[%c0, %c0_0, %c0_1] : memref<2x4x768xbf16, #tpu.memory_space<vmem>>, vector<2x4x768xbf16>
    %1 = arith.extf %0 : vector<2x4x768xbf16> to vector<2x4x768xf32>
    %cst = arith.constant dense<0.000000e+00> : vector<2x768xf32>
    %2 = vector.multi_reduction <add>, %1, %cst [1] : vector<2x4x768xf32> to vector<2x768xf32>
    %cst_2 = arith.constant 4.000000e+00 : f32
    %3 = vector.broadcast %cst_2 : f32 to vector<2x768xf32>
    %4 = arith.divf %2, %3 : vector<2x768xf32>
    %5 = arith.truncf %4 : vector<2x768xf32> to vector<2x768xbf16>
    %c0_3 = arith.constant 0 : index
    %c0_4 = arith.constant 0 : index
    %6 = vector.load %arg4[%c0_3, %c0_4] : memref<768x768xbf16, #tpu.memory_space<vmem>>, vector<768x768xbf16>
    %cst_5 = arith.constant dense<0.000000e+00> : vector<2x768xf32>
    %7 = tpu.matmul %5, %6, %cst_5 {dimension_numbers = #tpu.dot_dimension_numbers<[1], [0], [0], [1], [0, 0, 1, 1], [], []>} : vector<2x768xbf16>, vector<768x768xbf16>, vector<2x768xf32> -> vector<2x768xf32>
    %c0_6 = arith.constant 0 : index
    %c0_7 = arith.constant 0 : index
    %8 = vector.load %arg5[%c0_6, %c0_7] : memref<1x768xf32, #tpu.memory_space<vmem>>, vector<1x768xf32>
    %9 = vector.broadcast %8 : vector<1x768xf32> to vector<2x768xf32>
    %10 = arith.addf %7, %9 : vector<2x768xf32>
    %cst_8 = arith.constant 0.000000e+00 : f32
    %11 = vector.broadcast %cst_8 : f32 to vector<2x1280xf32>
    %12 = vector.extract_strided_slice %4 {offsets = [0, 0], sizes = [2, 256], strides = [1, 1]} : vector<2x768xf32> to vector<2x256xf32>
    %cst_9 = arith.constant dense<0.000000e+00> : vector<2xf32>
    %13 = vector.multi_reduction <add>, %12, %cst_9 [1] : vector<2x256xf32> to vector<2xf32>
    %14 = vector.shape_cast %13 : vector<2xf32> to vector<2x1xf32>
    %cst_10 = arith.constant 2.560000e+02 : f32
    %15 = vector.broadcast %cst_10 : f32 to vector<2x1xf32>
    %16 = arith.divf %14, %15 : vector<2x1xf32>
    %c0_11 = arith.constant 0 : index
    %c0_12 = arith.constant 0 : index
    %17 = vector.load %arg2[%c0_11, %c0_12] : memref<3x1280xf32, #tpu.memory_space<vmem>>, vector<1x1280xf32>
    %18 = vector.broadcast %16 : vector<2x1xf32> to vector<2x1280xf32>
    %19 = vector.broadcast %17 : vector<1x1280xf32> to vector<2x1280xf32>
    %20 = arith.mulf %18, %19 : vector<2x1280xf32>
    %21 = arith.addf %11, %20 : vector<2x1280xf32>
    %22 = vector.extract_strided_slice %4 {offsets = [0, 256], sizes = [2, 256], strides = [1, 1]} : vector<2x768xf32> to vector<2x256xf32>
    %cst_13 = arith.constant dense<0.000000e+00> : vector<2xf32>
    %23 = vector.multi_reduction <add>, %22, %cst_13 [1] : vector<2x256xf32> to vector<2xf32>
    %24 = vector.shape_cast %23 : vector<2xf32> to vector<2x1xf32>
    %cst_14 = arith.constant 2.560000e+02 : f32
    %25 = vector.broadcast %cst_14 : f32 to vector<2x1xf32>
    %26 = arith.divf %24, %25 : vector<2x1xf32>
    %c1 = arith.constant 1 : index
    %c0_15 = arith.constant 0 : index
    %27 = vector.load %arg2[%c1, %c0_15] : memref<3x1280xf32, #tpu.memory_space<vmem>>, vector<1x1280xf32>
    %28 = vector.broadcast %26 : vector<2x1xf32> to vector<2x1280xf32>
    %29 = vector.broadcast %27 : vector<1x1280xf32> to vector<2x1280xf32>
    %30 = arith.mulf %28, %29 : vector<2x1280xf32>
    %31 = arith.addf %21, %30 : vector<2x1280xf32>
    %32 = vector.extract_strided_slice %4 {offsets = [0, 512], sizes = [2, 256], strides = [1, 1]} : vector<2x768xf32> to vector<2x256xf32>
    %cst_16 = arith.constant dense<0.000000e+00> : vector<2xf32>
    %33 = vector.multi_reduction <add>, %32, %cst_16 [1] : vector<2x256xf32> to vector<2xf32>
    %34 = vector.shape_cast %33 : vector<2xf32> to vector<2x1xf32>
    %cst_17 = arith.constant 2.560000e+02 : f32
    %35 = vector.broadcast %cst_17 : f32 to vector<2x1xf32>
    %36 = arith.divf %34, %35 : vector<2x1xf32>
    %c2 = arith.constant 2 : index
    %c0_18 = arith.constant 0 : index
    %37 = vector.load %arg2[%c2, %c0_18] : memref<3x1280xf32, #tpu.memory_space<vmem>>, vector<1x1280xf32>
    %38 = vector.broadcast %36 : vector<2x1xf32> to vector<2x1280xf32>
    %39 = vector.broadcast %37 : vector<1x1280xf32> to vector<2x1280xf32>
    %40 = arith.mulf %38, %39 : vector<2x1280xf32>
    %41 = arith.addf %31, %40 : vector<2x1280xf32>
    %c0_19 = arith.constant 0 : index
    %c0_20 = arith.constant 0 : index
    %42 = vector.load %arg3[%c0_19, %c0_20] : memref<1x1280xf32, #tpu.memory_space<vmem>>, vector<1x1280xf32>
    %43 = vector.broadcast %42 : vector<1x1280xf32> to vector<2x1280xf32>
    %44 = arith.addf %41, %43 : vector<2x1280xf32>
    %cst_21 = arith.constant 0.000000e+00 : f32
    %45 = vector.broadcast %cst_21 : f32 to vector<2x1280xf32>
    %46 = arith.maximumf %44, %45 : vector<2x1280xf32>
    %47 = arith.truncf %46 : vector<2x1280xf32> to vector<2x1280xbf16>
    %c0_22 = arith.constant 0 : index
    %c0_23 = arith.constant 0 : index
    %48 = vector.load %arg6[%c0_22, %c0_23] : memref<1280x128xbf16, #tpu.memory_space<vmem>>, vector<1280x128xbf16>
    %cst_24 = arith.constant dense<0.000000e+00> : vector<2x128xf32>
    %49 = tpu.matmul %47, %48, %cst_24 {dimension_numbers = #tpu.dot_dimension_numbers<[1], [0], [0], [1], [0, 0, 1, 1], [], []>} : vector<2x1280xbf16>, vector<1280x128xbf16>, vector<2x128xf32> -> vector<2x128xf32>
    %50 = arith.truncf %10 : vector<2x768xf32> to vector<2x768xbf16>
    %c0_25 = arith.constant 0 : index
    %c0_26 = arith.constant 0 : index
    %51 = vector.load %arg7[%c0_25, %c0_26] : memref<768x128xbf16, #tpu.memory_space<vmem>>, vector<768x128xbf16>
    %cst_27 = arith.constant dense<0.000000e+00> : vector<2x128xf32>
    %52 = tpu.matmul %50, %51, %cst_27 {dimension_numbers = #tpu.dot_dimension_numbers<[1], [0], [0], [1], [0, 0, 1, 1], [], []>} : vector<2x768xbf16>, vector<768x128xbf16>, vector<2x128xf32> -> vector<2x128xf32>
    %53 = arith.addf %49, %52 : vector<2x128xf32>
    %c0_28 = arith.constant 0 : index
    %c0_29 = arith.constant 0 : index
    %54 = vector.load %arg8[%c0_28, %c0_29] : memref<1x128xf32, #tpu.memory_space<vmem>>, vector<1x128xf32>
    %55 = vector.broadcast %54 : vector<1x128xf32> to vector<2x128xf32>
    %56 = arith.addf %53, %55 : vector<2x128xf32>
    %c0_30 = arith.constant 0 : index
    %c0_31 = arith.constant 0 : index
    %57 = vector.load %arg9[%c0_30, %c0_31] : memref<2x128xf32, #tpu.memory_space<vmem>>, vector<2x128xf32>
    tpu.vector_store %arg9[%c0_30, %c0_31], %56 {strides = array<i32>} : memref<2x128xf32, #tpu.memory_space<vmem>>, vector<2x128xf32>,
    return
  }
  func.func @transform_0(%arg0: i32) -> (i32, i32, i32) {
    %c0_i32 = arith.constant 0 : i32
    %c0_i32_0 = arith.constant 0 : i32
    %c0_i32_1 = arith.constant 0 : i32
    return %arg0, %c0_i32, %c0_i32_0 : i32, i32, i32
  }
  func.func @transform_1(%arg0: i32) -> (i32, i32) {
    %c0_i32 = arith.constant 0 : i32
    %c0_i32_0 = arith.constant 0 : i32
    %c0_i32_1 = arith.constant 0 : i32
    return %c0_i32, %c0_i32_0 : i32, i32
  }
  func.func @transform_2(%arg0: i32) -> (i32, i32) {
    %c0_i32 = arith.constant 0 : i32
    %c0_i32_0 = arith.constant 0 : i32
    %c0_i32_1 = arith.constant 0 : i32
    return %c0_i32, %c0_i32_0 : i32, i32
  }
  func.func @transform_3(%arg0: i32) -> (i32, i32) {
    %c0_i32 = arith.constant 0 : i32
    %c0_i32_0 = arith.constant 0 : i32
    %c0_i32_1 = arith.constant 0 : i32
    return %c0_i32, %c0_i32_0 : i32, i32
  }
  func.func @transform_4(%arg0: i32) -> (i32, i32) {
    %c0_i32 = arith.constant 0 : i32
    %c0_i32_0 = arith.constant 0 : i32
    %c0_i32_1 = arith.constant 0 : i32
    return %c0_i32, %c0_i32_0 : i32, i32
  }
  func.func @transform_5(%arg0: i32) -> (i32, i32) {
    %c0_i32 = arith.constant 0 : i32
    %c0_i32_0 = arith.constant 0 : i32
    %c0_i32_1 = arith.constant 0 : i32
    return %c0_i32, %c0_i32_0 : i32, i32
  }
  func.func @transform_6(%arg0: i32) -> (i32, i32) {
    %c0_i32 = arith.constant 0 : i32
    %c0_i32_0 = arith.constant 0 : i32
    %c0_i32_1 = arith.constant 0 : i32
    return %c0_i32, %c0_i32_0 : i32, i32
  }
  func.func @transform_7(%arg0: i32) -> (i32, i32) {
    %c0_i32 = arith.constant 0 : i32
    %c0_i32_0 = arith.constant 0 : i32
    %c0_i32_1 = arith.constant 0 : i32
    return %c0_i32, %c0_i32_0 : i32, i32
  }
  func.func @transform_8(%arg0: i32) -> (i32, i32) {
    %c0_i32 = arith.constant 0 : i32
    %c0_i32_0 = arith.constant 0 : i32
    return %arg0, %c0_i32 : i32, i32
  }
}

</mosaic_0001>

<llo_original>
// kernel: tpu_custom_call.1
$region0: #{tpu_custom_call.1}
  #allocation0 [shape = 'u32[]', space=smem, size = 0x4, offset = 0x4, fixed_abs, tag = 'smem constant byte address 0x4 - core index']
  #allocation1 [shape = 'u32[144,128]{1,0:T(1,128)}', space=vmem, size = 0x12000, scoped, tag = 'internal scratch']
  %s0 = inlined_call_operand.hbm [shape: bf16[2,4,768], index: 0, kind: input, shape index: {}]
  %s1 = inlined_call_operand.hbm [shape: f32[3,1280], index: 1, kind: input, shape index: {}]
  %s2 = inlined_call_operand.hbm [shape: f32[1,1280], index: 2, kind: input, shape index: {}]
  %s3 = inlined_call_operand.hbm [shape: bf16[768,768], index: 3, kind: input, shape index: {}]
  %s4 = inlined_call_operand.hbm [shape: f32[1,768], index: 4, kind: input, shape index: {}]
  %s5 = inlined_call_operand.hbm [shape: bf16[1280,128], index: 5, kind: input, shape index: {}]
  %s6 = inlined_call_operand.hbm [shape: bf16[768,128], index: 6, kind: input, shape index: {}]
  %s7 = inlined_call_operand.hbm [shape: f32[1,128], index: 7, kind: input, shape index: {}]
  %s8 = inlined_call_operand.hbm [shape: f32[2,128], index: 8, kind: output, shape index: {}]
  %s9 = sld [smem:[#allocation0]]
  $region74: #{tpu_custom_call.1} parent=0
    _
  %s11 = ssub.s32 1, %s9
  %s12 = scalar_select 0, %s11, %s9
  $region1: #{tpu_custom_call.1} parent=0
    #allocation2 [shape = 'u8[12288]{0}', space=vmem, size = 0x3000, scoped, tag = 'input window, operand 0, single buffered']
    #allocation3 [shape = 's32[1]{0}', space=sflag, size = 0x4, scoped, tag = 'scoped memory for tpu_custom_call.1']
    #allocation4 [shape = 's32[1]{0}', space=sflag, size = 0x4, scoped, tag = 'scoped memory for tpu_custom_call.1']
    #allocation5 [shape = 'u8[20480]{0}', space=vmem, size = 0x5000, scoped, tag = 'input window, operand 1, single buffered']
    #allocation6 [shape = 's32[1]{0}', space=sflag, size = 0x4, scoped, tag = 'scoped memory for tpu_custom_call.1']
    #allocation7 [shape = 'u8[5120]{0}', space=vmem, size = 0x1400, scoped, tag = 'input window, operand 2, single buffered']
    #allocation8 [shape = 'u8[1179648]{0}', space=vmem, size = 0x120000, scoped, tag = 'input window, operand 3, single buffered']
    #allocation9 [shape = 's32[1]{0}', space=sflag, size = 0x4, scoped, tag = 'scoped memory for tpu_custom_call.1']
    #allocation10 [shape = 'u8[3072]{0}', space=vmem, size = 0xc00, scoped, tag = 'input window, operand 4, single buffered']
    #allocation11 [shape = 'u8[327680]{0}', space=vmem, size = 0x50000, scoped, tag = 'input window, operand 5, single buffered']
    #allocation12 [shape = 's32[1]{0}', space=sflag, size = 0x4, scoped, tag = 'scoped memory for tpu_custom_call.1']
    #allocation13 [shape = 'u8[196608]{0}', space=vmem, size = 0x30000, scoped, tag = 'input window, operand 6, single buffered']
    #allocation14 [shape = 'u8[512]{0}', space=vmem, size = 0x400, scoped, tag = 'input window, operand 7, single buffered']
    #allocation15 [shape = 's32[1]{0}', space=sflag, size = 0x4, scoped, tag = 'scoped memory for tpu_custom_call.1']
    #allocation16 [shape = 'u8[1024]{0}', space=vmem, size = 0x400, scoped, tag = 'output window, operand 0, single buffered']
    %13 = vsyncpa [#allocation3], 0
    %14 = vsyncpa [#allocation6], 0
    %15 = vsyncpa [#allocation9], 0
    %16 = vsyncpa [#allocation12], 0
    %17 = vsyncpa [#allocation15], 0
    %18 = vsyncpa [#allocation4], 0
    // Predicated region
    $region2: #{tpu_custom_call.1} parent=1 // pred_check
      _
    $region3: #{tpu_custom_call.1} parent=1 // pred_check_branch
      %20 = sbr.rel (0) target = $region5
    $region4: #{tpu_custom_call.1} parent=1 // pred_region
      %s22 = ssub.s32 384, 384
      %23 = vsyncadd [#allocation3], %s22
      %s24 = sshll.u32 [#allocation2], 4
      %s25 = int_to_ptr.vmem [resolvable:$true] %s24
      %30 = dma.hbm_to_vmem [thread:$0]  %s0, 384, %s25, [#allocation3], 192, 192, 12
    $region5: #{tpu_custom_call.1} parent=1 // pred_fallthru
      _
    // Predicated region
    $region6: #{tpu_custom_call.1} parent=1 // pred_check
      _
    $region7: #{tpu_custom_call.1} parent=1 // pred_check_branch
      %32 = sbr.rel (0) target = $region9
    $region8: #{tpu_custom_call.1} parent=1 // pred_region
      %s34 = ssub.s32 640, 640
      %35 = vsyncadd [#allocation6], %s34
      %s37 = sshll.u32 [#allocation5], 4
      %s38 = int_to_ptr.vmem [resolvable:$true] %s37
      %40 = dma.hbm_to_vmem [thread:$0]  %s1, 640, %s38, [#allocation6]
    $region9: #{tpu_custom_call.1} parent=1 // pred_fallthru
      _
    // Predicated region
    $region10: #{tpu_custom_call.1} parent=1 // pred_check
      _
    $region11: #{tpu_custom_call.1} parent=1 // pred_check_branch
      %42 = sbr.rel (0) target = $region13
    $region12: #{tpu_custom_call.1} parent=1 // pred_region
      %s44 = ssub.s32 160, 160
      %45 = vsyncadd [#allocation6], %s44
      %s47 = sshll.u32 [#allocation7], 4
      %s48 = int_to_ptr.vmem [resolvable:$true] %s47
      %50 = dma.hbm_to_vmem [thread:$0]  %s2, 160, %s48, [#allocation6]
    $region13: #{tpu_custom_call.1} parent=1 // pred_fallthru
      _
    // Predicated region
    $region14: #{tpu_custom_call.1} parent=1 // pred_check
      _
    $region15: #{tpu_custom_call.1} parent=1 // pred_check_branch
      %52 = sbr.rel (0) target = $region17
    $region16: #{tpu_custom_call.1} parent=1 // pred_region
      %s54 = ssub.s32 36864, 36864
      %55 = vsyncadd [#allocation9], %s54
      %s56 = sshll.u32 [#allocation8], 4
      %s57 = int_to_ptr.vmem [resolvable:$true] %s56
      %62 = dma.hbm_to_vmem [thread:$0]  %s3, 36864, %s57, [#allocation9], 384, 384, 24
    $region17: #{tpu_custom_call.1} parent=1 // pred_fallthru
      _
    // Predicated region
    $region18: #{tpu_custom_call.1} parent=1 // pred_check
      _
    $region19: #{tpu_custom_call.1} parent=1 // pred_check_branch
      %64 = sbr.rel (0) target = $region21
    $region20: #{tpu_custom_call.1} parent=1 // pred_region
      %s66 = ssub.s32 96, 96
      %67 = vsyncadd [#allocation9], %s66
      %s69 = sshll.u32 [#allocation10], 4
      %s70 = int_to_ptr.vmem [resolvable:$true] %s69
      %72 = dma.hbm_to_vmem [thread:$0]  %s4, 96, %s70, [#allocation9]
    $region21: #{tpu_custom_call.1} parent=1 // pred_fallthru
      _
    // Predicated region
    $region22: #{tpu_custom_call.1} parent=1 // pred_check
      _
    $region23: #{tpu_custom_call.1} parent=1 // pred_check_branch
      %74 = sbr.rel (0) target = $region25
    $region24: #{tpu_custom_call.1} parent=1 // pred_region
      %s76 = ssub.s32 10240, 10240
      %77 = vsyncadd [#allocation12], %s76
      %s78 = sshll.u32 [#allocation11], 4
      %s79 = int_to_ptr.vmem [resolvable:$true] %s78
      %84 = dma.hbm_to_vmem [thread:$0]  %s5, 10240, %s79, [#allocation12], 64, 64, 4
    $region25: #{tpu_custom_call.1} parent=1 // pred_fallthru
      _
    // Predicated region
    $region26: #{tpu_custom_call.1} parent=1 // pred_check
      _
    $region27: #{tpu_custom_call.1} parent=1 // pred_check_branch
      %86 = sbr.rel (0) target = $region29
    $region28: #{tpu_custom_call.1} parent=1 // pred_region
      %s88 = ssub.s32 6144, 6144
      %89 = vsyncadd [#allocation12], %s88
      %s90 = sshll.u32 [#allocation13], 4
      %s91 = int_to_ptr.vmem [resolvable:$true] %s90
      %96 = dma.hbm_to_vmem [thread:$0]  %s6, 6144, %s91, [#allocation12], 64, 64, 4
    $region29: #{tpu_custom_call.1} parent=1 // pred_fallthru
      _
    // Predicated region
    $region30: #{tpu_custom_call.1} parent=1 // pred_check
      _
    $region31: #{tpu_custom_call.1} parent=1 // pred_check_branch
      %98 = sbr.rel (0) target = $region33
    $region32: #{tpu_custom_call.1} parent=1 // pred_region
      %s100 = ssub.s32 16, 16
      %101 = vsyncadd [#allocation15], %s100
      %s103 = sshll.u32 [#allocation14], 4
      %s104 = int_to_ptr.vmem [resolvable:$true] %s103
      %106 = dma.hbm_to_vmem [thread:$0]  %s7, 16, %s104, [#allocation15]
    $region33: #{tpu_custom_call.1} parent=1 // pred_fallthru
      _
    // Predicated region
    $region34: #{tpu_custom_call.1} parent=1 // pred_check
      _
    $region35: #{tpu_custom_call.1} parent=1 // pred_check_branch
      %108 = sbr.rel (0) target = $region37
    $region36: #{tpu_custom_call.1} parent=1 // pred_region
      %109 = dma.done [#allocation3], 384
    $region37: #{tpu_custom_call.1} parent=1 // pred_fallthru
      _
    // Predicated region
    $region38: #{tpu_custom_call.1} parent=1 // pred_check
      _
    $region39: #{tpu_custom_call.1} parent=1 // pred_check_branch
      %111 = sbr.rel (0) target = $region41
    $region40: #{tpu_custom_call.1} parent=1 // pred_region
      %112 = dma.done [#allocation6], 640
    $region41: #{tpu_custom_call.1} parent=1 // pred_fallthru
      _
    // Predicated region
    $region42: #{tpu_custom_call.1} parent=1 // pred_check
      _
    $region43: #{tpu_custom_call.1} parent=1 // pred_check_branch
      %114 = sbr.rel (0) target = $region45
    $region44: #{tpu_custom_call.1} parent=1 // pred_region
      %115 = dma.done [#allocation6], 160
    $region45: #{tpu_custom_call.1} parent=1 // pred_fallthru
      _
    // Predicated region
    $region46: #{tpu_custom_call.1} parent=1 // pred_check
      _
    $region47: #{tpu_custom_call.1} parent=1 // pred_check_branch
      %117 = sbr.rel (0) target = $region49
    $region48: #{tpu_custom_call.1} parent=1 // pred_region
      %118 = dma.done [#allocation9], 36864
    $region49: #{tpu_custom_call.1} parent=1 // pred_fallthru
      _
    // Predicated region
    $region50: #{tpu_custom_call.1} parent=1 // pred_check
      _
    $region51: #{tpu_custom_call.1} parent=1 // pred_check_branch
      %120 = sbr.rel (0) target = $region53
    $region52: #{tpu_custom_call.1} parent=1 // pred_region
      %121 = dma.done [#allocation9], 96
    $region53: #{tpu_custom_call.1} parent=1 // pred_fallthru
      _
    // Predicated region
    $region54: #{tpu_custom_call.1} parent=1 // pred_check
      _
    $region55: #{tpu_custom_call.1} parent=1 // pred_check_branch
      %123 = sbr.rel (0) target = $region57
    $region56: #{tpu_custom_call.1} parent=1 // pred_region
      %124 = dma.done [#allocation12], 10240
    $region57: #{tpu_custom_call.1} parent=1 // pred_fallthru
      _
    // Predicated region
    $region58: #{tpu_custom_call.1} parent=1 // pred_check
      _
    $region59: #{tpu_custom_call.1} parent=1 // pred_check_branch
      %126 = sbr.rel (0) target = $region61
    $region60: #{tpu_custom_call.1} parent=1 // pred_region
      %127 = dma.done [#allocation12], 6144
    $region61: #{tpu_custom_call.1} parent=1 // pred_fallthru
      _
    // Predicated region
    $region62: #{tpu_custom_call.1} parent=1 // pred_check
      _
    $region63: #{tpu_custom_call.1} parent=1 // pred_check_branch
      %129 = sbr.rel (0) target = $region65
    $region64: #{tpu_custom_call.1} parent=1 // pred_region
      %130 = dma.done [#allocation15], 16
    $region65: #{tpu_custom_call.1} parent=1 // pred_fallthru
      _
    %v132 = vld [vmem:[#allocation2] sm:$0xff]
    %v133 = vld [vmem:[#allocation2 + $0x8] sm:$0xf]
    %v134 = vld [vmem:[#allocation2 + $0xc] sm:$0xff]
    %v135 = vld [vmem:[#allocation2 + $0x14] sm:$0xf]
    %v136 = vunpack.c.l.bf16 %v132
    %v137 = vunpack.c.h.bf16 %v132
    %v138 = vunpack.c.l.bf16 %v133
    %v139 = vunpack.c.l.bf16 %v134
    %v140 = vunpack.c.h.bf16 %v134
    %v141 = vunpack.c.l.bf16 %v135
    %v148 = vcombine.high %v136, %v136
    %v149 = vcombine.high %v137, %v137
    %v150 = vcombine.high %v138, %v138
    %v151 = vcombine.high %v139, %v139
    %v152 = vcombine.high %v140, %v140
    %v153 = vcombine.high %v141, %v141
    %vm160 = vcmask 1043456
    %v161 = vsel %vm160, %v136, 0.0
    %v162 = vrot.slane %v161, 4
    %v163 = vadd.f32 %v161, %v162
    %v164 = vrot.slane %v163, 2
    %v165 = vadd.f32 %v163, %v164
    %v166 = vrot.slane %v165, 1
    %v167 = vadd.f32 %v165, %v166
    %v168 = vsel %vm160, %v148, 0.0
    %v169 = vrot.slane %v168, 4
    %v170 = vadd.f32 %v168, %v169
    %v171 = vrot.slane %v170, 2
    %v172 = vadd.f32 %v170, %v171
    %v173 = vrot.slane %v172, 1
    %v174 = vadd.f32 %v172, %v173
    %v175 = vsel %vm160, %v137, 0.0
    %v176 = vrot.slane %v175, 4
    %v177 = vadd.f32 %v175, %v176
    %v178 = vrot.slane %v177, 2
    %v179 = vadd.f32 %v177, %v178
    %v180 = vrot.slane %v179, 1
    %v181 = vadd.f32 %v179, %v180
    %v182 = vsel %vm160, %v149, 0.0
    %v183 = vrot.slane %v182, 4
    %v184 = vadd.f32 %v182, %v183
    %v185 = vrot.slane %v184, 2
    %v186 = vadd.f32 %v184, %v185
    %v187 = vrot.slane %v186, 1
    %v188 = vadd.f32 %v186, %v187
    %v189 = vsel %vm160, %v138, 0.0
    %v190 = vrot.slane %v189, 4
    %v191 = vadd.f32 %v189, %v190
    %v192 = vrot.slane %v191, 2
    %v193 = vadd.f32 %v191, %v192
    %v194 = vrot.slane %v193, 1
    %v195 = vadd.f32 %v193, %v194
    %v196 = vsel %vm160, %v150, 0.0
    %v197 = vrot.slane %v196, 4
    %v198 = vadd.f32 %v196, %v197
    %v199 = vrot.slane %v198, 2
    %v200 = vadd.f32 %v198, %v199
    %v201 = vrot.slane %v200, 1
    %v202 = vadd.f32 %v200, %v201
    %v203 = vsel %vm160, %v139, 0.0
    %v204 = vrot.slane %v203, 4
    %v205 = vadd.f32 %v203, %v204
    %v206 = vrot.slane %v205, 2
    %v207 = vadd.f32 %v205, %v206
    %v208 = vrot.slane %v207, 1
    %v209 = vadd.f32 %v207, %v208
    %v210 = vsel %vm160, %v151, 0.0
    %v211 = vrot.slane %v210, 4
    %v212 = vadd.f32 %v210, %v211
    %v213 = vrot.slane %v212, 2
    %v214 = vadd.f32 %v212, %v213
    %v215 = vrot.slane %v214, 1
    %v216 = vadd.f32 %v214, %v215
    %v217 = vsel %vm160, %v140, 0.0
    %v218 = vrot.slane %v217, 4
    %v219 = vadd.f32 %v217, %v218
    %v220 = vrot.slane %v219, 2
    %v221 = vadd.f32 %v219, %v220
    %v222 = vrot.slane %v221, 1
    %v223 = vadd.f32 %v221, %v222
    %v224 = vsel %vm160, %v152, 0.0
    %v225 = vrot.slane %v224, 4
    %v226 = vadd.f32 %v224, %v225
    %v227 = vrot.slane %v226, 2
    %v228 = vadd.f32 %v226, %v227
    %v229 = vrot.slane %v228, 1
    %v230 = vadd.f32 %v228, %v229
    %v231 = vsel %vm160, %v141, 0.0
    %v232 = vrot.slane %v231, 4
    %v233 = vadd.f32 %v231, %v232
    %v234 = vrot.slane %v233, 2
    %v235 = vadd.f32 %v233, %v234
    %v236 = vrot.slane %v235, 1
    %v237 = vadd.f32 %v235, %v236
    %v238 = vsel %vm160, %v153, 0.0
    %v239 = vrot.slane %v238, 4
    %v240 = vadd.f32 %v238, %v239
    %v241 = vrot.slane %v240, 2
    %v242 = vadd.f32 %v240, %v241
    %v243 = vrot.slane %v242, 1
    %v244 = vadd.f32 %v242, %v243
    %v245 = vrcp.pop 4.0
    %v246 = vmul.f32 %v167, %v245
    %v247 = vmul.f32 %v174, %v245
    %v248 = vmul.f32 %v181, %v245
    %v249 = vmul.f32 %v188, %v245
    %v250 = vmul.f32 %v195, %v245
    %v251 = vmul.f32 %v202, %v245
    %v252 = vmul.f32 %v209, %v245
    %v253 = vmul.f32 %v216, %v245
    %v254 = vmul.f32 %v223, %v245
    %v255 = vmul.f32 %v230, %v245
    %v256 = vmul.f32 %v237, %v245
    %v257 = vmul.f32 %v244, %v245
    %v258 = vpack.c.bf16 %v246, %v246
    %v259 = vpack.c.bf16 %v247, %v247
    %v260 = vpack.c.bf16 %v248, %v248
    %v261 = vpack.c.bf16 %v249, %v249
    %v262 = vpack.c.bf16 %v250, %v250
    %v263 = vpack.c.bf16 %v251, %v251
    %v264 = vpack.c.bf16 %v252, %v252
    %v265 = vpack.c.bf16 %v253, %v253
    %v266 = vpack.c.bf16 %v254, %v254
    %v267 = vpack.c.bf16 %v255, %v255
    %v268 = vpack.c.bf16 %v256, %v256
    %v269 = vpack.c.bf16 %v257, %v257
    %v270 = vld [vmem:[#allocation8] sm:$0xff]
    %v271 = vld [vmem:[#allocation8 + $0x8] sm:$0xff]
    %v272 = vld [vmem:[#allocation8 + $0x10] sm:$0xff]
    %v273 = vld [vmem:[#allocation8 + $0x18] sm:$0xff]
    %v274 = vld [vmem:[#allocation8 + $0x20] sm:$0xff]
    %v275 = vld [vmem:[#allocation8 + $0x28] sm:$0xff]
    %v276 = vld [vmem:[#allocation8 + $0x30] sm:$0xff]
    %v277 = vld [vmem:[#allocation8 + $0x38] sm:$0xff]
    %v278 = vld [vmem:[#allocation8 + $0x40] sm:$0xff]
    %v279 = vld [vmem:[#allocation8 + $0x48] sm:$0xff]
    %v280 = vld [vmem:[#allocation8 + $0x50] sm:$0xff]
    %v281 = vld [vmem:[#allocation8 + $0x58] sm:$0xff]
    %v282 = vld [vmem:[#allocation8 + $0x60] sm:$0xff]
    %v283 = vld [vmem:[#allocation8 + $0x68] sm:$0xff]
    %v284 = vld [vmem:[#allocation8 + $0x70] sm:$0xff]
    %v285 = vld [vmem:[#allocation8 + $0x78] sm:$0xff]
    %v286 = vld [vmem:[#allocation8 + $0x80] sm:$0xff]
    %v287 = vld [vmem:[#allocation8 + $0x88] sm:$0xff]
    %v288 = vld [vmem:[#allocation8 + $0x90] sm:$0xff]
    %v289 = vld [vmem:[#allocation8 + $0x98] sm:$0xff]
    %v290 = vld [vmem:[#allocation8 + $0xa0] sm:$0xff]
    %v291 = vld [vmem:[#allocation8 + $0xa8] sm:$0xff]
    %v292 = vld [vmem:[#allocation8 + $0xb0] sm:$0xff]
    %v293 = vld [vmem:[#allocation8 + $0xb8] sm:$0xff]
    %v294 = vld [vmem:[#allocation8 + $0xc0] sm:$0xff]
    %v295 = vld [vmem:[#allocation8 + $0xc8] sm:$0xff]
    %v296 = vld [vmem:[#allocation8 + $0xd0] sm:$0xff]
    %v297 = vld [vmem:[#allocation8 + $0xd8] sm:$0xff]
    %v298 = vld [vmem:[#allocation8 + $0xe0] sm:$0xff]
    %v299 = vld [vmem:[#allocation8 + $0xe8] sm:$0xff]
    %v300 = vld [vmem:[#allocation8 + $0xf0] sm:$0xff]
    %v301 = vld [vmem:[#allocation8 + $0xf8] sm:$0xff]
    %v302 = vld [vmem:[#allocation8 + $0x100] sm:$0xff]
    %v303 = vld [vmem:[#allocation8 + $0x108] sm:$0xff]
    %v304 = vld [vmem:[#allocation8 + $0x110] sm:$0xff]
    %v305 = vld [vmem:[#allocation8 + $0x118] sm:$0xff]
    %v306 = vld [vmem:[#allocation8 + $0x120] sm:$0xff]
    %v307 = vld [vmem:[#allocation8 + $0x128] sm:$0xff]
    %v308 = vld [vmem:[#allocation8 + $0x130] sm:$0xff]
    %v309 = vld [vmem:[#allocation8 + $0x138] sm:$0xff]
    %v310 = vld [vmem:[#allocation8 + $0x140] sm:$0xff]
    %v311 = vld [vmem:[#allocation8 + $0x148] sm:$0xff]
    %v312 = vld [vmem:[#allocation8 + $0x150] sm:$0xff]
    %v313 = vld [vmem:[#allocation8 + $0x158] sm:$0xff]
    %v314 = vld [vmem:[#allocation8 + $0x160] sm:$0xff]
    %v315 = vld [vmem:[#allocation8 + $0x168] sm:$0xff]
    %v316 = vld [vmem:[#allocation8 + $0x170] sm:$0xff]
    %v317 = vld [vmem:[#allocation8 + $0x178] sm:$0xff]
    %v318 = vld [vmem:[#allocation8 + $0x180] sm:$0xff]
    %v319 = vld [vmem:[#allocation8 + $0x188] sm:$0xff]
    %v320 = vld [vmem:[#allocation8 + $0x190] sm:$0xff]
    %v321 = vld [vmem:[#allocation8 + $0x198] sm:$0xff]
    %v322 = vld [vmem:[#allocation8 + $0x1a0] sm:$0xff]
    %v323 = vld [vmem:[#allocation8 + $0x1a8] sm:$0xff]
    %v324 = vld [vmem:[#allocation8 + $0x1b0] sm:$0xff]
    %v325 = vld [vmem:[#allocation8 + $0x1b8] sm:$0xff]
    %v326 = vld [vmem:[#allocation8 + $0x1c0] sm:$0xff]
    %v327 = vld [vmem:[#allocation8 + $0x1c8] sm:$0xff]
    %v328 = vld [vmem:[#allocation8 + $0x1d0] sm:$0xff]
    %v329 = vld [vmem:[#allocation8 + $0x1d8] sm:$0xff]
    %v330 = vld [vmem:[#allocation8 + $0x1e0] sm:$0xff]
    %v331 = vld [vmem:[#allocation8 + $0x1e8] sm:$0xff]
    %v332 = vld [vmem:[#allocation8 + $0x1f0] sm:$0xff]
    %v333 = vld [vmem:[#allocation8 + $0x1f8] sm:$0xff]
    %v334 = vld [vmem:[#allocation8 + $0x200] sm:$0xff]
    %v335 = vld [vmem:[#allocation8 + $0x208] sm:$0xff]
    %v336 = vld [vmem:[#allocation8 + $0x210] sm:$0xff]
    %v337 = vld [vmem:[#allocation8 + $0x218] sm:$0xff]
    %v338 = vld [vmem:[#allocation8 + $0x220] sm:$0xff]
    %v339 = vld [vmem:[#allocation8 + $0x228] sm:$0xff]
    %v340 = vld [vmem:[#allocation8 + $0x230] sm:$0xff]
    %v341 = vld [vmem:[#allocation8 + $0x238] sm:$0xff]
    %v342 = vld [vmem:[#allocation8 + $0x240] sm:$0xff]
    %v343 = vld [vmem:[#allocation8 + $0x248] sm:$0xff]
    %v344 = vld [vmem:[#allocation8 + $0x250] sm:$0xff]
    %v345 = vld [vmem:[#allocation8 + $0x258] sm:$0xff]
    %v346 = vld [vmem:[#allocation8 + $0x260] sm:$0xff]
    %v347 = vld [vmem:[#allocation8 + $0x268] sm:$0xff]
    %v348 = vld [vmem:[#allocation8 + $0x270] sm:$0xff]
    %v349 = vld [vmem:[#allocation8 + $0x278] sm:$0xff]
    %v350 = vld [vmem:[#allocation8 + $0x280] sm:$0xff]
    %v351 = vld [vmem:[#allocation8 + $0x288] sm:$0xff]
    %v352 = vld [vmem:[#allocation8 + $0x290] sm:$0xff]
    %v353 = vld [vmem:[#allocation8 + $0x298] sm:$0xff]
    %v354 = vld [vmem:[#allocation8 + $0x2a0] sm:$0xff]
    %v355 = vld [vmem:[#allocation8 + $0x2a8] sm:$0xff]
    %v356 = vld [vmem:[#allocation8 + $0x2b0] sm:$0xff]
    %v357 = vld [vmem:[#allocation8 + $0x2b8] sm:$0xff]
    %v358 = vld [vmem:[#allocation8 + $0x2c0] sm:$0xff]
    %v359 = vld [vmem:[#allocation8 + $0x2c8] sm:$0xff]
    %v360 = vld [vmem:[#allocation8 + $0x2d0] sm:$0xff]
    %v361 = vld [vmem:[#allocation8 + $0x2d8] sm:$0xff]
    %v362 = vld [vmem:[#allocation8 + $0x2e0] sm:$0xff]
    %v363 = vld [vmem:[#allocation8 + $0x2e8] sm:$0xff]
    %v364 = vld [vmem:[#allocation8 + $0x2f0] sm:$0xff]
    %v365 = vld [vmem:[#allocation8 + $0x2f8] sm:$0xff]
    %v366 = vld [vmem:[#allocation8 + $0x300] sm:$0xff]
    %v367 = vld [vmem:[#allocation8 + $0x308] sm:$0xff]
    %v368 = vld [vmem:[#allocation8 + $0x310] sm:$0xff]
    %v369 = vld [vmem:[#allocation8 + $0x318] sm:$0xff]
    %v370 = vld [vmem:[#allocation8 + $0x320] sm:$0xff]
    %v371 = vld [vmem:[#allocation8 + $0x328] sm:$0xff]
    %v372 = vld [vmem:[#allocation8 + $0x330] sm:$0xff]
    %v373 = vld [vmem:[#allocation8 + $0x338] sm:$0xff]
    %v374 = vld [vmem:[#allocation8 + $0x340] sm:$0xff]
    %v375 = vld [vmem:[#allocation8 + $0x348] sm:$0xff]
    %v376 = vld [vmem:[#allocation8 + $0x350] sm:$0xff]
    %v377 = vld [vmem:[#allocation8 + $0x358] sm:$0xff]
    %v378 = vld [vmem:[#allocation8 + $0x360] sm:$0xff]
    %v379 = vld [vmem:[#allocation8 + $0x368] sm:$0xff]
    %v380 = vld [vmem:[#allocation8 + $0x370] sm:$0xff]
    %v381 = vld [vmem:[#allocation8 + $0x378] sm:$0xff]
    %v382 = vld [vmem:[#allocation8 + $0x380] sm:$0xff]
    %v383 = vld [vmem:[#allocation8 + $0x388] sm:$0xff]
    %v384 = vld [vmem:[#allocation8 + $0x390] sm:$0xff]
    %v385 = vld [vmem:[#allocation8 + $0x398] sm:$0xff]
    %v386 = vld [vmem:[#allocation8 + $0x3a0] sm:$0xff]
    %v387 = vld [vmem:[#allocation8 + $0x3a8] sm:$0xff]
    %v388 = vld [vmem:[#allocation8 + $0x3b0] sm:$0xff]
    %v389 = vld [vmem:[#allocation8 + $0x3b8] sm:$0xff]
    %v390 = vld [vmem:[#allocation8 + $0x3c0] sm:$0xff]
    %v391 = vld [vmem:[#allocation8 + $0x3c8] sm:$0xff]
    %v392 = vld [vmem:[#allocation8 + $0x3d0] sm:$0xff]
    %v393 = vld [vmem:[#allocation8 + $0x3d8] sm:$0xff]
    %v394 = vld [vmem:[#allocation8 + $0x3e0] sm:$0xff]
    %v395 = vld [vmem:[#allocation8 + $0x3e8] sm:$0xff]
    %v396 = vld [vmem:[#allocation8 + $0x3f0] sm:$0xff]
    %v397 = vld [vmem:[#allocation8 + $0x3f8] sm:$0xff]
    %v398 = vld [vmem:[#allocation8 + $0x400] sm:$0xff]
    %v399 = vld [vmem:[#allocation8 + $0x408] sm:$0xff]
    %v400 = vld [vmem:[#allocation8 + $0x410] sm:$0xff]
    %v401 = vld [vmem:[#allocation8 + $0x418] sm:$0xff]
    %v402 = vld [vmem:[#allocation8 + $0x420] sm:$0xff]
    %v403 = vld [vmem:[#allocation8 + $0x428] sm:$0xff]
    %v404 = vld [vmem:[#allocation8 + $0x430] sm:$0xff]
    %v405 = vld [vmem:[#allocation8 + $0x438] sm:$0xff]
    %v406 = vld [vmem:[#allocation8 + $0x440] sm:$0xff]
    %v407 = vld [vmem:[#allocation8 + $0x448] sm:$0xff]
    %v408 = vld [vmem:[#allocation8 + $0x450] sm:$0xff]
    %v409 = vld [vmem:[#allocation8 + $0x458] sm:$0xff]
    %v410 = vld [vmem:[#allocation8 + $0x460] sm:$0xff]
    %v411 = vld [vmem:[#allocation8 + $0x468] sm:$0xff]
    %v412 = vld [vmem:[#allocation8 + $0x470] sm:$0xff]
    %v413 = vld [vmem:[#allocation8 + $0x478] sm:$0xff]
    %v414 = vld [vmem:[#allocation8 + $0x480] sm:$0xff]
    %v415 = vld [vmem:[#allocation8 + $0x488] sm:$0xff]
    %v416 = vld [vmem:[#allocation8 + $0x490] sm:$0xff]
    %v417 = vld [vmem:[#allocation8 + $0x498] sm:$0xff]
    %v418 = vld [vmem:[#allocation8 + $0x4a0] sm:$0xff]
    %v419 = vld [vmem:[#allocation8 + $0x4a8] sm:$0xff]
    %v420 = vld [vmem:[#allocation8 + $0x4b0] sm:$0xff]
    %v421 = vld [vmem:[#allocation8 + $0x4b8] sm:$0xff]
    %v422 = vld [vmem:[#allocation8 + $0x4c0] sm:$0xff]
    %v423 = vld [vmem:[#allocation8 + $0x4c8] sm:$0xff]
    %v424 = vld [vmem:[#allocation8 + $0x4d0] sm:$0xff]
    %v425 = vld [vmem:[#allocation8 + $0x4d8] sm:$0xff]
    %v426 = vld [vmem:[#allocation8 + $0x4e0] sm:$0xff]
    %v427 = vld [vmem:[#allocation8 + $0x4e8] sm:$0xff]
    %v428 = vld [vmem:[#allocation8 + $0x4f0] sm:$0xff]
    %v429 = vld [vmem:[#allocation8 + $0x4f8] sm:$0xff]
    %v430 = vld [vmem:[#allocation8 + $0x500] sm:$0xff]
    %v431 = vld [vmem:[#allocation8 + $0x508] sm:$0xff]
    %v432 = vld [vmem:[#allocation8 + $0x510] sm:$0xff]
    %v433 = vld [vmem:[#allocation8 + $0x518] sm:$0xff]
    %v434 = vld [vmem:[#allocation8 + $0x520] sm:$0xff]
    %v435 = vld [vmem:[#allocation8 + $0x528] sm:$0xff]
    %v436 = vld [vmem:[#allocation8 + $0x530] sm:$0xff]
    %v437 = vld [vmem:[#allocation8 + $0x538] sm:$0xff]
    %v438 = vld [vmem:[#allocation8 + $0x540] sm:$0xff]
    %v439 = vld [vmem:[#allocation8 + $0x548] sm:$0xff]
    %v440 = vld [vmem:[#allocation8 + $0x550] sm:$0xff]
    %v441 = vld [vmem:[#allocation8 + $0x558] sm:$0xff]
    %v442 = vld [vmem:[#allocation8 + $0x560] sm:$0xff]
    %v443 = vld [vmem:[#allocation8 + $0x568] sm:$0xff]
    %v444 = vld [vmem:[#allocation8 + $0x570] sm:$0xff]
    %v445 = vld [vmem:[#allocation8 + $0x578] sm:$0xff]
    %v446 = vld [vmem:[#allocation8 + $0x580] sm:$0xff]
    %v447 = vld [vmem:[#allocation8 + $0x588] sm:$0xff]
    %v448 = vld [vmem:[#allocation8 + $0x590] sm:$0xff]
    %v449 = vld [vmem:[#allocation8 + $0x598] sm:$0xff]
    %v450 = vld [vmem:[#allocation8 + $0x5a0] sm:$0xff]
    %v451 = vld [vmem:[#allocation8 + $0x5a8] sm:$0xff]
    %v452 = vld [vmem:[#allocation8 + $0x5b0] sm:$0xff]
    %v453 = vld [vmem:[#allocation8 + $0x5b8] sm:$0xff]
    %v454 = vld [vmem:[#allocation8 + $0x5c0] sm:$0xff]
    %v455 = vld [vmem:[#allocation8 + $0x5c8] sm:$0xff]
    %v456 = vld [vmem:[#allocation8 + $0x5d0] sm:$0xff]
    %v457 = vld [vmem:[#allocation8 + $0x5d8] sm:$0xff]
    %v458 = vld [vmem:[#allocation8 + $0x5e0] sm:$0xff]
    %v459 = vld [vmem:[#allocation8 + $0x5e8] sm:$0xff]
    %v460 = vld [vmem:[#allocation8 + $0x5f0] sm:$0xff]
    %v461 = vld [vmem:[#allocation8 + $0x5f8] sm:$0xff]
    %v462 = vld [vmem:[#allocation8 + $0x600] sm:$0xff]
    %v463 = vld [vmem:[#allocation8 + $0x608] sm:$0xff]
    %v464 = vld [vmem:[#allocation8 + $0x610] sm:$0xff]
    %v465 = vld [vmem:[#allocation8 + $0x618] sm:$0xff]
    %v466 = vld [vmem:[#allocation8 + $0x620] sm:$0xff]
    %v467 = vld [vmem:[#allocation8 + $0x628] sm:$0xff]
    %v468 = vld [vmem:[#allocation8 + $0x630] sm:$0xff]
    %v469 = vld [vmem:[#allocation8 + $0x638] sm:$0xff]
    %v470 = vld [vmem:[#allocation8 + $0x640] sm:$0xff]
    %v471 = vld [vmem:[#allocation8 + $0x648] sm:$0xff]
    %v472 = vld [vmem:[#allocation8 + $0x650] sm:$0xff]
    %v473 = vld [vmem:[#allocation8 + $0x658] sm:$0xff]
    %v474 = vld [vmem:[#allocation8 + $0x660] sm:$0xff]
    %v475 = vld [vmem:[#allocation8 + $0x668] sm:$0xff]
    %v476 = vld [vmem:[#allocation8 + $0x670] sm:$0xff]
    %v477 = vld [vmem:[#allocation8 + $0x678] sm:$0xff]
    %v478 = vld [vmem:[#allocation8 + $0x680] sm:$0xff]
    %v479 = vld [vmem:[#allocation8 + $0x688] sm:$0xff]
    %v480 = vld [vmem:[#allocation8 + $0x690] sm:$0xff]
    %v481 = vld [vmem:[#allocation8 + $0x698] sm:$0xff]
    %v482 = vld [vmem:[#allocation8 + $0x6a0] sm:$0xff]
    %v483 = vld [vmem:[#allocation8 + $0x6a8] sm:$0xff]
    %v484 = vld [vmem:[#allocation8 + $0x6b0] sm:$0xff]
    %v485 = vld [vmem:[#allocation8 + $0x6b8] sm:$0xff]
    %v486 = vld [vmem:[#allocation8 + $0x6c0] sm:$0xff]
    %v487 = vld [vmem:[#allocation8 + $0x6c8] sm:$0xff]
    %v488 = vld [vmem:[#allocation8 + $0x6d0] sm:$0xff]
    %v489 = vld [vmem:[#allocation8 + $0x6d8] sm:$0xff]
    %v490 = vld [vmem:[#allocation8 + $0x6e0] sm:$0xff]
    %v491 = vld [vmem:[#allocation8 + $0x6e8] sm:$0xff]
    %v492 = vld [vmem:[#allocation8 + $0x6f0] sm:$0xff]
    %v493 = vld [vmem:[#allocation8 + $0x6f8] sm:$0xff]
    %v494 = vld [vmem:[#allocation8 + $0x700] sm:$0xff]
    %v495 = vld [vmem:[#allocation8 + $0x708] sm:$0xff]
    %v496 = vld [vmem:[#allocation8 + $0x710] sm:$0xff]
    %v497 = vld [vmem:[#allocation8 + $0x718] sm:$0xff]
    %v498 = vld [vmem:[#allocation8 + $0x720] sm:$0xff]
    %v499 = vld [vmem:[#allocation8 + $0x728] sm:$0xff]
    %v500 = vld [vmem:[#allocation8 + $0x730] sm:$0xff]
    %v501 = vld [vmem:[#allocation8 + $0x738] sm:$0xff]
    %v502 = vld [vmem:[#allocation8 + $0x740] sm:$0xff]
    %v503 = vld [vmem:[#allocation8 + $0x748] sm:$0xff]
    %v504 = vld [vmem:[#allocation8 + $0x750] sm:$0xff]
    %v505 = vld [vmem:[#allocation8 + $0x758] sm:$0xff]
    %v506 = vld [vmem:[#allocation8 + $0x760] sm:$0xff]
    %v507 = vld [vmem:[#allocation8 + $0x768] sm:$0xff]
    %v508 = vld [vmem:[#allocation8 + $0x770] sm:$0xff]
    %v509 = vld [vmem:[#allocation8 + $0x778] sm:$0xff]
    %v510 = vld [vmem:[#allocation8 + $0x780] sm:$0xff]
    %v511 = vld [vmem:[#allocation8 + $0x788] sm:$0xff]
    %v512 = vld [vmem:[#allocation8 + $0x790] sm:$0xff]
    %v513 = vld [vmem:[#allocation8 + $0x798] sm:$0xff]
    %v514 = vld [vmem:[#allocation8 + $0x7a0] sm:$0xff]
    %v515 = vld [vmem:[#allocation8 + $0x7a8] sm:$0xff]
    %v516 = vld [vmem:[#allocation8 + $0x7b0] sm:$0xff]
    %v517 = vld [vmem:[#allocation8 + $0x7b8] sm:$0xff]
    %v518 = vld [vmem:[#allocation8 + $0x7c0] sm:$0xff]
    %v519 = vld [vmem:[#allocation8 + $0x7c8] sm:$0xff]
    %v520 = vld [vmem:[#allocation8 + $0x7d0] sm:$0xff]
    %v521 = vld [vmem:[#allocation8 + $0x7d8] sm:$0xff]
    %v522 = vld [vmem:[#allocation8 + $0x7e0] sm:$0xff]
    %v523 = vld [vmem:[#allocation8 + $0x7e8] sm:$0xff]
    %v524 = vld [vmem:[#allocation8 + $0x7f0] sm:$0xff]
    %v525 = vld [vmem:[#allocation8 + $0x7f8] sm:$0xff]
    %v526 = vld [vmem:[#allocation8 + $0x800] sm:$0xff]
    %v527 = vld [vmem:[#allocation8 + $0x808] sm:$0xff]
    %v528 = vld [vmem:[#allocation8 + $0x810] sm:$0xff]
    %v529 = vld [vmem:[#allocation8 + $0x818] sm:$0xff]
    %v530 = vld [vmem:[#allocation8 + $0x820] sm:$0xff]
    %v531 = vld [vmem:[#allocation8 + $0x828] sm:$0xff]
    %v532 = vld [vmem:[#allocation8 + $0x830] sm:$0xff]
    %v533 = vld [vmem:[#allocation8 + $0x838] sm:$0xff]
    %v534 = vld [vmem:[#allocation8 + $0x840] sm:$0xff]
    %v535 = vld [vmem:[#allocation8 + $0x848] sm:$0xff]
    %v536 = vld [vmem:[#allocation8 + $0x850] sm:$0xff]
    %v537 = vld [vmem:[#allocation8 + $0x858] sm:$0xff]
    %v538 = vld [vmem:[#allocation8 + $0x860] sm:$0xff]
    %v539 = vld [vmem:[#allocation8 + $0x868] sm:$0xff]
    %v540 = vld [vmem:[#allocation8 + $0x870] sm:$0xff]
    %v541 = vld [vmem:[#allocation8 + $0x878] sm:$0xff]
    %v542 = vld [vmem:[#allocation8 + $0x880] sm:$0xff]
    %v543 = vld [vmem:[#allocation8 + $0x888] sm:$0xff]
    %v544 = vld [vmem:[#allocation8 + $0x890] sm:$0xff]
    %v545 = vld [vmem:[#allocation8 + $0x898] sm:$0xff]
    %v546 = vld [vmem:[#allocation8 + $0x8a0] sm:$0xff]
    %v547 = vld [vmem:[#allocation8 + $0x8a8] sm:$0xff]
    %v548 = vld [vmem:[#allocation8 + $0x8b0] sm:$0xff]
    %v549 = vld [vmem:[#allocation8 + $0x8b8] sm:$0xff]
    %v550 = vld [vmem:[#allocation8 + $0x8c0] sm:$0xff]
    %v551 = vld [vmem:[#allocation8 + $0x8c8] sm:$0xff]
    %v552 = vld [vmem:[#allocation8 + $0x8d0] sm:$0xff]
    %v553 = vld [vmem:[#allocation8 + $0x8d8] sm:$0xff]
    %v554 = vld [vmem:[#allocation8 + $0x8e0] sm:$0xff]
    %v555 = vld [vmem:[#allocation8 + $0x8e8] sm:$0xff]
    %v556 = vld [vmem:[#allocation8 + $0x8f0] sm:$0xff]
    %v557 = vld [vmem:[#allocation8 + $0x8f8] sm:$0xff]
    %v558 = vld [vmem:[#allocation10] sm:$0x3f]
    %v560 = vlaneseq
    %v561 = vshrl.u32 %v560, 7
    %v562 = vsub.s32 0, %v561
    %v563 = vrot.slane %v558, %v562
    %v564 = vlaneseq
    %v565 = vshrl.u32 %v564, 7
    %v566 = vsub.s32 1, %v565
    %v567 = vrot.slane %v558, %v566
    %v568 = vlaneseq
    %v569 = vshrl.u32 %v568, 7
    %v570 = vsub.s32 2, %v569
    %v571 = vrot.slane %v558, %v570
    %v572 = vlaneseq
    %v573 = vshrl.u32 %v572, 7
    %v574 = vsub.s32 3, %v573
    %v575 = vrot.slane %v558, %v574
    %v576 = vlaneseq
    %v577 = vshrl.u32 %v576, 7
    %v578 = vsub.s32 4, %v577
    %v579 = vrot.slane %v558, %v578
    %v580 = vlaneseq
    %v581 = vshrl.u32 %v580, 7
    %v582 = vsub.s32 5, %v581
    %v583 = vrot.slane %v558, %v582
    %v602 = vunpack.c.l.b16 %v258
    %v603 = vunpack.c.l.b16 %v259
    %v604 = vunpack.c.l.b16 %v260
    %v605 = vunpack.c.l.b16 %v261
    %v606 = vunpack.c.l.b16 %v262
    %v607 = vunpack.c.l.b16 %v263
    %v608 = vunpack.c.l.b16 %v264
    %v609 = vunpack.c.l.b16 %v265
    %v610 = vunpack.c.l.b16 %v266
    %v611 = vunpack.c.l.b16 %v267
    %v612 = vunpack.c.l.b16 %v268
    %v613 = vunpack.c.l.b16 %v269
    %vm614 = vcmask 1041409
    %v615 = vsel %vm614, %v608, %v602
    %v616 = vsel %vm614, %v609, %v603
    %v617 = vsel %vm614, %v610, %v604
    %v618 = vsel %vm614, %v611, %v605
    %v619 = vsel %vm614, %v612, %v606
    %v620 = vsel %vm614, %v613, %v607
    %v621 = vpack.c.b16 %v615, %v615
    %v622 = vpack.c.b16 %v616, %v616
    %v623 = vpack.c.b16 %v617, %v617
    %v624 = vpack.c.b16 %v618, %v618
    %v625 = vpack.c.b16 %v619, %v619
    %v626 = vpack.c.b16 %v620, %v620
    %v921 = vunpack.c.l.b16 %v270
    %v922 = vunpack.c.h.b16 %v270
    %v923 = vunpack.c.l.b16 %v271
    %v924 = vunpack.c.h.b16 %v271
    %v925 = vunpack.c.l.b16 %v272
    %v926 = vunpack.c.h.b16 %v272
    %v927 = vunpack.c.l.b16 %v273
    %v928 = vunpack.c.h.b16 %v273
    %v929 = vunpack.c.l.b16 %v274
    %v930 = vunpack.c.h.b16 %v274
    %v931 = vunpack.c.l.b16 %v275
    %v932 = vunpack.c.h.b16 %v275
    %v933 = vunpack.c.l.b16 %v276
    %v934 = vunpack.c.h.b16 %v276
    %v935 = vunpack.c.l.b16 %v277
    %v936 = vunpack.c.h.b16 %v277
    %v937 = vunpack.c.l.b16 %v278
    %v938 = vunpack.c.h.b16 %v278
    %v939 = vunpack.c.l.b16 %v279
    %v940 = vunpack.c.h.b16 %v279
    %v941 = vunpack.c.l.b16 %v280
    %v942 = vunpack.c.h.b16 %v280
    %v943 = vunpack.c.l.b16 %v281
    %v944 = vunpack.c.h.b16 %v281
    %v945 = vunpack.c.l.b16 %v282
    %v946 = vunpack.c.h.b16 %v282
    %v947 = vunpack.c.l.b16 %v283
    %v948 = vunpack.c.h.b16 %v283
    %v949 = vunpack.c.l.b16 %v284
    %v950 = vunpack.c.h.b16 %v284
    %v951 = vunpack.c.l.b16 %v285
    %v952 = vunpack.c.h.b16 %v285
    %v953 = vunpack.c.l.b16 %v286
    %v954 = vunpack.c.h.b16 %v286
    %v955 = vunpack.c.l.b16 %v287
    %v956 = vunpack.c.h.b16 %v287
    %v957 = vunpack.c.l.b16 %v288
    %v958 = vunpack.c.h.b16 %v288
    %v959 = vunpack.c.l.b16 %v289
    %v960 = vunpack.c.h.b16 %v289
    %v961 = vunpack.c.l.b16 %v290
    %v962 = vunpack.c.h.b16 %v290
    %v963 = vunpack.c.l.b16 %v291
    %v964 = vunpack.c.h.b16 %v291
    %v965 = vunpack.c.l.b16 %v292
    %v966 = vunpack.c.h.b16 %v292
    %v967 = vunpack.c.l.b16 %v293
    %v968 = vunpack.c.h.b16 %v293
    %v969 = vunpack.c.l.b16 %v294
    %v970 = vunpack.c.h.b16 %v294
    %v971 = vunpack.c.l.b16 %v295
    %v972 = vunpack.c.h.b16 %v295
    %v973 = vunpack.c.l.b16 %v296
    %v974 = vunpack.c.h.b16 %v296
    %v975 = vunpack.c.l.b16 %v297
    %v976 = vunpack.c.h.b16 %v297
    %v977 = vunpack.c.l.b16 %v298
    %v978 = vunpack.c.h.b16 %v298
    %v979 = vunpack.c.l.b16 %v299
    %v980 = vunpack.c.h.b16 %v299
    %v981 = vunpack.c.l.b16 %v300
    %v982 = vunpack.c.h.b16 %v300
    %v983 = vunpack.c.l.b16 %v301
    %v984 = vunpack.c.h.b16 %v301
    %v985 = vunpack.c.l.b16 %v302
    %v986 = vunpack.c.h.b16 %v302
    %v987 = vunpack.c.l.b16 %v303
    %v988 = vunpack.c.h.b16 %v303
    %v989 = vunpack.c.l.b16 %v304
    %v990 = vunpack.c.h.b16 %v304
    %v991 = vunpack.c.l.b16 %v305
    %v992 = vunpack.c.h.b16 %v305
    %v993 = vunpack.c.l.b16 %v306
    %v994 = vunpack.c.h.b16 %v306
    %v995 = vunpack.c.l.b16 %v307
    %v996 = vunpack.c.h.b16 %v307
    %v997 = vunpack.c.l.b16 %v308
    %v998 = vunpack.c.h.b16 %v308
    %v999 = vunpack.c.l.b16 %v309
    %v1000 = vunpack.c.h.b16 %v309
    %v1001 = vunpack.c.l.b16 %v310
    %v1002 = vunpack.c.h.b16 %v310
    %v1003 = vunpack.c.l.b16 %v311
    %v1004 = vunpack.c.h.b16 %v311
    %v1005 = vunpack.c.l.b16 %v312
    %v1006 = vunpack.c.h.b16 %v312
    %v1007 = vunpack.c.l.b16 %v313
    %v1008 = vunpack.c.h.b16 %v313
    %v1009 = vunpack.c.l.b16 %v314
    %v1010 = vunpack.c.h.b16 %v314
    %v1011 = vunpack.c.l.b16 %v315
    %v1012 = vunpack.c.h.b16 %v315
    %v1013 = vunpack.c.l.b16 %v316
    %v1014 = vunpack.c.h.b16 %v316
    %v1015 = vunpack.c.l.b16 %v317
    %v1016 = vunpack.c.h.b16 %v317
    %v1017 = vunpack.c.l.b16 %v318
    %v1018 = vunpack.c.h.b16 %v318
    %v1019 = vunpack.c.l.b16 %v319
    %v1020 = vunpack.c.h.b16 %v319
    %v1021 = vunpack.c.l.b16 %v320
    %v1022 = vunpack.c.h.b16 %v320
    %v1023 = vunpack.c.l.b16 %v321
    %v1024 = vunpack.c.h.b16 %v321
    %v1025 = vunpack.c.l.b16 %v322
    %v1026 = vunpack.c.h.b16 %v322
    %v1027 = vunpack.c.l.b16 %v323
    %v1028 = vunpack.c.h.b16 %v323
    %v1029 = vunpack.c.l.b16 %v324
    %v1030 = vunpack.c.h.b16 %v324
    %v1031 = vunpack.c.l.b16 %v325
    %v1032 = vunpack.c.h.b16 %v325
    %v1033 = vunpack.c.l.b16 %v326
    %v1034 = vunpack.c.h.b16 %v326
    %v1035 = vunpack.c.l.b16 %v327
    %v1036 = vunpack.c.h.b16 %v327
    %v1037 = vunpack.c.l.b16 %v328
    %v1038 = vunpack.c.h.b16 %v328
    %v1039 = vunpack.c.l.b16 %v329
    %v1040 = vunpack.c.h.b16 %v329
    %v1041 = vunpack.c.l.b16 %v330
    %v1042 = vunpack.c.h.b16 %v330
    %v1043 = vunpack.c.l.b16 %v331
    %v1044 = vunpack.c.h.b16 %v331
    %v1045 = vunpack.c.l.b16 %v332
    %v1046 = vunpack.c.h.b16 %v332
    %v1047 = vunpack.c.l.b16 %v333
    %v1048 = vunpack.c.h.b16 %v333
    %v1049 = vunpack.c.l.b16 %v334
    %v1050 = vunpack.c.h.b16 %v334
    %v1051 = vunpack.c.l.b16 %v335
    %v1052 = vunpack.c.h.b16 %v335
    %v1053 = vunpack.c.l.b16 %v336
    %v1054 = vunpack.c.h.b16 %v336
    %v1055 = vunpack.c.l.b16 %v337
    %v1056 = vunpack.c.h.b16 %v337
    %v1057 = vunpack.c.l.b16 %v338
    %v1058 = vunpack.c.h.b16 %v338
    %v1059 = vunpack.c.l.b16 %v339
    %v1060 = vunpack.c.h.b16 %v339
    %v1061 = vunpack.c.l.b16 %v340
    %v1062 = vunpack.c.h.b16 %v340
    %v1063 = vunpack.c.l.b16 %v341
    %v1064 = vunpack.c.h.b16 %v341
    %v1065 = vunpack.c.l.b16 %v342
    %v1066 = vunpack.c.h.b16 %v342
    %v1067 = vunpack.c.l.b16 %v343
    %v1068 = vunpack.c.h.b16 %v343
    %v1069 = vunpack.c.l.b16 %v344
    %v1070 = vunpack.c.h.b16 %v344
    %v1071 = vunpack.c.l.b16 %v345
    %v1072 = vunpack.c.h.b16 %v345
    %v1073 = vunpack.c.l.b16 %v346
    %v1074 = vunpack.c.h.b16 %v346
    %v1075 = vunpack.c.l.b16 %v347
    %v1076 = vunpack.c.h.b16 %v347
    %v1077 = vunpack.c.l.b16 %v348
    %v1078 = vunpack.c.h.b16 %v348
    %v1079 = vunpack.c.l.b16 %v349
    %v1080 = vunpack.c.h.b16 %v349
    %v1081 = vunpack.c.l.b16 %v350
    %v1082 = vunpack.c.h.b16 %v350
    %v1083 = vunpack.c.l.b16 %v351
    %v1084 = vunpack.c.h.b16 %v351
    %v1085 = vunpack.c.l.b16 %v352
    %v1086 = vunpack.c.h.b16 %v352
    %v1087 = vunpack.c.l.b16 %v353
    %v1088 = vunpack.c.h.b16 %v353
    %v1089 = vunpack.c.l.b16 %v354
    %v1090 = vunpack.c.h.b16 %v354
    %v1091 = vunpack.c.l.b16 %v355
    %v1092 = vunpack.c.h.b16 %v355
    %v1093 = vunpack.c.l.b16 %v356
    %v1094 = vunpack.c.h.b16 %v356
    %v1095 = vunpack.c.l.b16 %v357
    %v1096 = vunpack.c.h.b16 %v357
    %v1097 = vunpack.c.l.b16 %v358
    %v1098 = vunpack.c.h.b16 %v358
    %v1099 = vunpack.c.l.b16 %v359
    %v1100 = vunpack.c.h.b16 %v359
    %v1101 = vunpack.c.l.b16 %v360
    %v1102 = vunpack.c.h.b16 %v360
    %v1103 = vunpack.c.l.b16 %v361
    %v1104 = vunpack.c.h.b16 %v361
    %v1105 = vunpack.c.l.b16 %v362
    %v1106 = vunpack.c.h.b16 %v362
    %v1107 = vunpack.c.l.b16 %v363
    %v1108 = vunpack.c.h.b16 %v363
    %v1109 = vunpack.c.l.b16 %v364
    %v1110 = vunpack.c.h.b16 %v364
    %v1111 = vunpack.c.l.b16 %v365
    %v1112 = vunpack.c.h.b16 %v365
    %v1113 = vunpack.c.l.b16 %v366
    %v1114 = vunpack.c.h.b16 %v366
    %v1115 = vunpack.c.l.b16 %v367
    %v1116 = vunpack.c.h.b16 %v367
    %v1117 = vunpack.c.l.b16 %v368
    %v1118 = vunpack.c.h.b16 %v368
    %v1119 = vunpack.c.l.b16 %v369
    %v1120 = vunpack.c.h.b16 %v369
    %v1121 = vunpack.c.l.b16 %v370
    %v1122 = vunpack.c.h.b16 %v370
    %v1123 = vunpack.c.l.b16 %v371
    %v1124 = vunpack.c.h.b16 %v371
    %v1125 = vunpack.c.l.b16 %v372
    %v1126 = vunpack.c.h.b16 %v372
    %v1127 = vunpack.c.l.b16 %v373
    %v1128 = vunpack.c.h.b16 %v373
    %v1129 = vunpack.c.l.b16 %v374
    %v1130 = vunpack.c.h.b16 %v374
    %v1131 = vunpack.c.l.b16 %v375
    %v1132 = vunpack.c.h.b16 %v375
    %v1133 = vunpack.c.l.b16 %v376
    %v1134 = vunpack.c.h.b16 %v376
    %v1135 = vunpack.c.l.b16 %v377
    %v1136 = vunpack.c.h.b16 %v377
    %v1137 = vunpack.c.l.b16 %v378
    %v1138 = vunpack.c.h.b16 %v378
    %v1139 = vunpack.c.l.b16 %v379
    %v1140 = vunpack.c.h.b16 %v379
    %v1141 = vunpack.c.l.b16 %v380
    %v1142 = vunpack.c.h.b16 %v380
    %v1143 = vunpack.c.l.b16 %v381
    %v1144 = vunpack.c.h.b16 %v381
    %v1145 = vunpack.c.l.b16 %v382
    %v1146 = vunpack.c.h.b16 %v382
    %v1147 = vunpack.c.l.b16 %v383
    %v1148 = vunpack.c.h.b16 %v383
    %v1149 = vunpack.c.l.b16 %v384
    %v1150 = vunpack.c.h.b16 %v384
    %v1151 = vunpack.c.l.b16 %v385
    %v1152 = vunpack.c.h.b16 %v385
    %v1153 = vunpack.c.l.b16 %v386
    %v1154 = vunpack.c.h.b16 %v386
    %v1155 = vunpack.c.l.b16 %v387
    %v1156 = vunpack.c.h.b16 %v387
    %v1157 = vunpack.c.l.b16 %v388
    %v1158 = vunpack.c.h.b16 %v388
    %v1159 = vunpack.c.l.b16 %v389
    %v1160 = vunpack.c.h.b16 %v389
    %v1161 = vunpack.c.l.b16 %v390
    %v1162 = vunpack.c.h.b16 %v390
    %v1163 = vunpack.c.l.b16 %v391
    %v1164 = vunpack.c.h.b16 %v391
    %v1165 = vunpack.c.l.b16 %v392
    %v1166 = vunpack.c.h.b16 %v392
    %v1167 = vunpack.c.l.b16 %v393
    %v1168 = vunpack.c.h.b16 %v393
    %v1169 = vunpack.c.l.b16 %v394
    %v1170 = vunpack.c.h.b16 %v394
    %v1171 = vunpack.c.l.b16 %v395
    %v1172 = vunpack.c.h.b16 %v395
    %v1173 = vunpack.c.l.b16 %v396
    %v1174 = vunpack.c.h.b16 %v396
    %v1175 = vunpack.c.l.b16 %v397
    %v1176 = vunpack.c.h.b16 %v397
    %v1177 = vunpack.c.l.b16 %v398
    %v1178 = vunpack.c.h.b16 %v398
    %v1179 = vunpack.c.l.b16 %v399
    %v1180 = vunpack.c.h.b16 %v399
    %v1181 = vunpack.c.l.b16 %v400
    %v1182 = vunpack.c.h.b16 %v400
    %v1183 = vunpack.c.l.b16 %v401
    %v1184 = vunpack.c.h.b16 %v401
    %v1185 = vunpack.c.l.b16 %v402
    %v1186 = vunpack.c.h.b16 %v402
    %v1187 = vunpack.c.l.b16 %v403
    %v1188 = vunpack.c.h.b16 %v403
    %v1189 = vunpack.c.l.b16 %v404
    %v1190 = vunpack.c.h.b16 %v404
    %v1191 = vunpack.c.l.b16 %v405
    %v1192 = vunpack.c.h.b16 %v405
    %v1193 = vunpack.c.l.b16 %v406
    %v1194 = vunpack.c.h.b16 %v406
    %v1195 = vunpack.c.l.b16 %v407
    %v1196 = vunpack.c.h.b16 %v407
    %v1197 = vunpack.c.l.b16 %v408
    %v1198 = vunpack.c.h.b16 %v408
    %v1199 = vunpack.c.l.b16 %v409
    %v1200 = vunpack.c.h.b16 %v409
    %v1201 = vunpack.c.l.b16 %v410
    %v1202 = vunpack.c.h.b16 %v410
    %v1203 = vunpack.c.l.b16 %v411
    %v1204 = vunpack.c.h.b16 %v411
    %v1205 = vunpack.c.l.b16 %v412
    %v1206 = vunpack.c.h.b16 %v412
    %v1207 = vunpack.c.l.b16 %v413
    %v1208 = vunpack.c.h.b16 %v413
    %v1209 = vunpack.c.l.b16 %v414
    %v1210 = vunpack.c.h.b16 %v414
    %v1211 = vunpack.c.l.b16 %v415
    %v1212 = vunpack.c.h.b16 %v415
    %v1213 = vunpack.c.l.b16 %v416
    %v1214 = vunpack.c.h.b16 %v416
    %v1215 = vunpack.c.l.b16 %v417
    %v1216 = vunpack.c.h.b16 %v417
    %v1217 = vunpack.c.l.b16 %v418
    %v1218 = vunpack.c.h.b16 %v418
    %v1219 = vunpack.c.l.b16 %v419
    %v1220 = vunpack.c.h.b16 %v419
    %v1221 = vunpack.c.l.b16 %v420
    %v1222 = vunpack.c.h.b16 %v420
    %v1223 = vunpack.c.l.b16 %v421
    %v1224 = vunpack.c.h.b16 %v421
    %v1225 = vunpack.c.l.b16 %v422
    %v1226 = vunpack.c.h.b16 %v422
    %v1227 = vunpack.c.l.b16 %v423
    %v1228 = vunpack.c.h.b16 %v423
    %v1229 = vunpack.c.l.b16 %v424
    %v1230 = vunpack.c.h.b16 %v424
    %v1231 = vunpack.c.l.b16 %v425
    %v1232 = vunpack.c.h.b16 %v425
    %v1233 = vunpack.c.l.b16 %v426
    %v1234 = vunpack.c.h.b16 %v426
    %v1235 = vunpack.c.l.b16 %v427
    %v1236 = vunpack.c.h.b16 %v427
    %v1237 = vunpack.c.l.b16 %v428
    %v1238 = vunpack.c.h.b16 %v428
    %v1239 = vunpack.c.l.b16 %v429
    %v1240 = vunpack.c.h.b16 %v429
    %v1241 = vunpack.c.l.b16 %v430
    %v1242 = vunpack.c.h.b16 %v430
    %v1243 = vunpack.c.l.b16 %v431
    %v1244 = vunpack.c.h.b16 %v431
    %v1245 = vunpack.c.l.b16 %v432
    %v1246 = vunpack.c.h.b16 %v432
    %v1247 = vunpack.c.l.b16 %v433
    %v1248 = vunpack.c.h.b16 %v433
    %v1249 = vunpack.c.l.b16 %v434
    %v1250 = vunpack.c.h.b16 %v434
    %v1251 = vunpack.c.l.b16 %v435
    %v1252 = vunpack.c.h.b16 %v435
    %v1253 = vunpack.c.l.b16 %v436
    %v1254 = vunpack.c.h.b16 %v436
    %v1255 = vunpack.c.l.b16 %v437
    %v1256 = vunpack.c.h.b16 %v437
    %v1257 = vunpack.c.l.b16 %v438
    %v1258 = vunpack.c.h.b16 %v438
    %v1259 = vunpack.c.l.b16 %v439
    %v1260 = vunpack.c.h.b16 %v439
    %v1261 = vunpack.c.l.b16 %v440
    %v1262 = vunpack.c.h.b16 %v440
    %v1263 = vunpack.c.l.b16 %v441
    %v1264 = vunpack.c.h.b16 %v441
    %v1265 = vunpack.c.l.b16 %v442
    %v1266 = vunpack.c.h.b16 %v442
    %v1267 = vunpack.c.l.b16 %v443
    %v1268 = vunpack.c.h.b16 %v443
    %v1269 = vunpack.c.l.b16 %v444
    %v1270 = vunpack.c.h.b16 %v444
    %v1271 = vunpack.c.l.b16 %v445
    %v1272 = vunpack.c.h.b16 %v445
    %v1273 = vunpack.c.l.b16 %v446
    %v1274 = vunpack.c.h.b16 %v446
    %v1275 = vunpack.c.l.b16 %v447
    %v1276 = vunpack.c.h.b16 %v447
    %v1277 = vunpack.c.l.b16 %v448
    %v1278 = vunpack.c.h.b16 %v448
    %v1279 = vunpack.c.l.b16 %v449
    %v1280 = vunpack.c.h.b16 %v449
    %v1281 = vunpack.c.l.b16 %v450
    %v1282 = vunpack.c.h.b16 %v450
    %v1283 = vunpack.c.l.b16 %v451
    %v1284 = vunpack.c.h.b16 %v451
    %v1285 = vunpack.c.l.b16 %v452
    %v1286 = vunpack.c.h.b16 %v452
    %v1287 = vunpack.c.l.b16 %v453
    %v1288 = vunpack.c.h.b16 %v453
    %v1289 = vunpack.c.l.b16 %v454
    %v1290 = vunpack.c.h.b16 %v454
    %v1291 = vunpack.c.l.b16 %v455
    %v1292 = vunpack.c.h.b16 %v455
    %v1293 = vunpack.c.l.b16 %v456
    %v1294 = vunpack.c.h.b16 %v456
    %v1295 = vunpack.c.l.b16 %v457
    %v1296 = vunpack.c.h.b16 %v457
    %v1297 = vunpack.c.l.b16 %v458
    %v1298 = vunpack.c.h.b16 %v458
    %v1299 = vunpack.c.l.b16 %v459
    %v1300 = vunpack.c.h.b16 %v459
    %v1301 = vunpack.c.l.b16 %v460
    %v1302 = vunpack.c.h.b16 %v460
    %v1303 = vunpack.c.l.b16 %v461
    %v1304 = vunpack.c.h.b16 %v461
    %v1305 = vunpack.c.l.b16 %v462
    %v1306 = vunpack.c.h.b16 %v462
    %v1307 = vunpack.c.l.b16 %v463
    %v1308 = vunpack.c.h.b16 %v463
    %v1309 = vunpack.c.l.b16 %v464
    %v1310 = vunpack.c.h.b16 %v464
    %v1311 = vunpack.c.l.b16 %v465
    %v1312 = vunpack.c.h.b16 %v465
    %v1313 = vunpack.c.l.b16 %v466
    %v1314 = vunpack.c.h.b16 %v466
    %v1315 = vunpack.c.l.b16 %v467
    %v1316 = vunpack.c.h.b16 %v467
    %v1317 = vunpack.c.l.b16 %v468
    %v1318 = vunpack.c.h.b16 %v468
    %v1319 = vunpack.c.l.b16 %v469
    %v1320 = vunpack.c.h.b16 %v469
    %v1321 = vunpack.c.l.b16 %v470
    %v1322 = vunpack.c.h.b16 %v470
    %v1323 = vunpack.c.l.b16 %v471
    %v1324 = vunpack.c.h.b16 %v471
    %v1325 = vunpack.c.l.b16 %v472
    %v1326 = vunpack.c.h.b16 %v472
    %v1327 = vunpack.c.l.b16 %v473
    %v1328 = vunpack.c.h.b16 %v473
    %v1329 = vunpack.c.l.b16 %v474
    %v1330 = vunpack.c.h.b16 %v474
    %v1331 = vunpack.c.l.b16 %v475
    %v1332 = vunpack.c.h.b16 %v475
    %v1333 = vunpack.c.l.b16 %v476
    %v1334 = vunpack.c.h.b16 %v476
    %v1335 = vunpack.c.l.b16 %v477
    %v1336 = vunpack.c.h.b16 %v477
    %v1337 = vunpack.c.l.b16 %v478
    %v1338 = vunpack.c.h.b16 %v478
    %v1339 = vunpack.c.l.b16 %v479
    %v1340 = vunpack.c.h.b16 %v479
    %v1341 = vunpack.c.l.b16 %v480
    %v1342 = vunpack.c.h.b16 %v480
    %v1343 = vunpack.c.l.b16 %v481
    %v1344 = vunpack.c.h.b16 %v481
    %v1345 = vunpack.c.l.b16 %v482
    %v1346 = vunpack.c.h.b16 %v482
    %v1347 = vunpack.c.l.b16 %v483
    %v1348 = vunpack.c.h.b16 %v483
    %v1349 = vunpack.c.l.b16 %v484
    %v1350 = vunpack.c.h.b16 %v484
    %v1351 = vunpack.c.l.b16 %v485
    %v1352 = vunpack.c.h.b16 %v485
    %v1353 = vunpack.c.l.b16 %v486
    %v1354 = vunpack.c.h.b16 %v486
    %v1355 = vunpack.c.l.b16 %v487
    %v1356 = vunpack.c.h.b16 %v487
    %v1357 = vunpack.c.l.b16 %v488
    %v1358 = vunpack.c.h.b16 %v488
    %v1359 = vunpack.c.l.b16 %v489
    %v1360 = vunpack.c.h.b16 %v489
    %v1361 = vunpack.c.l.b16 %v490
    %v1362 = vunpack.c.h.b16 %v490
    %v1363 = vunpack.c.l.b16 %v491
    %v1364 = vunpack.c.h.b16 %v491
    %v1365 = vunpack.c.l.b16 %v492
    %v1366 = vunpack.c.h.b16 %v492
    %v1367 = vunpack.c.l.b16 %v493
    %v1368 = vunpack.c.h.b16 %v493
    %v1369 = vunpack.c.l.b16 %v494
    %v1370 = vunpack.c.h.b16 %v494
    %v1371 = vunpack.c.l.b16 %v495
    %v1372 = vunpack.c.h.b16 %v495
    %v1373 = vunpack.c.l.b16 %v496
    %v1374 = vunpack.c.h.b16 %v496
    %v1375 = vunpack.c.l.b16 %v497
    %v1376 = vunpack.c.h.b16 %v497
    %v1377 = vunpack.c.l.b16 %v498
    %v1378 = vunpack.c.h.b16 %v498
    %v1379 = vunpack.c.l.b16 %v499
    %v1380 = vunpack.c.h.b16 %v499
    %v1381 = vunpack.c.l.b16 %v500
    %v1382 = vunpack.c.h.b16 %v500
    %v1383 = vunpack.c.l.b16 %v501
    %v1384 = vunpack.c.h.b16 %v501
    %v1385 = vunpack.c.l.b16 %v502
    %v1386 = vunpack.c.h.b16 %v502
    %v1387 = vunpack.c.l.b16 %v503
    %v1388 = vunpack.c.h.b16 %v503
    %v1389 = vunpack.c.l.b16 %v504
    %v1390 = vunpack.c.h.b16 %v504
    %v1391 = vunpack.c.l.b16 %v505
    %v1392 = vunpack.c.h.b16 %v505
    %v1393 = vunpack.c.l.b16 %v506
    %v1394 = vunpack.c.h.b16 %v506
    %v1395 = vunpack.c.l.b16 %v507
    %v1396 = vunpack.c.h.b16 %v507
    %v1397 = vunpack.c.l.b16 %v508
    %v1398 = vunpack.c.h.b16 %v508
    %v1399 = vunpack.c.l.b16 %v509
    %v1400 = vunpack.c.h.b16 %v509
    %v1401 = vunpack.c.l.b16 %v510
    %v1402 = vunpack.c.h.b16 %v510
    %v1403 = vunpack.c.l.b16 %v511
    %v1404 = vunpack.c.h.b16 %v511
    %v1405 = vunpack.c.l.b16 %v512
    %v1406 = vunpack.c.h.b16 %v512
    %v1407 = vunpack.c.l.b16 %v513
    %v1408 = vunpack.c.h.b16 %v513
    %v1409 = vunpack.c.l.b16 %v514
    %v1410 = vunpack.c.h.b16 %v514
    %v1411 = vunpack.c.l.b16 %v515
    %v1412 = vunpack.c.h.b16 %v515
    %v1413 = vunpack.c.l.b16 %v516
    %v1414 = vunpack.c.h.b16 %v516
    %v1415 = vunpack.c.l.b16 %v517
    %v1416 = vunpack.c.h.b16 %v517
    %v1417 = vunpack.c.l.b16 %v518
    %v1418 = vunpack.c.h.b16 %v518
    %v1419 = vunpack.c.l.b16 %v519
    %v1420 = vunpack.c.h.b16 %v519
    %v1421 = vunpack.c.l.b16 %v520
    %v1422 = vunpack.c.h.b16 %v520
    %v1423 = vunpack.c.l.b16 %v521
    %v1424 = vunpack.c.h.b16 %v521
    %v1425 = vunpack.c.l.b16 %v522
    %v1426 = vunpack.c.h.b16 %v522
    %v1427 = vunpack.c.l.b16 %v523
    %v1428 = vunpack.c.h.b16 %v523
    %v1429 = vunpack.c.l.b16 %v524
    %v1430 = vunpack.c.h.b16 %v524
    %v1431 = vunpack.c.l.b16 %v525
    %v1432 = vunpack.c.h.b16 %v525
    %v1433 = vunpack.c.l.b16 %v526
    %v1434 = vunpack.c.h.b16 %v526
    %v1435 = vunpack.c.l.b16 %v527
    %v1436 = vunpack.c.h.b16 %v527
    %v1437 = vunpack.c.l.b16 %v528
    %v1438 = vunpack.c.h.b16 %v528
    %v1439 = vunpack.c.l.b16 %v529
    %v1440 = vunpack.c.h.b16 %v529
    %v1441 = vunpack.c.l.b16 %v530
    %v1442 = vunpack.c.h.b16 %v530
    %v1443 = vunpack.c.l.b16 %v531
    %v1444 = vunpack.c.h.b16 %v531
    %v1445 = vunpack.c.l.b16 %v532
    %v1446 = vunpack.c.h.b16 %v532
    %v1447 = vunpack.c.l.b16 %v533
    %v1448 = vunpack.c.h.b16 %v533
    %v1449 = vunpack.c.l.b16 %v534
    %v1450 = vunpack.c.h.b16 %v534
    %v1451 = vunpack.c.l.b16 %v535
    %v1452 = vunpack.c.h.b16 %v535
    %v1453 = vunpack.c.l.b16 %v536
    %v1454 = vunpack.c.h.b16 %v536
    %v1455 = vunpack.c.l.b16 %v537
    %v1456 = vunpack.c.h.b16 %v537
    %v1457 = vunpack.c.l.b16 %v538
    %v1458 = vunpack.c.h.b16 %v538
    %v1459 = vunpack.c.l.b16 %v539
    %v1460 = vunpack.c.h.b16 %v539
    %v1461 = vunpack.c.l.b16 %v540
    %v1462 = vunpack.c.h.b16 %v540
    %v1463 = vunpack.c.l.b16 %v541
    %v1464 = vunpack.c.h.b16 %v541
    %v1465 = vunpack.c.l.b16 %v542
    %v1466 = vunpack.c.h.b16 %v542
    %v1467 = vunpack.c.l.b16 %v543
    %v1468 = vunpack.c.h.b16 %v543
    %v1469 = vunpack.c.l.b16 %v544
    %v1470 = vunpack.c.h.b16 %v544
    %v1471 = vunpack.c.l.b16 %v545
    %v1472 = vunpack.c.h.b16 %v545
    %v1473 = vunpack.c.l.b16 %v546
    %v1474 = vunpack.c.h.b16 %v546
    %v1475 = vunpack.c.l.b16 %v547
    %v1476 = vunpack.c.h.b16 %v547
    %v1477 = vunpack.c.l.b16 %v548
    %v1478 = vunpack.c.h.b16 %v548
    %v1479 = vunpack.c.l.b16 %v549
    %v1480 = vunpack.c.h.b16 %v549
    %v1481 = vunpack.c.l.b16 %v550
    %v1482 = vunpack.c.h.b16 %v550
    %v1483 = vunpack.c.l.b16 %v551
    %v1484 = vunpack.c.h.b16 %v551
    %v1485 = vunpack.c.l.b16 %v552
    %v1486 = vunpack.c.h.b16 %v552
    %v1487 = vunpack.c.l.b16 %v553
    %v1488 = vunpack.c.h.b16 %v553
    %v1489 = vunpack.c.l.b16 %v554
    %v1490 = vunpack.c.h.b16 %v554
    %v1491 = vunpack.c.l.b16 %v555
    %v1492 = vunpack.c.h.b16 %v555
    %v1493 = vunpack.c.l.b16 %v556
    %v1494 = vunpack.c.h.b16 %v556
    %v1495 = vunpack.c.l.b16 %v557
    %v1496 = vunpack.c.h.b16 %v557
    %v1497 = vpack.c.b16 %v927, %v921
    %v1498 = vpack.c.b16 %v928, %v922
    %v1499 = vpack.c.b16 %v929, %v923
    %v1500 = vpack.c.b16 %v930, %v924
    %v1501 = vpack.c.b16 %v931, %v925
    %v1502 = vpack.c.b16 %v932, %v926
    %v1503 = vpack.c.b16 %v939, %v933
    %v1504 = vpack.c.b16 %v940, %v934
    %v1505 = vpack.c.b16 %v941, %v935
    %v1506 = vpack.c.b16 %v942, %v936
    %v1507 = vpack.c.b16 %v943, %v937
    %v1508 = vpack.c.b16 %v944, %v938
    %v1509 = vpack.c.b16 %v951, %v945
    %v1510 = vpack.c.b16 %v952, %v946
    %v1511 = vpack.c.b16 %v953, %v947
    %v1512 = vpack.c.b16 %v954, %v948
    %v1513 = vpack.c.b16 %v955, %v949
    %v1514 = vpack.c.b16 %v956, %v950
    %v1515 = vpack.c.b16 %v963, %v957
    %v1516 = vpack.c.b16 %v964, %v958
    %v1517 = vpack.c.b16 %v965, %v959
    %v1518 = vpack.c.b16 %v966, %v960
    %v1519 = vpack.c.b16 %v967, %v961
    %v1520 = vpack.c.b16 %v968, %v962
    %v1521 = vpack.c.b16 %v975, %v969
    %v1522 = vpack.c.b16 %v976, %v970
    %v1523 = vpack.c.b16 %v977, %v971
    %v1524 = vpack.c.b16 %v978, %v972
    %v1525 = vpack.c.b16 %v979, %v973
    %v1526 = vpack.c.b16 %v980, %v974
    %v1527 = vpack.c.b16 %v987, %v981
    %v1528 = vpack.c.b16 %v988, %v982
    %v1529 = vpack.c.b16 %v989, %v983
    %v1530 = vpack.c.b16 %v990, %v984
    %v1531 = vpack.c.b16 %v991, %v985
    %v1532 = vpack.c.b16 %v992, %v986
    %v1533 = vpack.c.b16 %v999, %v993
    %v1534 = vpack.c.b16 %v1000, %v994
    %v1535 = vpack.c.b16 %v1001, %v995
    %v1536 = vpack.c.b16 %v1002, %v996
    %v1537 = vpack.c.b16 %v1003, %v997
    %v1538 = vpack.c.b16 %v1004, %v998
    %v1539 = vpack.c.b16 %v1011, %v1005
    %v1540 = vpack.c.b16 %v1012, %v1006
    %v1541 = vpack.c.b16 %v1013, %v1007
    %v1542 = vpack.c.b16 %v1014, %v1008
    %v1543 = vpack.c.b16 %v1015, %v1009
    %v1544 = vpack.c.b16 %v1016, %v1010
    %v1545 = vpack.c.b16 %v1023, %v1017
    %v1546 = vpack.c.b16 %v1024, %v1018
    %v1547 = vpack.c.b16 %v1025, %v1019
    %v1548 = vpack.c.b16 %v1026, %v1020
    %v1549 = vpack.c.b16 %v1027, %v1021
    %v1550 = vpack.c.b16 %v1028, %v1022
    %v1551 = vpack.c.b16 %v1035, %v1029
    %v1552 = vpack.c.b16 %v1036, %v1030
    %v1553 = vpack.c.b16 %v1037, %v1031
    %v1554 = vpack.c.b16 %v1038, %v1032
    %v1555 = vpack.c.b16 %v1039, %v1033
    %v1556 = vpack.c.b16 %v1040, %v1034
    %v1557 = vpack.c.b16 %v1047, %v1041
    %v1558 = vpack.c.b16 %v1048, %v1042
    %v1559 = vpack.c.b16 %v1049, %v1043
    %v1560 = vpack.c.b16 %v1050, %v1044
    %v1561 = vpack.c.b16 %v1051, %v1045
    %v1562 = vpack.c.b16 %v1052, %v1046
    %v1563 = vpack.c.b16 %v1059, %v1053
    %v1564 = vpack.c.b16 %v1060, %v1054
    %v1565 = vpack.c.b16 %v1061, %v1055
    %v1566 = vpack.c.b16 %v1062, %v1056
    %v1567 = vpack.c.b16 %v1063, %v1057
    %v1568 = vpack.c.b16 %v1064, %v1058
    %v1569 = vpack.c.b16 %v1071, %v1065
    %v1570 = vpack.c.b16 %v1072, %v1066
    %v1571 = vpack.c.b16 %v1073, %v1067
    %v1572 = vpack.c.b16 %v1074, %v1068
    %v1573 = vpack.c.b16 %v1075, %v1069
    %v1574 = vpack.c.b16 %v1076, %v1070
    %v1575 = vpack.c.b16 %v1083, %v1077
    %v1576 = vpack.c.b16 %v1084, %v1078
    %v1577 = vpack.c.b16 %v1085, %v1079
    %v1578 = vpack.c.b16 %v1086, %v1080
    %v1579 = vpack.c.b16 %v1087, %v1081
    %v1580 = vpack.c.b16 %v1088, %v1082
    %v1581 = vpack.c.b16 %v1095, %v1089
    %v1582 = vpack.c.b16 %v1096, %v1090
    %v1583 = vpack.c.b16 %v1097, %v1091
    %v1584 = vpack.c.b16 %v1098, %v1092
    %v1585 = vpack.c.b16 %v1099, %v1093
    %v1586 = vpack.c.b16 %v1100, %v1094
    %v1587 = vpack.c.b16 %v1107, %v1101
    %v1588 = vpack.c.b16 %v1108, %v1102
    %v1589 = vpack.c.b16 %v1109, %v1103
    %v1590 = vpack.c.b16 %v1110, %v1104
    %v1591 = vpack.c.b16 %v1111, %v1105
    %v1592 = vpack.c.b16 %v1112, %v1106
    %v1593 = vpack.c.b16 %v1119, %v1113
    %v1594 = vpack.c.b16 %v1120, %v1114
    %v1595 = vpack.c.b16 %v1121, %v1115
    %v1596 = vpack.c.b16 %v1122, %v1116
    %v1597 = vpack.c.b16 %v1123, %v1117
    %v1598 = vpack.c.b16 %v1124, %v1118
    %v1599 = vpack.c.b16 %v1131, %v1125
    %v1600 = vpack.c.b16 %v1132, %v1126
    %v1601 = vpack.c.b16 %v1133, %v1127
    %v1602 = vpack.c.b16 %v1134, %v1128
    %v1603 = vpack.c.b16 %v1135, %v1129
    %v1604 = vpack.c.b16 %v1136, %v1130
    %v1605 = vpack.c.b16 %v1143, %v1137
    %v1606 = vpack.c.b16 %v1144, %v1138
    %v1607 = vpack.c.b16 %v1145, %v1139
    %v1608 = vpack.c.b16 %v1146, %v1140
    %v1609 = vpack.c.b16 %v1147, %v1141
    %v1610 = vpack.c.b16 %v1148, %v1142
    %v1611 = vpack.c.b16 %v1155, %v1149
    %v1612 = vpack.c.b16 %v1156, %v1150
    %v1613 = vpack.c.b16 %v1157, %v1151
    %v1614 = vpack.c.b16 %v1158, %v1152
    %v1615 = vpack.c.b16 %v1159, %v1153
    %v1616 = vpack.c.b16 %v1160, %v1154
    %v1617 = vpack.c.b16 %v1167, %v1161
    %v1618 = vpack.c.b16 %v1168, %v1162
    %v1619 = vpack.c.b16 %v1169, %v1163
    %v1620 = vpack.c.b16 %v1170, %v1164
    %v1621 = vpack.c.b16 %v1171, %v1165
    %v1622 = vpack.c.b16 %v1172, %v1166
    %v1623 = vpack.c.b16 %v1179, %v1173
    %v1624 = vpack.c.b16 %v1180, %v1174
    %v1625 = vpack.c.b16 %v1181, %v1175
    %v1626 = vpack.c.b16 %v1182, %v1176
    %v1627 = vpack.c.b16 %v1183, %v1177
    %v1628 = vpack.c.b16 %v1184, %v1178
    %v1629 = vpack.c.b16 %v1191, %v1185
    %v1630 = vpack.c.b16 %v1192, %v1186
    %v1631 = vpack.c.b16 %v1193, %v1187
    %v1632 = vpack.c.b16 %v1194, %v1188
    %v1633 = vpack.c.b16 %v1195, %v1189
    %v1634 = vpack.c.b16 %v1196, %v1190
    %v1635 = vpack.c.b16 %v1203, %v1197
    %v1636 = vpack.c.b16 %v1204, %v1198
    %v1637 = vpack.c.b16 %v1205, %v1199
    %v1638 = vpack.c.b16 %v1206, %v1200
    %v1639 = vpack.c.b16 %v1207, %v1201
    %v1640 = vpack.c.b16 %v1208, %v1202
    %v1641 = vpack.c.b16 %v1215, %v1209
    %v1642 = vpack.c.b16 %v1216, %v1210
    %v1643 = vpack.c.b16 %v1217, %v1211
    %v1644 = vpack.c.b16 %v1218, %v1212
    %v1645 = vpack.c.b16 %v1219, %v1213
    %v1646 = vpack.c.b16 %v1220, %v1214
    %v1647 = vpack.c.b16 %v1227, %v1221
    %v1648 = vpack.c.b16 %v1228, %v1222
    %v1649 = vpack.c.b16 %v1229, %v1223
    %v1650 = vpack.c.b16 %v1230, %v1224
    %v1651 = vpack.c.b16 %v1231, %v1225
    %v1652 = vpack.c.b16 %v1232, %v1226
    %v1653 = vpack.c.b16 %v1239, %v1233
    %v1654 = vpack.c.b16 %v1240, %v1234
    %v1655 = vpack.c.b16 %v1241, %v1235
    %v1656 = vpack.c.b16 %v1242, %v1236
    %v1657 = vpack.c.b16 %v1243, %v1237
    %v1658 = vpack.c.b16 %v1244, %v1238
    %v1659 = vpack.c.b16 %v1251, %v1245
    %v1660 = vpack.c.b16 %v1252, %v1246
    %v1661 = vpack.c.b16 %v1253, %v1247
    %v1662 = vpack.c.b16 %v1254, %v1248
    %v1663 = vpack.c.b16 %v1255, %v1249
    %v1664 = vpack.c.b16 %v1256, %v1250
    %v1665 = vpack.c.b16 %v1263, %v1257
    %v1666 = vpack.c.b16 %v1264, %v1258
    %v1667 = vpack.c.b16 %v1265, %v1259
    %v1668 = vpack.c.b16 %v1266, %v1260
    %v1669 = vpack.c.b16 %v1267, %v1261
    %v1670 = vpack.c.b16 %v1268, %v1262
    %v1671 = vpack.c.b16 %v1275, %v1269
    %v1672 = vpack.c.b16 %v1276, %v1270
    %v1673 = vpack.c.b16 %v1277, %v1271
    %v1674 = vpack.c.b16 %v1278, %v1272
    %v1675 = vpack.c.b16 %v1279, %v1273
    %v1676 = vpack.c.b16 %v1280, %v1274
    %v1677 = vpack.c.b16 %v1287, %v1281
    %v1678 = vpack.c.b16 %v1288, %v1282
    %v1679 = vpack.c.b16 %v1289, %v1283
    %v1680 = vpack.c.b16 %v1290, %v1284
    %v1681 = vpack.c.b16 %v1291, %v1285
    %v1682 = vpack.c.b16 %v1292, %v1286
    %v1683 = vpack.c.b16 %v1299, %v1293
    %v1684 = vpack.c.b16 %v1300, %v1294
    %v1685 = vpack.c.b16 %v1301, %v1295
    %v1686 = vpack.c.b16 %v1302, %v1296
    %v1687 = vpack.c.b16 %v1303, %v1297
    %v1688 = vpack.c.b16 %v1304, %v1298
    %v1689 = vpack.c.b16 %v1311, %v1305
    %v1690 = vpack.c.b16 %v1312, %v1306
    %v1691 = vpack.c.b16 %v1313, %v1307
    %v1692 = vpack.c.b16 %v1314, %v1308
    %v1693 = vpack.c.b16 %v1315, %v1309
    %v1694 = vpack.c.b16 %v1316, %v1310
    %v1695 = vpack.c.b16 %v1323, %v1317
    %v1696 = vpack.c.b16 %v1324, %v1318
    %v1697 = vpack.c.b16 %v1325, %v1319
    %v1698 = vpack.c.b16 %v1326, %v1320
    %v1699 = vpack.c.b16 %v1327, %v1321
    %v1700 = vpack.c.b16 %v1328, %v1322
    %v1701 = vpack.c.b16 %v1335, %v1329
    %v1702 = vpack.c.b16 %v1336, %v1330
    %v1703 = vpack.c.b16 %v1337, %v1331
    %v1704 = vpack.c.b16 %v1338, %v1332
    %v1705 = vpack.c.b16 %v1339, %v1333
    %v1706 = vpack.c.b16 %v1340, %v1334
    %v1707 = vpack.c.b16 %v1347, %v1341
    %v1708 = vpack.c.b16 %v1348, %v1342
    %v1709 = vpack.c.b16 %v1349, %v1343
    %v1710 = vpack.c.b16 %v1350, %v1344
    %v1711 = vpack.c.b16 %v1351, %v1345
    %v1712 = vpack.c.b16 %v1352, %v1346
    %v1713 = vpack.c.b16 %v1359, %v1353
    %v1714 = vpack.c.b16 %v1360, %v1354
    %v1715 = vpack.c.b16 %v1361, %v1355
    %v1716 = vpack.c.b16 %v1362, %v1356
    %v1717 = vpack.c.b16 %v1363, %v1357
    %v1718 = vpack.c.b16 %v1364, %v1358
    %v1719 = vpack.c.b16 %v1371, %v1365
    %v1720 = vpack.c.b16 %v1372, %v1366
    %v1721 = vpack.c.b16 %v1373, %v1367
    %v1722 = vpack.c.b16 %v1374, %v1368
    %v1723 = vpack.c.b16 %v1375, %v1369
    %v1724 = vpack.c.b16 %v1376, %v1370
    %v1725 = vpack.c.b16 %v1383, %v1377
    %v1726 = vpack.c.b16 %v1384, %v1378
    %v1727 = vpack.c.b16 %v1385, %v1379
    %v1728 = vpack.c.b16 %v1386, %v1380
    %v1729 = vpack.c.b16 %v1387, %v1381
    %v1730 = vpack.c.b16 %v1388, %v1382
    %v1731 = vpack.c.b16 %v1395, %v1389
    %v1732 = vpack.c.b16 %v1396, %v1390
    %v1733 = vpack.c.b16 %v1397, %v1391
    %v1734 = vpack.c.b16 %v1398, %v1392
    %v1735 = vpack.c.b16 %v1399, %v1393
    %v1736 = vpack.c.b16 %v1400, %v1394
    %v1737 = vpack.c.b16 %v1407, %v1401
    %v1738 = vpack.c.b16 %v1408, %v1402
    %v1739 = vpack.c.b16 %v1409, %v1403
    %v1740 = vpack.c.b16 %v1410, %v1404
    %v1741 = vpack.c.b16 %v1411, %v1405
    %v1742 = vpack.c.b16 %v1412, %v1406
    %v1743 = vpack.c.b16 %v1419, %v1413
    %v1744 = vpack.c.b16 %v1420, %v1414
    %v1745 = vpack.c.b16 %v1421, %v1415
    %v1746 = vpack.c.b16 %v1422, %v1416
    %v1747 = vpack.c.b16 %v1423, %v1417
    %v1748 = vpack.c.b16 %v1424, %v1418
    %v1749 = vpack.c.b16 %v1431, %v1425
    %v1750 = vpack.c.b16 %v1432, %v1426
    %v1751 = vpack.c.b16 %v1433, %v1427
    %v1752 = vpack.c.b16 %v1434, %v1428
    %v1753 = vpack.c.b16 %v1435, %v1429
    %v1754 = vpack.c.b16 %v1436, %v1430
    %v1755 = vpack.c.b16 %v1443, %v1437
    %v1756 = vpack.c.b16 %v1444, %v1438
    %v1757 = vpack.c.b16 %v1445, %v1439
    %v1758 = vpack.c.b16 %v1446, %v1440
    %v1759 = vpack.c.b16 %v1447, %v1441
    %v1760 = vpack.c.b16 %v1448, %v1442
    %v1761 = vpack.c.b16 %v1455, %v1449
    %v1762 = vpack.c.b16 %v1456, %v1450
    %v1763 = vpack.c.b16 %v1457, %v1451
    %v1764 = vpack.c.b16 %v1458, %v1452
    %v1765 = vpack.c.b16 %v1459, %v1453
    %v1766 = vpack.c.b16 %v1460, %v1454
    %v1767 = vpack.c.b16 %v1467, %v1461
    %v1768 = vpack.c.b16 %v1468, %v1462
    %v1769 = vpack.c.b16 %v1469, %v1463
    %v1770 = vpack.c.b16 %v1470, %v1464
    %v1771 = vpack.c.b16 %v1471, %v1465
    %v1772 = vpack.c.b16 %v1472, %v1466
    %v1773 = vpack.c.b16 %v1479, %v1473
    %v1774 = vpack.c.b16 %v1480, %v1474
    %v1775 = vpack.c.b16 %v1481, %v1475
    %v1776 = vpack.c.b16 %v1482, %v1476
    %v1777 = vpack.c.b16 %v1483, %v1477
    %v1778 = vpack.c.b16 %v1484, %v1478
    %v1779 = vpack.c.b16 %v1491, %v1485
    %v1780 = vpack.c.b16 %v1492, %v1486
    %v1781 = vpack.c.b16 %v1493, %v1487
    %v1782 = vpack.c.b16 %v1494, %v1488
    %v1783 = vpack.c.b16 %v1495, %v1489
    %v1784 = vpack.c.b16 %v1496, %v1490
    %2073 = vmatprep.subr.bf16.mxu0 %v1498
    %2074 = vmatpush1.bf16.msra.mxu0 %v1497
    %2075 = vmatprep.subr.bf16.mxu0 %v1504
    %2076 = vmatpush1.bf16.msra.mxu0 %v1503
    %2077 = vmatprep.subr.bf16.mxu0 %v1510
    %2078 = vmatpush1.bf16.msra.mxu0 %v1509
    %2079 = vmatprep.subr.bf16.mxu0 %v1516
    %2080 = vmatpush1.bf16.msra.mxu0 %v1515
    %2081 = vmatprep.subr.bf16.mxu0 %v1522
    %2082 = vmatpush1.bf16.msra.mxu0 %v1521
    %2083 = vmatprep.subr.bf16.mxu0 %v1528
    %2084 = vmatpush1.bf16.msra.mxu0 %v1527
    %2085 = vmatprep.subr.bf16.mxu0 %v1534
    %2086 = vmatpush1.bf16.msra.mxu0 %v1533
    %2087 = vmatprep.subr.bf16.mxu0 %v1540
    %2088 = vmatpush1.bf16.msra.mxu0 %v1539
    %2089 = vmatprep.subr.bf16.mxu0 %v1546
    %2090 = vmatpush1.bf16.msra.mxu0 %v1545
    %2091 = vmatprep.subr.bf16.mxu0 %v1552
    %2092 = vmatpush1.bf16.msra.mxu0 %v1551
    %2093 = vmatprep.subr.bf16.mxu0 %v1558
    %2094 = vmatpush1.bf16.msra.mxu0 %v1557
    %2095 = vmatprep.subr.bf16.mxu0 %v1564
    %2096 = vmatpush1.bf16.msra.mxu0 %v1563
    %2097 = vmatprep.subr.bf16.mxu0 %v1570
    %2098 = vmatpush1.bf16.msra.mxu0 %v1569
    %2099 = vmatprep.subr.bf16.mxu0 %v1576
    %2100 = vmatpush1.bf16.msra.mxu0 %v1575
    %2101 = vmatprep.subr.bf16.mxu0 %v1582
    %2102 = vmatpush1.bf16.msra.mxu0 %v1581
    %2103 = vmatprep.subr.bf16.mxu0 %v1588
    %2104 = vmatpush1.bf16.msra.mxu0 %v1587
    %2105 = vmatprep.mubr.bf16.mxu0 %v622
    %2106 = vmatmul.mubr.bf16.gmra.mrb[0].mxu0 %v621
    %v2107 = vpop.f32.mrb[0].mxu0
    %v2108 = vadd.f32 %v563, %v2107
    %v2109 = vpop.f32.mrb[0].mxu0
    %v2110 = vadd.f32 %v567, %v2109
    %v2111 = vpop.f32.mrb[0].mxu0
    %v2112 = vpop.f32.mrb[0].mxu0
    %2113 = vdwg.mxu0
    %2114 = vmatprep.subr.bf16.mxu0 %v1594
    %2115 = vmatpush1.bf16.msra.mxu0 %v1593
    %2116 = vmatprep.subr.bf16.mxu0 %v1600
    %2117 = vmatpush1.bf16.msra.mxu0 %v1599
    %2118 = vmatprep.subr.bf16.mxu0 %v1606
    %2119 = vmatpush1.bf16.msra.mxu0 %v1605
    %2120 = vmatprep.subr.bf16.mxu0 %v1612
    %2121 = vmatpush1.bf16.msra.mxu0 %v1611
    %2122 = vmatprep.subr.bf16.mxu0 %v1618
    %2123 = vmatpush1.bf16.msra.mxu0 %v1617
    %2124 = vmatprep.subr.bf16.mxu0 %v1624
    %2125 = vmatpush1.bf16.msra.mxu0 %v1623
    %2126 = vmatprep.subr.bf16.mxu0 %v1630
    %2127 = vmatpush1.bf16.msra.mxu0 %v1629
    %2128 = vmatprep.subr.bf16.mxu0 %v1636
    %2129 = vmatpush1.bf16.msra.mxu0 %v1635
    %2130 = vmatprep.subr.bf16.mxu0 %v1642
    %2131 = vmatpush1.bf16.msra.mxu0 %v1641
    %2132 = vmatprep.subr.bf16.mxu0 %v1648
    %2133 = vmatpush1.bf16.msra.mxu0 %v1647
    %2134 = vmatprep.subr.bf16.mxu0 %v1654
    %2135 = vmatpush1.bf16.msra.mxu0 %v1653
    %2136 = vmatprep.subr.bf16.mxu0 %v1660
    %2137 = vmatpush1.bf16.msra.mxu0 %v1659
    %2138 = vmatprep.subr.bf16.mxu0 %v1666
    %2139 = vmatpush1.bf16.msra.mxu0 %v1665
    %2140 = vmatprep.subr.bf16.mxu0 %v1672
    %2141 = vmatpush1.bf16.msra.mxu0 %v1671
    %2142 = vmatprep.subr.bf16.mxu0 %v1678
    %2143 = vmatpush1.bf16.msra.mxu0 %v1677
    %2144 = vmatprep.subr.bf16.mxu0 %v1684
    %2145 = vmatpush1.bf16.msra.mxu0 %v1683
    %2146 = vmatprep.mubr.bf16.mxu0 %v624
    %2147 = vmatmul.mubr.bf16.gmra.mrb[0].mxu0 %v623
    %v2148 = vpop.f32.mrb[0].mxu0
    %v2149 = vadd.f32 %v2108, %v2148
    %v2150 = vpop.f32.mrb[0].mxu0
    %v2151 = vadd.f32 %v2110, %v2150
    %v2152 = vpop.f32.mrb[0].mxu0
    %v2153 = vpop.f32.mrb[0].mxu0
    %2154 = vdwg.mxu0
    %2155 = vmatprep.subr.bf16.mxu0 %v1690
    %2156 = vmatpush1.bf16.msra.mxu0 %v1689
    %2157 = vmatprep.subr.bf16.mxu0 %v1696
    %2158 = vmatpush1.bf16.msra.mxu0 %v1695
    %2159 = vmatprep.subr.bf16.mxu0 %v1702
    %2160 = vmatpush1.bf16.msra.mxu0 %v1701
    %2161 = vmatprep.subr.bf16.mxu0 %v1708
    %2162 = vmatpush1.bf16.msra.mxu0 %v1707
    %2163 = vmatprep.subr.bf16.mxu0 %v1714
    %2164 = vmatpush1.bf16.msra.mxu0 %v1713
    %2165 = vmatprep.subr.bf16.mxu0 %v1720
    %2166 = vmatpush1.bf16.msra.mxu0 %v1719
    %2167 = vmatprep.subr.bf16.mxu0 %v1726
    %2168 = vmatpush1.bf16.msra.mxu0 %v1725
    %2169 = vmatprep.subr.bf16.mxu0 %v1732
    %2170 = vmatpush1.bf16.msra.mxu0 %v1731
    %2171 = vmatprep.subr.bf16.mxu0 %v1738
    %2172 = vmatpush1.bf16.msra.mxu0 %v1737
    %2173 = vmatprep.subr.bf16.mxu0 %v1744
    %2174 = vmatpush1.bf16.msra.mxu0 %v1743
    %2175 = vmatprep.subr.bf16.mxu0 %v1750
    %2176 = vmatpush1.bf16.msra.mxu0 %v1749
    %2177 = vmatprep.subr.bf16.mxu0 %v1756
    %2178 = vmatpush1.bf16.msra.mxu0 %v1755
    %2179 = vmatprep.subr.bf16.mxu0 %v1762
    %2180 = vmatpush1.bf16.msra.mxu0 %v1761
    %2181 = vmatprep.subr.bf16.mxu0 %v1768
    %2182 = vmatpush1.bf16.msra.mxu0 %v1767
    %2183 = vmatprep.subr.bf16.mxu0 %v1774
    %2184 = vmatpush1.bf16.msra.mxu0 %v1773
    %2185 = vmatprep.subr.bf16.mxu0 %v1780
    %2186 = vmatpush1.bf16.msra.mxu0 %v1779
    %2187 = vmatprep.mubr.bf16.mxu0 %v626
    %2188 = vmatmul.mubr.bf16.gmra.mrb[0].mxu0 %v625
    %v2189 = vpop.f32.mrb[0].mxu0
    %v2190 = vadd.f32 %v2149, %v2189
    %v2191 = vpop.f32.mrb[0].mxu0
    %v2192 = vadd.f32 %v2151, %v2191
    %v2193 = vpop.f32.mrb[0].mxu0
    %v2194 = vpop.f32.mrb[0].mxu0
    %2195 = vdwg.mxu0
    %2196 = vmatprep.subr.bf16.mxu0 %v1500
    %2197 = vmatpush1.bf16.msra.mxu0 %v1499
    %2198 = vmatprep.subr.bf16.mxu0 %v1506
    %2199 = vmatpush1.bf16.msra.mxu0 %v1505
    %2200 = vmatprep.subr.bf16.mxu0 %v1512
    %2201 = vmatpush1.bf16.msra.mxu0 %v1511
    %2202 = vmatprep.subr.bf16.mxu0 %v1518
    %2203 = vmatpush1.bf16.msra.mxu0 %v1517
    %2204 = vmatprep.subr.bf16.mxu0 %v1524
    %2205 = vmatpush1.bf16.msra.mxu0 %v1523
    %2206 = vmatprep.subr.bf16.mxu0 %v1530
    %2207 = vmatpush1.bf16.msra.mxu0 %v1529
    %2208 = vmatprep.subr.bf16.mxu0 %v1536
    %2209 = vmatpush1.bf16.msra.mxu0 %v1535
    %2210 = vmatprep.subr.bf16.mxu0 %v1542
    %2211 = vmatpush1.bf16.msra.mxu0 %v1541
    %2212 = vmatprep.subr.bf16.mxu0 %v1548
    %2213 = vmatpush1.bf16.msra.mxu0 %v1547
    %2214 = vmatprep.subr.bf16.mxu0 %v1554
    %2215 = vmatpush1.bf16.msra.mxu0 %v1553
    %2216 = vmatprep.subr.bf16.mxu0 %v1560
    %2217 = vmatpush1.bf16.msra.mxu0 %v1559
    %2218 = vmatprep.subr.bf16.mxu0 %v1566
    %2219 = vmatpush1.bf16.msra.mxu0 %v1565
    %2220 = vmatprep.subr.bf16.mxu0 %v1572
    %2221 = vmatpush1.bf16.msra.mxu0 %v1571
    %2222 = vmatprep.subr.bf16.mxu0 %v1578
    %2223 = vmatpush1.bf16.msra.mxu0 %v1577
    %2224 = vmatprep.subr.bf16.mxu0 %v1584
    %2225 = vmatpush1.bf16.msra.mxu0 %v1583
    %2226 = vmatprep.subr.bf16.mxu0 %v1590
    %2227 = vmatpush1.bf16.msra.mxu0 %v1589
    %2228 = vmatprep.mubr.bf16.mxu0 %v622
    %2229 = vmatmul.mubr.bf16.gmra.mrb[0].mxu0 %v621
    %v2230 = vpop.f32.mrb[0].mxu0
    %v2231 = vadd.f32 %v571, %v2230
    %v2232 = vpop.f32.mrb[0].mxu0
    %v2233 = vadd.f32 %v575, %v2232
    %v2234 = vpop.f32.mrb[0].mxu0
    %v2235 = vpop.f32.mrb[0].mxu0
    %2236 = vdwg.mxu0
    %2237 = vmatprep.subr.bf16.mxu0 %v1596
    %2238 = vmatpush1.bf16.msra.mxu0 %v1595
    %2239 = vmatprep.subr.bf16.mxu0 %v1602
    %2240 = vmatpush1.bf16.msra.mxu0 %v1601
    %2241 = vmatprep.subr.bf16.mxu0 %v1608
    %2242 = vmatpush1.bf16.msra.mxu0 %v1607
    %2243 = vmatprep.subr.bf16.mxu0 %v1614
    %2244 = vmatpush1.bf16.msra.mxu0 %v1613
    %2245 = vmatprep.subr.bf16.mxu0 %v1620
    %2246 = vmatpush1.bf16.msra.mxu0 %v1619
    %2247 = vmatprep.subr.bf16.mxu0 %v1626
    %2248 = vmatpush1.bf16.msra.mxu0 %v1625
    %2249 = vmatprep.subr.bf16.mxu0 %v1632
    %2250 = vmatpush1.bf16.msra.mxu0 %v1631
    %2251 = vmatprep.subr.bf16.mxu0 %v1638
    %2252 = vmatpush1.bf16.msra.mxu0 %v1637
    %2253 = vmatprep.subr.bf16.mxu0 %v1644
    %2254 = vmatpush1.bf16.msra.mxu0 %v1643
    %2255 = vmatprep.subr.bf16.mxu0 %v1650
    %2256 = vmatpush1.bf16.msra.mxu0 %v1649
    %2257 = vmatprep.subr.bf16.mxu0 %v1656
    %2258 = vmatpush1.bf16.msra.mxu0 %v1655
    %2259 = vmatprep.subr.bf16.mxu0 %v1662
    %2260 = vmatpush1.bf16.msra.mxu0 %v1661
    %2261 = vmatprep.subr.bf16.mxu0 %v1668
    %2262 = vmatpush1.bf16.msra.mxu0 %v1667
    %2263 = vmatprep.subr.bf16.mxu0 %v1674
    %2264 = vmatpush1.bf16.msra.mxu0 %v1673
    %2265 = vmatprep.subr.bf16.mxu0 %v1680
    %2266 = vmatpush1.bf16.msra.mxu0 %v1679
    %2267 = vmatprep.subr.bf16.mxu0 %v1686
    %2268 = vmatpush1.bf16.msra.mxu0 %v1685
    %2269 = vmatprep.mubr.bf16.mxu0 %v624
    %2270 = vmatmul.mubr.bf16.gmra.mrb[0].mxu0 %v623
    %v2271 = vpop.f32.mrb[0].mxu0
    %v2272 = vadd.f32 %v2231, %v2271
    %v2273 = vpop.f32.mrb[0].mxu0
    %v2274 = vadd.f32 %v2233, %v2273
    %v2275 = vpop.f32.mrb[0].mxu0
    %v2276 = vpop.f32.mrb[0].mxu0
    %2277 = vdwg.mxu0
    %2278 = vmatprep.subr.bf16.mxu0 %v1692
    %2279 = vmatpush1.bf16.msra.mxu0 %v1691
    %2280 = vmatprep.subr.bf16.mxu0 %v1698
    %2281 = vmatpush1.bf16.msra.mxu0 %v1697
    %2282 = vmatprep.subr.bf16.mxu0 %v1704
    %2283 = vmatpush1.bf16.msra.mxu0 %v1703
    %2284 = vmatprep.subr.bf16.mxu0 %v1710
    %2285 = vmatpush1.bf16.msra.mxu0 %v1709
    %2286 = vmatprep.subr.bf16.mxu0 %v1716
    %2287 = vmatpush1.bf16.msra.mxu0 %v1715
    %2288 = vmatprep.subr.bf16.mxu0 %v1722
    %2289 = vmatpush1.bf16.msra.mxu0 %v1721
    %2290 = vmatprep.subr.bf16.mxu0 %v1728
    %2291 = vmatpush1.bf16.msra.mxu0 %v1727
    %2292 = vmatprep.subr.bf16.mxu0 %v1734
    %2293 = vmatpush1.bf16.msra.mxu0 %v1733
    %2294 = vmatprep.subr.bf16.mxu0 %v1740
    %2295 = vmatpush1.bf16.msra.mxu0 %v1739
    %2296 = vmatprep.subr.bf16.mxu0 %v1746
    %2297 = vmatpush1.bf16.msra.mxu0 %v1745
    %2298 = vmatprep.subr.bf16.mxu0 %v1752
    %2299 = vmatpush1.bf16.msra.mxu0 %v1751
    %2300 = vmatprep.subr.bf16.mxu0 %v1758
    %2301 = vmatpush1.bf16.msra.mxu0 %v1757
    %2302 = vmatprep.subr.bf16.mxu0 %v1764
    %2303 = vmatpush1.bf16.msra.mxu0 %v1763
    %2304 = vmatprep.subr.bf16.mxu0 %v1770
    %2305 = vmatpush1.bf16.msra.mxu0 %v1769
    %2306 = vmatprep.subr.bf16.mxu0 %v1776
    %2307 = vmatpush1.bf16.msra.mxu0 %v1775
    %2308 = vmatprep.subr.bf16.mxu0 %v1782
    %2309 = vmatpush1.bf16.msra.mxu0 %v1781
    %2310 = vmatprep.mubr.bf16.mxu0 %v626
    %2311 = vmatmul.mubr.bf16.gmra.mrb[0].mxu0 %v625
    %v2312 = vpop.f32.mrb[0].mxu0
    %v2313 = vadd.f32 %v2272, %v2312
    %v2314 = vpop.f32.mrb[0].mxu0
    %v2315 = vadd.f32 %v2274, %v2314
    %v2316 = vpop.f32.mrb[0].mxu0
    %v2317 = vpop.f32.mrb[0].mxu0
    %2318 = vdwg.mxu0
    %2319 = vmatprep.subr.bf16.mxu0 %v1502
    %2320 = vmatpush1.bf16.msra.mxu0 %v1501
    %2321 = vmatprep.subr.bf16.mxu0 %v1508
    %2322 = vmatpush1.bf16.msra.mxu0 %v1507
    %2323 = vmatprep.subr.bf16.mxu0 %v1514
    %2324 = vmatpush1.bf16.msra.mxu0 %v1513
    %2325 = vmatprep.subr.bf16.mxu0 %v1520
    %2326 = vmatpush1.bf16.msra.mxu0 %v1519
    %2327 = vmatprep.subr.bf16.mxu0 %v1526
    %2328 = vmatpush1.bf16.msra.mxu0 %v1525
    %2329 = vmatprep.subr.bf16.mxu0 %v1532
    %2330 = vmatpush1.bf16.msra.mxu0 %v1531
    %2331 = vmatprep.subr.bf16.mxu0 %v1538
    %2332 = vmatpush1.bf16.msra.mxu0 %v1537
    %2333 = vmatprep.subr.bf16.mxu0 %v1544
    %2334 = vmatpush1.bf16.msra.mxu0 %v1543
    %2335 = vmatprep.subr.bf16.mxu0 %v1550
    %2336 = vmatpush1.bf16.msra.mxu0 %v1549
    %2337 = vmatprep.subr.bf16.mxu0 %v1556
    %2338 = vmatpush1.bf16.msra.mxu0 %v1555
    %2339 = vmatprep.subr.bf16.mxu0 %v1562
    %2340 = vmatpush1.bf16.msra.mxu0 %v1561
    %2341 = vmatprep.subr.bf16.mxu0 %v1568
    %2342 = vmatpush1.bf16.msra.mxu0 %v1567
    %2343 = vmatprep.subr.bf16.mxu0 %v1574
    %2344 = vmatpush1.bf16.msra.mxu0 %v1573
    %2345 = vmatprep.subr.bf16.mxu0 %v1580
    %2346 = vmatpush1.bf16.msra.mxu0 %v1579
    %2347 = vmatprep.subr.bf16.mxu0 %v1586
    %2348 = vmatpush1.bf16.msra.mxu0 %v1585
    %2349 = vmatprep.subr.bf16.mxu0 %v1592
    %2350 = vmatpush1.bf16.msra.mxu0 %v1591
    %2351 = vmatprep.mubr.bf16.mxu0 %v622
    %2352 = vmatmul.mubr.bf16.gmra.mrb[0].mxu0 %v621
    %v2353 = vpop.f32.mrb[0].mxu0
    %v2354 = vadd.f32 %v579, %v2353
    %v2355 = vpop.f32.mrb[0].mxu0
    %v2356 = vadd.f32 %v583, %v2355
    %v2357 = vpop.f32.mrb[0].mxu0
    %v2358 = vpop.f32.mrb[0].mxu0
    %2359 = vdwg.mxu0
    %2360 = vmatprep.subr.bf16.mxu0 %v1598
    %2361 = vmatpush1.bf16.msra.mxu0 %v1597
    %2362 = vmatprep.subr.bf16.mxu0 %v1604
    %2363 = vmatpush1.bf16.msra.mxu0 %v1603
    %2364 = vmatprep.subr.bf16.mxu0 %v1610
    %2365 = vmatpush1.bf16.msra.mxu0 %v1609
    %2366 = vmatprep.subr.bf16.mxu0 %v1616
    %2367 = vmatpush1.bf16.msra.mxu0 %v1615
    %2368 = vmatprep.subr.bf16.mxu0 %v1622
    %2369 = vmatpush1.bf16.msra.mxu0 %v1621
    %2370 = vmatprep.subr.bf16.mxu0 %v1628
    %2371 = vmatpush1.bf16.msra.mxu0 %v1627
    %2372 = vmatprep.subr.bf16.mxu0 %v1634
    %2373 = vmatpush1.bf16.msra.mxu0 %v1633
    %2374 = vmatprep.subr.bf16.mxu0 %v1640
    %2375 = vmatpush1.bf16.msra.mxu0 %v1639
    %2376 = vmatprep.subr.bf16.mxu0 %v1646
    %2377 = vmatpush1.bf16.msra.mxu0 %v1645
    %2378 = vmatprep.subr.bf16.mxu0 %v1652
    %2379 = vmatpush1.bf16.msra.mxu0 %v1651
    %2380 = vmatprep.subr.bf16.mxu0 %v1658
    %2381 = vmatpush1.bf16.msra.mxu0 %v1657
    %2382 = vmatprep.subr.bf16.mxu0 %v1664
    %2383 = vmatpush1.bf16.msra.mxu0 %v1663
    %2384 = vmatprep.subr.bf16.mxu0 %v1670
    %2385 = vmatpush1.bf16.msra.mxu0 %v1669
    %2386 = vmatprep.subr.bf16.mxu0 %v1676
    %2387 = vmatpush1.bf16.msra.mxu0 %v1675
    %2388 = vmatprep.subr.bf16.mxu0 %v1682
    %2389 = vmatpush1.bf16.msra.mxu0 %v1681
    %2390 = vmatprep.subr.bf16.mxu0 %v1688
    %2391 = vmatpush1.bf16.msra.mxu0 %v1687
    %2392 = vmatprep.mubr.bf16.mxu0 %v624
    %2393 = vmatmul.mubr.bf16.gmra.mrb[0].mxu0 %v623
    %v2394 = vpop.f32.mrb[0].mxu0
    %v2395 = vadd.f32 %v2354, %v2394
    %v2396 = vpop.f32.mrb[0].mxu0
    %v2397 = vadd.f32 %v2356, %v2396
    %v2398 = vpop.f32.mrb[0].mxu0
    %v2399 = vpop.f32.mrb[0].mxu0
    %2400 = vdwg.mxu0
    %2401 = vmatprep.subr.bf16.mxu0 %v1694
    %2402 = vmatpush1.bf16.msra.mxu0 %v1693
    %2403 = vmatprep.subr.bf16.mxu0 %v1700
    %2404 = vmatpush1.bf16.msra.mxu0 %v1699
    %2405 = vmatprep.subr.bf16.mxu0 %v1706
    %2406 = vmatpush1.bf16.msra.mxu0 %v1705
    %2407 = vmatprep.subr.bf16.mxu0 %v1712
    %2408 = vmatpush1.bf16.msra.mxu0 %v1711
    %2409 = vmatprep.subr.bf16.mxu0 %v1718
    %2410 = vmatpush1.bf16.msra.mxu0 %v1717
    %2411 = vmatprep.subr.bf16.mxu0 %v1724
    %2412 = vmatpush1.bf16.msra.mxu0 %v1723
    %2413 = vmatprep.subr.bf16.mxu0 %v1730
    %2414 = vmatpush1.bf16.msra.mxu0 %v1729
    %2415 = vmatprep.subr.bf16.mxu0 %v1736
    %2416 = vmatpush1.bf16.msra.mxu0 %v1735
    %2417 = vmatprep.subr.bf16.mxu0 %v1742
    %2418 = vmatpush1.bf16.msra.mxu0 %v1741
    %2419 = vmatprep.subr.bf16.mxu0 %v1748
    %2420 = vmatpush1.bf16.msra.mxu0 %v1747
    %2421 = vmatprep.subr.bf16.mxu0 %v1754
    %2422 = vmatpush1.bf16.msra.mxu0 %v1753
    %2423 = vmatprep.subr.bf16.mxu0 %v1760
    %2424 = vmatpush1.bf16.msra.mxu0 %v1759
    %2425 = vmatprep.subr.bf16.mxu0 %v1766
    %2426 = vmatpush1.bf16.msra.mxu0 %v1765
    %2427 = vmatprep.subr.bf16.mxu0 %v1772
    %2428 = vmatpush1.bf16.msra.mxu0 %v1771
    %2429 = vmatprep.subr.bf16.mxu0 %v1778
    %2430 = vmatpush1.bf16.msra.mxu0 %v1777
    %2431 = vmatprep.subr.bf16.mxu0 %v1784
    %2432 = vmatpush1.bf16.msra.mxu0 %v1783
    %2433 = vmatprep.mubr.bf16.mxu0 %v626
    %2434 = vmatmul.mubr.bf16.gmra.mrb[0].mxu0 %v625
    %v2435 = vpop.f32.mrb[0].mxu0
    %v2436 = vadd.f32 %v2395, %v2435
    %v2437 = vpop.f32.mrb[0].mxu0
    %v2438 = vadd.f32 %v2397, %v2437
    %v2439 = vpop.f32.mrb[0].mxu0
    %v2440 = vpop.f32.mrb[0].mxu0
    %2441 = vdwg.mxu0
    %v2446 = vsel %vm614, %v252, %v246
    %v2447 = vsel %vm614, %v253, %v247
    %vm2450 = vcmask 1041408
    %v2451 = vsel %vm2450, %v2446, 0.0
    %v2452 = vsel %vm2450, %v2447, 0.0
    %v2453 = vadd.f32 %v2451, %v2452
    %2454 = vadd.xlane.f32.xlu0 %v2453
    %v2455 = vpop.xlane.xlu0 %2454
    %v2456 = vrcp.pop 256.0
    %v2457 = vmul.f32 %v2455, %v2456
    %v2458 = vld [vmem:[#allocation5] ss:$4 sm:$0xff]
    %s2459 = scalar_lea.vmem [#allocation5], 32
    %v2460 = vld [vmem:[%s2459] ss:$4 sm:$0x3]
    %v2463 = vlaneseq
    %v2464 = vshrl.u32 %v2463, 7
    %v2465 = vsub.s32 0, %v2464
    %v2466 = vrot.slane %v2458, %v2465
    %v2467 = vlaneseq
    %v2468 = vshrl.u32 %v2467, 7
    %v2469 = vsub.s32 1, %v2468
    %v2470 = vrot.slane %v2458, %v2469
    %v2471 = vlaneseq
    %v2472 = vshrl.u32 %v2471, 7
    %v2473 = vsub.s32 2, %v2472
    %v2474 = vrot.slane %v2458, %v2473
    %v2475 = vlaneseq
    %v2476 = vshrl.u32 %v2475, 7
    %v2477 = vsub.s32 3, %v2476
    %v2478 = vrot.slane %v2458, %v2477
    %v2479 = vlaneseq
    %v2480 = vshrl.u32 %v2479, 7
    %v2481 = vsub.s32 4, %v2480
    %v2482 = vrot.slane %v2458, %v2481
    %v2483 = vlaneseq
    %v2484 = vshrl.u32 %v2483, 7
    %v2485 = vsub.s32 5, %v2484
    %v2486 = vrot.slane %v2458, %v2485
    %v2487 = vlaneseq
    %v2488 = vshrl.u32 %v2487, 7
    %v2489 = vsub.s32 6, %v2488
    %v2490 = vrot.slane %v2458, %v2489
    %v2491 = vlaneseq
    %v2492 = vshrl.u32 %v2491, 7
    %v2493 = vsub.s32 7, %v2492
    %v2494 = vrot.slane %v2458, %v2493
    %v2495 = vlaneseq
    %v2496 = vshrl.u32 %v2495, 7
    %v2497 = vsub.s32 0, %v2496
    %v2498 = vrot.slane %v2460, %v2497
    %v2499 = vlaneseq
    %v2500 = vshrl.u32 %v2499, 7
    %v2501 = vsub.s32 1, %v2500
    %v2502 = vrot.slane %v2460, %v2501
    %v2513 = vmul.f32 %v2457, %v2466
    %v2514 = vmul.f32 %v2457, %v2470
    %v2515 = vmul.f32 %v2457, %v2474
    %v2516 = vmul.f32 %v2457, %v2478
    %v2517 = vmul.f32 %v2457, %v2482
    %v2518 = vmul.f32 %v2457, %v2486
    %v2519 = vmul.f32 %v2457, %v2490
    %v2520 = vmul.f32 %v2457, %v2494
    %v2521 = vmul.f32 %v2457, %v2498
    %v2522 = vmul.f32 %v2457, %v2502
    %v2523 = vadd.f32 %v2513, 0.0
    %v2524 = vadd.f32 %v2514, 0.0
    %v2525 = vadd.f32 %v2515, 0.0
    %v2526 = vadd.f32 %v2516, 0.0
    %v2527 = vadd.f32 %v2517, 0.0
    %v2528 = vadd.f32 %v2518, 0.0
    %v2529 = vadd.f32 %v2519, 0.0
    %v2530 = vadd.f32 %v2520, 0.0
    %v2531 = vadd.f32 %v2521, 0.0
    %v2532 = vadd.f32 %v2522, 0.0
    %v2537 = vsel %vm614, %v254, %v248
    %v2538 = vsel %vm614, %v255, %v249
    %v2541 = vsel %vm2450, %v2537, 0.0
    %v2542 = vsel %vm2450, %v2538, 0.0
    %v2543 = vadd.f32 %v2541, %v2542
    %2544 = vadd.xlane.f32.xlu0 %v2543
    %v2545 = vpop.xlane.xlu0 %2544
    %v2546 = vmul.f32 %v2545, %v2456
    %s2547 = scalar_lea.vmem [#allocation5], 1
    %v2548 = vld [vmem:[%s2547] ss:$4 sm:$0xff]
    %s2549 = scalar_lea.vmem [#allocation5], 33
    %v2550 = vld [vmem:[%s2549] ss:$4 sm:$0x3]
    %v2553 = vlaneseq
    %v2554 = vshrl.u32 %v2553, 7
    %v2555 = vsub.s32 0, %v2554
    %v2556 = vrot.slane %v2548, %v2555
    %v2557 = vlaneseq
    %v2558 = vshrl.u32 %v2557, 7
    %v2559 = vsub.s32 1, %v2558
    %v2560 = vrot.slane %v2548, %v2559
    %v2561 = vlaneseq
    %v2562 = vshrl.u32 %v2561, 7
    %v2563 = vsub.s32 2, %v2562
    %v2564 = vrot.slane %v2548, %v2563
    %v2565 = vlaneseq
    %v2566 = vshrl.u32 %v2565, 7
    %v2567 = vsub.s32 3, %v2566
    %v2568 = vrot.slane %v2548, %v2567
    %v2569 = vlaneseq
    %v2570 = vshrl.u32 %v2569, 7
    %v2571 = vsub.s32 4, %v2570
    %v2572 = vrot.slane %v2548, %v2571
    %v2573 = vlaneseq
    %v2574 = vshrl.u32 %v2573, 7
    %v2575 = vsub.s32 5, %v2574
    %v2576 = vrot.slane %v2548, %v2575
    %v2577 = vlaneseq
    %v2578 = vshrl.u32 %v2577, 7
    %v2579 = vsub.s32 6, %v2578
    %v2580 = vrot.slane %v2548, %v2579
    %v2581 = vlaneseq
    %v2582 = vshrl.u32 %v2581, 7
    %v2583 = vsub.s32 7, %v2582
    %v2584 = vrot.slane %v2548, %v2583
    %v2585 = vlaneseq
    %v2586 = vshrl.u32 %v2585, 7
    %v2587 = vsub.s32 0, %v2586
    %v2588 = vrot.slane %v2550, %v2587
    %v2589 = vlaneseq
    %v2590 = vshrl.u32 %v2589, 7
    %v2591 = vsub.s32 1, %v2590
    %v2592 = vrot.slane %v2550, %v2591
    %v2603 = vmul.f32 %v2546, %v2556
    %v2604 = vmul.f32 %v2546, %v2560
    %v2605 = vmul.f32 %v2546, %v2564
    %v2606 = vmul.f32 %v2546, %v2568
    %v2607 = vmul.f32 %v2546, %v2572
    %v2608 = vmul.f32 %v2546, %v2576
    %v2609 = vmul.f32 %v2546, %v2580
    %v2610 = vmul.f32 %v2546, %v2584
    %v2611 = vmul.f32 %v2546, %v2588
    %v2612 = vmul.f32 %v2546, %v2592
    %v2613 = vadd.f32 %v2523, %v2603
    %v2614 = vadd.f32 %v2524, %v2604
    %v2615 = vadd.f32 %v2525, %v2605
    %v2616 = vadd.f32 %v2526, %v2606
    %v2617 = vadd.f32 %v2527, %v2607
    %v2618 = vadd.f32 %v2528, %v2608
    %v2619 = vadd.f32 %v2529, %v2609
    %v2620 = vadd.f32 %v2530, %v2610
    %v2621 = vadd.f32 %v2531, %v2611
    %v2622 = vadd.f32 %v2532, %v2612
    %v2627 = vsel %vm614, %v256, %v250
    %v2628 = vsel %vm614, %v257, %v251
    %v2631 = vsel %vm2450, %v2627, 0.0
    %v2632 = vsel %vm2450, %v2628, 0.0
    %v2633 = vadd.f32 %v2631, %v2632
    %2634 = vadd.xlane.f32.xlu0 %v2633
    %v2635 = vpop.xlane.xlu0 %2634
    %v2636 = vmul.f32 %v2635, %v2456
    %s2637 = scalar_lea.vmem [#allocation5], 2
    %v2638 = vld [vmem:[%s2637] ss:$4 sm:$0xff]
    %s2639 = scalar_lea.vmem [#allocation5], 34
    %v2640 = vld [vmem:[%s2639] ss:$4 sm:$0x3]
    %v2643 = vlaneseq
    %v2644 = vshrl.u32 %v2643, 7
    %v2645 = vsub.s32 0, %v2644
    %v2646 = vrot.slane %v2638, %v2645
    %v2647 = vlaneseq
    %v2648 = vshrl.u32 %v2647, 7
    %v2649 = vsub.s32 1, %v2648
    %v2650 = vrot.slane %v2638, %v2649
    %v2651 = vlaneseq
    %v2652 = vshrl.u32 %v2651, 7
    %v2653 = vsub.s32 2, %v2652
    %v2654 = vrot.slane %v2638, %v2653
    %v2655 = vlaneseq
    %v2656 = vshrl.u32 %v2655, 7
    %v2657 = vsub.s32 3, %v2656
    %v2658 = vrot.slane %v2638, %v2657
    %v2659 = vlaneseq
    %v2660 = vshrl.u32 %v2659, 7
    %v2661 = vsub.s32 4, %v2660
    %v2662 = vrot.slane %v2638, %v2661
    %v2663 = vlaneseq
    %v2664 = vshrl.u32 %v2663, 7
    %v2665 = vsub.s32 5, %v2664
    %v2666 = vrot.slane %v2638, %v2665
    %v2667 = vlaneseq
    %v2668 = vshrl.u32 %v2667, 7
    %v2669 = vsub.s32 6, %v2668
    %v2670 = vrot.slane %v2638, %v2669
    %v2671 = vlaneseq
    %v2672 = vshrl.u32 %v2671, 7
    %v2673 = vsub.s32 7, %v2672
    %v2674 = vrot.slane %v2638, %v2673
    %v2675 = vlaneseq
    %v2676 = vshrl.u32 %v2675, 7
    %v2677 = vsub.s32 0, %v2676
    %v2678 = vrot.slane %v2640, %v2677
    %v2679 = vlaneseq
    %v2680 = vshrl.u32 %v2679, 7
    %v2681 = vsub.s32 1, %v2680
    %v2682 = vrot.slane %v2640, %v2681
    %v2693 = vmul.f32 %v2636, %v2646
    %v2694 = vmul.f32 %v2636, %v2650
    %v2695 = vmul.f32 %v2636, %v2654
    %v2696 = vmul.f32 %v2636, %v2658
    %v2697 = vmul.f32 %v2636, %v2662
    %v2698 = vmul.f32 %v2636, %v2666
    %v2699 = vmul.f32 %v2636, %v2670
    %v2700 = vmul.f32 %v2636, %v2674
    %v2701 = vmul.f32 %v2636, %v2678
    %v2702 = vmul.f32 %v2636, %v2682
    %v2703 = vadd.f32 %v2613, %v2693
    %v2704 = vadd.f32 %v2614, %v2694
    %v2705 = vadd.f32 %v2615, %v2695
    %v2706 = vadd.f32 %v2616, %v2696
    %v2707 = vadd.f32 %v2617, %v2697
    %v2708 = vadd.f32 %v2618, %v2698
    %v2709 = vadd.f32 %v2619, %v2699
    %v2710 = vadd.f32 %v2620, %v2700
    %v2711 = vadd.f32 %v2621, %v2701
    %v2712 = vadd.f32 %v2622, %v2702
    %v2713 = vld [vmem:[#allocation7] sm:$0xff]
    %v2714 = vld [vmem:[#allocation7 + $0x8] sm:$0x3]
    %v2717 = vlaneseq
    %v2718 = vshrl.u32 %v2717, 7
    %v2719 = vsub.s32 0, %v2718
    %v2720 = vrot.slane %v2713, %v2719
    %v2721 = vlaneseq
    %v2722 = vshrl.u32 %v2721, 7
    %v2723 = vsub.s32 1, %v2722
    %v2724 = vrot.slane %v2713, %v2723
    %v2725 = vlaneseq
    %v2726 = vshrl.u32 %v2725, 7
    %v2727 = vsub.s32 2, %v2726
    %v2728 = vrot.slane %v2713, %v2727
    %v2729 = vlaneseq
    %v2730 = vshrl.u32 %v2729, 7
    %v2731 = vsub.s32 3, %v2730
    %v2732 = vrot.slane %v2713, %v2731
    %v2733 = vlaneseq
    %v2734 = vshrl.u32 %v2733, 7
    %v2735 = vsub.s32 4, %v2734
    %v2736 = vrot.slane %v2713, %v2735
    %v2737 = vlaneseq
    %v2738 = vshrl.u32 %v2737, 7
    %v2739 = vsub.s32 5, %v2738
    %v2740 = vrot.slane %v2713, %v2739
    %v2741 = vlaneseq
    %v2742 = vshrl.u32 %v2741, 7
    %v2743 = vsub.s32 6, %v2742
    %v2744 = vrot.slane %v2713, %v2743
    %v2745 = vlaneseq
    %v2746 = vshrl.u32 %v2745, 7
    %v2747 = vsub.s32 7, %v2746
    %v2748 = vrot.slane %v2713, %v2747
    %v2749 = vlaneseq
    %v2750 = vshrl.u32 %v2749, 7
    %v2751 = vsub.s32 0, %v2750
    %v2752 = vrot.slane %v2714, %v2751
    %v2753 = vlaneseq
    %v2754 = vshrl.u32 %v2753, 7
    %v2755 = vsub.s32 1, %v2754
    %v2756 = vrot.slane %v2714, %v2755
    %v2767 = vadd.f32 %v2703, %v2720
    %v2768 = vadd.f32 %v2704, %v2724
    %v2769 = vadd.f32 %v2705, %v2728
    %v2770 = vadd.f32 %v2706, %v2732
    %v2771 = vadd.f32 %v2707, %v2736
    %v2772 = vadd.f32 %v2708, %v2740
    %v2773 = vadd.f32 %v2709, %v2744
    %v2774 = vadd.f32 %v2710, %v2748
    %v2775 = vadd.f32 %v2711, %v2752
    %v2776 = vadd.f32 %v2712, %v2756
    %v2777 = vmax.f32 %v2767, 0.0
    %v2778 = vmax.f32 %v2768, 0.0
    %v2779 = vmax.f32 %v2769, 0.0
    %v2780 = vmax.f32 %v2770, 0.0
    %v2781 = vmax.f32 %v2771, 0.0
    %v2782 = vmax.f32 %v2772, 0.0
    %v2783 = vmax.f32 %v2773, 0.0
    %v2784 = vmax.f32 %v2774, 0.0
    %v2785 = vmax.f32 %v2775, 0.0
    %v2786 = vmax.f32 %v2776, 0.0
    %v2787 = vpack.c.bf16 %v2777, %v2777
    %v2788 = vpack.c.bf16 %v2778, %v2778
    %v2789 = vpack.c.bf16 %v2779, %v2779
    %v2790 = vpack.c.bf16 %v2780, %v2780
    %v2791 = vpack.c.bf16 %v2781, %v2781
    %v2792 = vpack.c.bf16 %v2782, %v2782
    %v2793 = vpack.c.bf16 %v2783, %v2783
    %v2794 = vpack.c.bf16 %v2784, %v2784
    %v2795 = vpack.c.bf16 %v2785, %v2785
    %v2796 = vpack.c.bf16 %v2786, %v2786
    %v2797 = vld [vmem:[#allocation11] sm:$0xf]
    %v2798 = vld [vmem:[#allocation11 + $0x4] sm:$0xf]
    %v2799 = vld [vmem:[#allocation11 + $0x8] sm:$0xf]
    %v2800 = vld [vmem:[#allocation11 + $0xc] sm:$0xf]
    %v2801 = vld [vmem:[#allocation11 + $0x10] sm:$0xf]
    %v2802 = vld [vmem:[#allocation11 + $0x14] sm:$0xf]
    %v2803 = vld [vmem:[#allocation11 + $0x18] sm:$0xf]
    %v2804 = vld [vmem:[#allocation11 + $0x1c] sm:$0xf]
    %v2805 = vld [vmem:[#allocation11 + $0x20] sm:$0xf]
    %v2806 = vld [vmem:[#allocation11 + $0x24] sm:$0xf]
    %v2807 = vld [vmem:[#allocation11 + $0x28] sm:$0xf]
    %v2808 = vld [vmem:[#allocation11 + $0x2c] sm:$0xf]
    %v2809 = vld [vmem:[#allocation11 + $0x30] sm:$0xf]
    %v2810 = vld [vmem:[#allocation11 + $0x34] sm:$0xf]
    %v2811 = vld [vmem:[#allocation11 + $0x38] sm:$0xf]
    %v2812 = vld [vmem:[#allocation11 + $0x3c] sm:$0xf]
    %v2813 = vld [vmem:[#allocation11 + $0x40] sm:$0xf]
    %v2814 = vld [vmem:[#allocation11 + $0x44] sm:$0xf]
    %v2815 = vld [vmem:[#allocation11 + $0x48] sm:$0xf]
    %v2816 = vld [vmem:[#allocation11 + $0x4c] sm:$0xf]
    %v2817 = vld [vmem:[#allocation11 + $0x50] sm:$0xf]
    %v2818 = vld [vmem:[#allocation11 + $0x54] sm:$0xf]
    %v2819 = vld [vmem:[#allocation11 + $0x58] sm:$0xf]
    %v2820 = vld [vmem:[#allocation11 + $0x5c] sm:$0xf]
    %v2821 = vld [vmem:[#allocation11 + $0x60] sm:$0xf]
    %v2822 = vld [vmem:[#allocation11 + $0x64] sm:$0xf]
    %v2823 = vld [vmem:[#allocation11 + $0x68] sm:$0xf]
    %v2824 = vld [vmem:[#allocation11 + $0x6c] sm:$0xf]
    %v2825 = vld [vmem:[#allocation11 + $0x70] sm:$0xf]
    %v2826 = vld [vmem:[#allocation11 + $0x74] sm:$0xf]
    %v2827 = vld [vmem:[#allocation11 + $0x78] sm:$0xf]
    %v2828 = vld [vmem:[#allocation11 + $0x7c] sm:$0xf]
    %v2829 = vld [vmem:[#allocation11 + $0x80] sm:$0xf]
    %v2830 = vld [vmem:[#allocation11 + $0x84] sm:$0xf]
    %v2831 = vld [vmem:[#allocation11 + $0x88] sm:$0xf]
    %v2832 = vld [vmem:[#allocation11 + $0x8c] sm:$0xf]
    %v2833 = vld [vmem:[#allocation11 + $0x90] sm:$0xf]
    %v2834 = vld [vmem:[#allocation11 + $0x94] sm:$0xf]
    %v2835 = vld [vmem:[#allocation11 + $0x98] sm:$0xf]
    %v2836 = vld [vmem:[#allocation11 + $0x9c] sm:$0xf]
    %v2837 = vld [vmem:[#allocation11 + $0xa0] sm:$0xf]
    %v2838 = vld [vmem:[#allocation11 + $0xa4] sm:$0xf]
    %v2839 = vld [vmem:[#allocation11 + $0xa8] sm:$0xf]
    %v2840 = vld [vmem:[#allocation11 + $0xac] sm:$0xf]
    %v2841 = vld [vmem:[#allocation11 + $0xb0] sm:$0xf]
    %v2842 = vld [vmem:[#allocation11 + $0xb4] sm:$0xf]
    %v2843 = vld [vmem:[#allocation11 + $0xb8] sm:$0xf]
    %v2844 = vld [vmem:[#allocation11 + $0xbc] sm:$0xf]
    %v2845 = vld [vmem:[#allocation11 + $0xc0] sm:$0xf]
    %v2846 = vld [vmem:[#allocation11 + $0xc4] sm:$0xf]
    %v2847 = vld [vmem:[#allocation11 + $0xc8] sm:$0xf]
    %v2848 = vld [vmem:[#allocation11 + $0xcc] sm:$0xf]
    %v2849 = vld [vmem:[#allocation11 + $0xd0] sm:$0xf]
    %v2850 = vld [vmem:[#allocation11 + $0xd4] sm:$0xf]
    %v2851 = vld [vmem:[#allocation11 + $0xd8] sm:$0xf]
    %v2852 = vld [vmem:[#allocation11 + $0xdc] sm:$0xf]
    %v2853 = vld [vmem:[#allocation11 + $0xe0] sm:$0xf]
    %v2854 = vld [vmem:[#allocation11 + $0xe4] sm:$0xf]
    %v2855 = vld [vmem:[#allocation11 + $0xe8] sm:$0xf]
    %v2856 = vld [vmem:[#allocation11 + $0xec] sm:$0xf]
    %v2857 = vld [vmem:[#allocation11 + $0xf0] sm:$0xf]
    %v2858 = vld [vmem:[#allocation11 + $0xf4] sm:$0xf]
    %v2859 = vld [vmem:[#allocation11 + $0xf8] sm:$0xf]
    %v2860 = vld [vmem:[#allocation11 + $0xfc] sm:$0xf]
    %v2861 = vld [vmem:[#allocation11 + $0x100] sm:$0xf]
    %v2862 = vld [vmem:[#allocation11 + $0x104] sm:$0xf]
    %v2863 = vld [vmem:[#allocation11 + $0x108] sm:$0xf]
    %v2864 = vld [vmem:[#allocation11 + $0x10c] sm:$0xf]
    %v2865 = vld [vmem:[#allocation11 + $0x110] sm:$0xf]
    %v2866 = vld [vmem:[#allocation11 + $0x114] sm:$0xf]
    %v2867 = vld [vmem:[#allocation11 + $0x118] sm:$0xf]
    %v2868 = vld [vmem:[#allocation11 + $0x11c] sm:$0xf]
    %v2869 = vld [vmem:[#allocation11 + $0x120] sm:$0xf]
    %v2870 = vld [vmem:[#allocation11 + $0x124] sm:$0xf]
    %v2871 = vld [vmem:[#allocation11 + $0x128] sm:$0xf]
    %v2872 = vld [vmem:[#allocation11 + $0x12c] sm:$0xf]
    %v2873 = vld [vmem:[#allocation11 + $0x130] sm:$0xf]
    %v2874 = vld [vmem:[#allocation11 + $0x134] sm:$0xf]
    %v2875 = vld [vmem:[#allocation11 + $0x138] sm:$0xf]
    %v2876 = vld [vmem:[#allocation11 + $0x13c] sm:$0xf]
    %v2877 = vld [vmem:[#allocation11 + $0x140] sm:$0xf]
    %v2878 = vld [vmem:[#allocation11 + $0x144] sm:$0xf]
    %v2879 = vld [vmem:[#allocation11 + $0x148] sm:$0xf]
    %v2880 = vld [vmem:[#allocation11 + $0x14c] sm:$0xf]
    %v2881 = vld [vmem:[#allocation11 + $0x150] sm:$0xf]
    %v2882 = vld [vmem:[#allocation11 + $0x154] sm:$0xf]
    %v2883 = vld [vmem:[#allocation11 + $0x158] sm:$0xf]
    %v2884 = vld [vmem:[#allocation11 + $0x15c] sm:$0xf]
    %v2885 = vld [vmem:[#allocation11 + $0x160] sm:$0xf]
    %v2886 = vld [vmem:[#allocation11 + $0x164] sm:$0xf]
    %v2887 = vld [vmem:[#allocation11 + $0x168] sm:$0xf]
    %v2888 = vld [vmem:[#allocation11 + $0x16c] sm:$0xf]
    %v2889 = vld [vmem:[#allocation11 + $0x170] sm:$0xf]
    %v2890 = vld [vmem:[#allocation11 + $0x174] sm:$0xf]
    %v2891 = vld [vmem:[#allocation11 + $0x178] sm:$0xf]
    %v2892 = vld [vmem:[#allocation11 + $0x17c] sm:$0xf]
    %v2893 = vld [vmem:[#allocation11 + $0x180] sm:$0xf]
    %v2894 = vld [vmem:[#allocation11 + $0x184] sm:$0xf]
    %v2895 = vld [vmem:[#allocation11 + $0x188] sm:$0xf]
    %v2896 = vld [vmem:[#allocation11 + $0x18c] sm:$0xf]
    %v2897 = vld [vmem:[#allocation11 + $0x190] sm:$0xf]
    %v2898 = vld [vmem:[#allocation11 + $0x194] sm:$0xf]
    %v2899 = vld [vmem:[#allocation11 + $0x198] sm:$0xf]
    %v2900 = vld [vmem:[#allocation11 + $0x19c] sm:$0xf]
    %v2901 = vld [vmem:[#allocation11 + $0x1a0] sm:$0xf]
    %v2902 = vld [vmem:[#allocation11 + $0x1a4] sm:$0xf]
    %v2903 = vld [vmem:[#allocation11 + $0x1a8] sm:$0xf]
    %v2904 = vld [vmem:[#allocation11 + $0x1ac] sm:$0xf]
    %v2905 = vld [vmem:[#allocation11 + $0x1b0] sm:$0xf]
    %v2906 = vld [vmem:[#allocation11 + $0x1b4] sm:$0xf]
    %v2907 = vld [vmem:[#allocation11 + $0x1b8] sm:$0xf]
    %v2908 = vld [vmem:[#allocation11 + $0x1bc] sm:$0xf]
    %v2909 = vld [vmem:[#allocation11 + $0x1c0] sm:$0xf]
    %v2910 = vld [vmem:[#allocation11 + $0x1c4] sm:$0xf]
    %v2911 = vld [vmem:[#allocation11 + $0x1c8] sm:$0xf]
    %v2912 = vld [vmem:[#allocation11 + $0x1cc] sm:$0xf]
    %v2913 = vld [vmem:[#allocation11 + $0x1d0] sm:$0xf]
    %v2914 = vld [vmem:[#allocation11 + $0x1d4] sm:$0xf]
    %v2915 = vld [vmem:[#allocation11 + $0x1d8] sm:$0xf]
    %v2916 = vld [vmem:[#allocation11 + $0x1dc] sm:$0xf]
    %v2917 = vld [vmem:[#allocation11 + $0x1e0] sm:$0xf]
    %v2918 = vld [vmem:[#allocation11 + $0x1e4] sm:$0xf]
    %v2919 = vld [vmem:[#allocation11 + $0x1e8] sm:$0xf]
    %v2920 = vld [vmem:[#allocation11 + $0x1ec] sm:$0xf]
    %v2921 = vld [vmem:[#allocation11 + $0x1f0] sm:$0xf]
    %v2922 = vld [vmem:[#allocation11 + $0x1f4] sm:$0xf]
    %v2923 = vld [vmem:[#allocation11 + $0x1f8] sm:$0xf]
    %v2924 = vld [vmem:[#allocation11 + $0x1fc] sm:$0xf]
    %v2925 = vld [vmem:[#allocation11 + $0x200] sm:$0xf]
    %v2926 = vld [vmem:[#allocation11 + $0x204] sm:$0xf]
    %v2927 = vld [vmem:[#allocation11 + $0x208] sm:$0xf]
    %v2928 = vld [vmem:[#allocation11 + $0x20c] sm:$0xf]
    %v2929 = vld [vmem:[#allocation11 + $0x210] sm:$0xf]
    %v2930 = vld [vmem:[#allocation11 + $0x214] sm:$0xf]
    %v2931 = vld [vmem:[#allocation11 + $0x218] sm:$0xf]
    %v2932 = vld [vmem:[#allocation11 + $0x21c] sm:$0xf]
    %v2933 = vld [vmem:[#allocation11 + $0x220] sm:$0xf]
    %v2934 = vld [vmem:[#allocation11 + $0x224] sm:$0xf]
    %v2935 = vld [vmem:[#allocation11 + $0x228] sm:$0xf]
    %v2936 = vld [vmem:[#allocation11 + $0x22c] sm:$0xf]
    %v2937 = vld [vmem:[#allocation11 + $0x230] sm:$0xf]
    %v2938 = vld [vmem:[#allocation11 + $0x234] sm:$0xf]
    %v2939 = vld [vmem:[#allocation11 + $0x238] sm:$0xf]
    %v2940 = vld [vmem:[#allocation11 + $0x23c] sm:$0xf]
    %v2941 = vld [vmem:[#allocation11 + $0x240] sm:$0xf]
    %v2942 = vld [vmem:[#allocation11 + $0x244] sm:$0xf]
    %v2943 = vld [vmem:[#allocation11 + $0x248] sm:$0xf]
    %v2944 = vld [vmem:[#allocation11 + $0x24c] sm:$0xf]
    %v2945 = vld [vmem:[#allocation11 + $0x250] sm:$0xf]
    %v2946 = vld [vmem:[#allocation11 + $0x254] sm:$0xf]
    %v2947 = vld [vmem:[#allocation11 + $0x258] sm:$0xf]
    %v2948 = vld [vmem:[#allocation11 + $0x25c] sm:$0xf]
    %v2949 = vld [vmem:[#allocation11 + $0x260] sm:$0xf]
    %v2950 = vld [vmem:[#allocation11 + $0x264] sm:$0xf]
    %v2951 = vld [vmem:[#allocation11 + $0x268] sm:$0xf]
    %v2952 = vld [vmem:[#allocation11 + $0x26c] sm:$0xf]
    %v2953 = vld [vmem:[#allocation11 + $0x270] sm:$0xf]
    %v2954 = vld [vmem:[#allocation11 + $0x274] sm:$0xf]
    %v2955 = vld [vmem:[#allocation11 + $0x278] sm:$0xf]
    %v2956 = vld [vmem:[#allocation11 + $0x27c] sm:$0xf]
    %v2957 = vpack.c.bf16 %v2190, %v2190
    %v2958 = vpack.c.bf16 %v2192, %v2192
    %v2959 = vpack.c.bf16 %v2313, %v2313
    %v2960 = vpack.c.bf16 %v2315, %v2315
    %v2961 = vpack.c.bf16 %v2436, %v2436
    %v2962 = vpack.c.bf16 %v2438, %v2438
    %v2963 = vld [vmem:[#allocation13] sm:$0xf]
    %v2964 = vld [vmem:[#allocation13 + $0x4] sm:$0xf]
    %v2965 = vld [vmem:[#allocation13 + $0x8] sm:$0xf]
    %v2966 = vld [vmem:[#allocation13 + $0xc] sm:$0xf]
    %v2967 = vld [vmem:[#allocation13 + $0x10] sm:$0xf]
    %v2968 = vld [vmem:[#allocation13 + $0x14] sm:$0xf]
    %v2969 = vld [vmem:[#allocation13 + $0x18] sm:$0xf]
    %v2970 = vld [vmem:[#allocation13 + $0x1c] sm:$0xf]
    %v2971 = vld [vmem:[#allocation13 + $0x20] sm:$0xf]
    %v2972 = vld [vmem:[#allocation13 + $0x24] sm:$0xf]
    %v2973 = vld [vmem:[#allocation13 + $0x28] sm:$0xf]
    %v2974 = vld [vmem:[#allocation13 + $0x2c] sm:$0xf]
    %v2975 = vld [vmem:[#allocation13 + $0x30] sm:$0xf]
    %v2976 = vld [vmem:[#allocation13 + $0x34] sm:$0xf]
    %v2977 = vld [vmem:[#allocation13 + $0x38] sm:$0xf]
    %v2978 = vld [vmem:[#allocation13 + $0x3c] sm:$0xf]
    %v2979 = vld [vmem:[#allocation13 + $0x40] sm:$0xf]
    %v2980 = vld [vmem:[#allocation13 + $0x44] sm:$0xf]
    %v2981 = vld [vmem:[#allocation13 + $0x48] sm:$0xf]
    %v2982 = vld [vmem:[#allocation13 + $0x4c] sm:$0xf]
    %v2983 = vld [vmem:[#allocation13 + $0x50] sm:$0xf]
    %v2984 = vld [vmem:[#allocation13 + $0x54] sm:$0xf]
    %v2985 = vld [vmem:[#allocation13 + $0x58] sm:$0xf]
    %v2986 = vld [vmem:[#allocation13 + $0x5c] sm:$0xf]
    %v2987 = vld [vmem:[#allocation13 + $0x60] sm:$0xf]
    %v2988 = vld [vmem:[#allocation13 + $0x64] sm:$0xf]
    %v2989 = vld [vmem:[#allocation13 + $0x68] sm:$0xf]
    %v2990 = vld [vmem:[#allocation13 + $0x6c] sm:$0xf]
    %v2991 = vld [vmem:[#allocation13 + $0x70] sm:$0xf]
    %v2992 = vld [vmem:[#allocation13 + $0x74] sm:$0xf]
    %v2993 = vld [vmem:[#allocation13 + $0x78] sm:$0xf]
    %v2994 = vld [vmem:[#allocation13 + $0x7c] sm:$0xf]
    %v2995 = vld [vmem:[#allocation13 + $0x80] sm:$0xf]
    %v2996 = vld [vmem:[#allocation13 + $0x84] sm:$0xf]
    %v2997 = vld [vmem:[#allocation13 + $0x88] sm:$0xf]
    %v2998 = vld [vmem:[#allocation13 + $0x8c] sm:$0xf]
    %v2999 = vld [vmem:[#allocation13 + $0x90] sm:$0xf]
    %v3000 = vld [vmem:[#allocation13 + $0x94] sm:$0xf]
    %v3001 = vld [vmem:[#allocation13 + $0x98] sm:$0xf]
    %v3002 = vld [vmem:[#allocation13 + $0x9c] sm:$0xf]
    %v3003 = vld [vmem:[#allocation13 + $0xa0] sm:$0xf]
    %v3004 = vld [vmem:[#allocation13 + $0xa4] sm:$0xf]
    %v3005 = vld [vmem:[#allocation13 + $0xa8] sm:$0xf]
    %v3006 = vld [vmem:[#allocation13 + $0xac] sm:$0xf]
    %v3007 = vld [vmem:[#allocation13 + $0xb0] sm:$0xf]
    %v3008 = vld [vmem:[#allocation13 + $0xb4] sm:$0xf]
    %v3009 = vld [vmem:[#allocation13 + $0xb8] sm:$0xf]
    %v3010 = vld [vmem:[#allocation13 + $0xbc] sm:$0xf]
    %v3011 = vld [vmem:[#allocation13 + $0xc0] sm:$0xf]
    %v3012 = vld [vmem:[#allocation13 + $0xc4] sm:$0xf]
    %v3013 = vld [vmem:[#allocation13 + $0xc8] sm:$0xf]
    %v3014 = vld [vmem:[#allocation13 + $0xcc] sm:$0xf]
    %v3015 = vld [vmem:[#allocation13 + $0xd0] sm:$0xf]
    %v3016 = vld [vmem:[#allocation13 + $0xd4] sm:$0xf]
    %v3017 = vld [vmem:[#allocation13 + $0xd8] sm:$0xf]
    %v3018 = vld [vmem:[#allocation13 + $0xdc] sm:$0xf]
    %v3019 = vld [vmem:[#allocation13 + $0xe0] sm:$0xf]
    %v3020 = vld [vmem:[#allocation13 + $0xe4] sm:$0xf]
    %v3021 = vld [vmem:[#allocation13 + $0xe8] sm:$0xf]
    %v3022 = vld [vmem:[#allocation13 + $0xec] sm:$0xf]
    %v3023 = vld [vmem:[#allocation13 + $0xf0] sm:$0xf]
    %v3024 = vld [vmem:[#allocation13 + $0xf4] sm:$0xf]
    %v3025 = vld [vmem:[#allocation13 + $0xf8] sm:$0xf]
    %v3026 = vld [vmem:[#allocation13 + $0xfc] sm:$0xf]
    %v3027 = vld [vmem:[#allocation13 + $0x100] sm:$0xf]
    %v3028 = vld [vmem:[#allocation13 + $0x104] sm:$0xf]
    %v3029 = vld [vmem:[#allocation13 + $0x108] sm:$0xf]
    %v3030 = vld [vmem:[#allocation13 + $0x10c] sm:$0xf]
    %v3031 = vld [vmem:[#allocation13 + $0x110] sm:$0xf]
    %v3032 = vld [vmem:[#allocation13 + $0x114] sm:$0xf]
    %v3033 = vld [vmem:[#allocation13 + $0x118] sm:$0xf]
    %v3034 = vld [vmem:[#allocation13 + $0x11c] sm:$0xf]
    %v3035 = vld [vmem:[#allocation13 + $0x120] sm:$0xf]
    %v3036 = vld [vmem:[#allocation13 + $0x124] sm:$0xf]
    %v3037 = vld [vmem:[#allocation13 + $0x128] sm:$0xf]
    %v3038 = vld [vmem:[#allocation13 + $0x12c] sm:$0xf]
    %v3039 = vld [vmem:[#allocation13 + $0x130] sm:$0xf]
    %v3040 = vld [vmem:[#allocation13 + $0x134] sm:$0xf]
    %v3041 = vld [vmem:[#allocation13 + $0x138] sm:$0xf]
    %v3042 = vld [vmem:[#allocation13 + $0x13c] sm:$0xf]
    %v3043 = vld [vmem:[#allocation13 + $0x140] sm:$0xf]
    %v3044 = vld [vmem:[#allocation13 + $0x144] sm:$0xf]
    %v3045 = vld [vmem:[#allocation13 + $0x148] sm:$0xf]
    %v3046 = vld [vmem:[#allocation13 + $0x14c] sm:$0xf]
    %v3047 = vld [vmem:[#allocation13 + $0x150] sm:$0xf]
    %v3048 = vld [vmem:[#allocation13 + $0x154] sm:$0xf]
    %v3049 = vld [vmem:[#allocation13 + $0x158] sm:$0xf]
    %v3050 = vld [vmem:[#allocation13 + $0x15c] sm:$0xf]
    %v3051 = vld [vmem:[#allocation13 + $0x160] sm:$0xf]
    %v3052 = vld [vmem:[#allocation13 + $0x164] sm:$0xf]
    %v3053 = vld [vmem:[#allocation13 + $0x168] sm:$0xf]
    %v3054 = vld [vmem:[#allocation13 + $0x16c] sm:$0xf]
    %v3055 = vld [vmem:[#allocation13 + $0x170] sm:$0xf]
    %v3056 = vld [vmem:[#allocation13 + $0x174] sm:$0xf]
    %v3057 = vld [vmem:[#allocation13 + $0x178] sm:$0xf]
    %v3058 = vld [vmem:[#allocation13 + $0x17c] sm:$0xf]
    %v3155 = vunpack.c.l.b16 %v2963
    %v3156 = vunpack.c.l.b16 %v2964
    %v3157 = vunpack.c.l.b16 %v2965
    %v3158 = vunpack.c.l.b16 %v2966
    %v3159 = vunpack.c.l.b16 %v2967
    %v3160 = vunpack.c.l.b16 %v2968
    %v3161 = vunpack.c.l.b16 %v2969
    %v3162 = vunpack.c.l.b16 %v2970
    %v3163 = vunpack.c.l.b16 %v2971
    %v3164 = vunpack.c.l.b16 %v2972
    %v3165 = vunpack.c.l.b16 %v2973
    %v3166 = vunpack.c.l.b16 %v2974
    %v3167 = vunpack.c.l.b16 %v2975
    %v3168 = vunpack.c.l.b16 %v2976
    %v3169 = vunpack.c.l.b16 %v2977
    %v3170 = vunpack.c.l.b16 %v2978
    %v3171 = vunpack.c.l.b16 %v2979
    %v3172 = vunpack.c.l.b16 %v2980
    %v3173 = vunpack.c.l.b16 %v2981
    %v3174 = vunpack.c.l.b16 %v2982
    %v3175 = vunpack.c.l.b16 %v2983
    %v3176 = vunpack.c.l.b16 %v2984
    %v3177 = vunpack.c.l.b16 %v2985
    %v3178 = vunpack.c.l.b16 %v2986
    %v3179 = vunpack.c.l.b16 %v2987
    %v3180 = vunpack.c.l.b16 %v2988
    %v3181 = vunpack.c.l.b16 %v2989
    %v3182 = vunpack.c.l.b16 %v2990
    %v3183 = vunpack.c.l.b16 %v2991
    %v3184 = vunpack.c.l.b16 %v2992
    %v3185 = vunpack.c.l.b16 %v2993
    %v3186 = vunpack.c.l.b16 %v2994
    %v3187 = vunpack.c.l.b16 %v2995
    %v3188 = vunpack.c.l.b16 %v2996
    %v3189 = vunpack.c.l.b16 %v2997
    %v3190 = vunpack.c.l.b16 %v2998
    %v3191 = vunpack.c.l.b16 %v2999
    %v3192 = vunpack.c.l.b16 %v3000
    %v3193 = vunpack.c.l.b16 %v3001
    %v3194 = vunpack.c.l.b16 %v3002
    %v3195 = vunpack.c.l.b16 %v3003
    %v3196 = vunpack.c.l.b16 %v3004
    %v3197 = vunpack.c.l.b16 %v3005
    %v3198 = vunpack.c.l.b16 %v3006
    %v3199 = vunpack.c.l.b16 %v3007
    %v3200 = vunpack.c.l.b16 %v3008
    %v3201 = vunpack.c.l.b16 %v3009
    %v3202 = vunpack.c.l.b16 %v3010
    %v3203 = vunpack.c.l.b16 %v3011
    %v3204 = vunpack.c.l.b16 %v3012
    %v3205 = vunpack.c.l.b16 %v3013
    %v3206 = vunpack.c.l.b16 %v3014
    %v3207 = vunpack.c.l.b16 %v3015
    %v3208 = vunpack.c.l.b16 %v3016
    %v3209 = vunpack.c.l.b16 %v3017
    %v3210 = vunpack.c.l.b16 %v3018
    %v3211 = vunpack.c.l.b16 %v3019
    %v3212 = vunpack.c.l.b16 %v3020
    %v3213 = vunpack.c.l.b16 %v3021
    %v3214 = vunpack.c.l.b16 %v3022
    %v3215 = vunpack.c.l.b16 %v3023
    %v3216 = vunpack.c.l.b16 %v3024
    %v3217 = vunpack.c.l.b16 %v3025
    %v3218 = vunpack.c.l.b16 %v3026
    %v3219 = vunpack.c.l.b16 %v3027
    %v3220 = vunpack.c.l.b16 %v3028
    %v3221 = vunpack.c.l.b16 %v3029
    %v3222 = vunpack.c.l.b16 %v3030
    %v3223 = vunpack.c.l.b16 %v3031
    %v3224 = vunpack.c.l.b16 %v3032
    %v3225 = vunpack.c.l.b16 %v3033
    %v3226 = vunpack.c.l.b16 %v3034
    %v3227 = vunpack.c.l.b16 %v3035
    %v3228 = vunpack.c.l.b16 %v3036
    %v3229 = vunpack.c.l.b16 %v3037
    %v3230 = vunpack.c.l.b16 %v3038
    %v3231 = vunpack.c.l.b16 %v3039
    %v3232 = vunpack.c.l.b16 %v3040
    %v3233 = vunpack.c.l.b16 %v3041
    %v3234 = vunpack.c.l.b16 %v3042
    %v3235 = vunpack.c.l.b16 %v3043
    %v3236 = vunpack.c.l.b16 %v3044
    %v3237 = vunpack.c.l.b16 %v3045
    %v3238 = vunpack.c.l.b16 %v3046
    %v3239 = vunpack.c.l.b16 %v3047
    %v3240 = vunpack.c.l.b16 %v3048
    %v3241 = vunpack.c.l.b16 %v3049
    %v3242 = vunpack.c.l.b16 %v3050
    %v3243 = vunpack.c.l.b16 %v3051
    %v3244 = vunpack.c.l.b16 %v3052
    %v3245 = vunpack.c.l.b16 %v3053
    %v3246 = vunpack.c.l.b16 %v3054
    %v3247 = vunpack.c.l.b16 %v3055
    %v3248 = vunpack.c.l.b16 %v3056
    %v3249 = vunpack.c.l.b16 %v3057
    %v3250 = vunpack.c.l.b16 %v3058
    %v3251 = vpack.c.b16 %v3156, %v3155
    %v3252 = vpack.c.b16 %v3158, %v3157
    %v3253 = vpack.c.b16 %v3160, %v3159
    %v3254 = vpack.c.b16 %v3162, %v3161
    %v3255 = vpack.c.b16 %v3164, %v3163
    %v3256 = vpack.c.b16 %v3166, %v3165
    %v3257 = vpack.c.b16 %v3168, %v3167
    %v3258 = vpack.c.b16 %v3170, %v3169
    %v3259 = vpack.c.b16 %v3172, %v3171
    %v3260 = vpack.c.b16 %v3174, %v3173
    %v3261 = vpack.c.b16 %v3176, %v3175
    %v3262 = vpack.c.b16 %v3178, %v3177
    %v3263 = vpack.c.b16 %v3180, %v3179
    %v3264 = vpack.c.b16 %v3182, %v3181
    %v3265 = vpack.c.b16 %v3184, %v3183
    %v3266 = vpack.c.b16 %v3186, %v3185
    %v3267 = vpack.c.b16 %v3188, %v3187
    %v3268 = vpack.c.b16 %v3190, %v3189
    %v3269 = vpack.c.b16 %v3192, %v3191
    %v3270 = vpack.c.b16 %v3194, %v3193
    %v3271 = vpack.c.b16 %v3196, %v3195
    %v3272 = vpack.c.b16 %v3198, %v3197
    %v3273 = vpack.c.b16 %v3200, %v3199
    %v3274 = vpack.c.b16 %v3202, %v3201
    %v3275 = vpack.c.b16 %v3204, %v3203
    %v3276 = vpack.c.b16 %v3206, %v3205
    %v3277 = vpack.c.b16 %v3208, %v3207
    %v3278 = vpack.c.b16 %v3210, %v3209
    %v3279 = vpack.c.b16 %v3212, %v3211
    %v3280 = vpack.c.b16 %v3214, %v3213
    %v3281 = vpack.c.b16 %v3216, %v3215
    %v3282 = vpack.c.b16 %v3218, %v3217
    %v3283 = vpack.c.b16 %v3220, %v3219
    %v3284 = vpack.c.b16 %v3222, %v3221
    %v3285 = vpack.c.b16 %v3224, %v3223
    %v3286 = vpack.c.b16 %v3226, %v3225
    %v3287 = vpack.c.b16 %v3228, %v3227
    %v3288 = vpack.c.b16 %v3230, %v3229
    %v3289 = vpack.c.b16 %v3232, %v3231
    %v3290 = vpack.c.b16 %v3234, %v3233
    %v3291 = vpack.c.b16 %v3236, %v3235
    %v3292 = vpack.c.b16 %v3238, %v3237
    %v3293 = vpack.c.b16 %v3240, %v3239
    %v3294 = vpack.c.b16 %v3242, %v3241
    %v3295 = vpack.c.b16 %v3244, %v3243
    %v3296 = vpack.c.b16 %v3246, %v3245
    %v3297 = vpack.c.b16 %v3248, %v3247
    %v3298 = vpack.c.b16 %v3250, %v3249
    %3347 = vmatprep.subr.bf16.mxu0 0
    %3348 = vmatpush1.bf16.msra.mxu0 %v3251
    %3349 = vmatprep.subr.bf16.mxu0 0
    %3350 = vmatpush1.bf16.msra.mxu0 %v3252
    %3351 = vmatprep.subr.bf16.mxu0 0
    %3352 = vmatpush1.bf16.msra.mxu0 %v3253
    %3353 = vmatprep.subr.bf16.mxu0 0
    %3354 = vmatpush1.bf16.msra.mxu0 %v3254
    %3355 = vmatprep.subr.bf16.mxu0 0
    %3356 = vmatpush1.bf16.msra.mxu0 %v3255
    %3357 = vmatprep.subr.bf16.mxu0 0
    %3358 = vmatpush1.bf16.msra.mxu0 %v3256
    %3359 = vmatprep.subr.bf16.mxu0 0
    %3360 = vmatpush1.bf16.msra.mxu0 %v3257
    %3361 = vmatprep.subr.bf16.mxu0 0
    %3362 = vmatpush1.bf16.msra.mxu0 %v3258
    %3363 = vmatprep.subr.bf16.mxu0 0
    %3364 = vmatpush1.bf16.msra.mxu0 %v3259
    %3365 = vmatprep.subr.bf16.mxu0 0
    %3366 = vmatpush1.bf16.msra.mxu0 %v3260
    %3367 = vmatprep.subr.bf16.mxu0 0
    %3368 = vmatpush1.bf16.msra.mxu0 %v3261
    %3369 = vmatprep.subr.bf16.mxu0 0
    %3370 = vmatpush1.bf16.msra.mxu0 %v3262
    %3371 = vmatprep.subr.bf16.mxu0 0
    %3372 = vmatpush1.bf16.msra.mxu0 %v3263
    %3373 = vmatprep.subr.bf16.mxu0 0
    %3374 = vmatpush1.bf16.msra.mxu0 %v3264
    %3375 = vmatprep.subr.bf16.mxu0 0
    %3376 = vmatpush1.bf16.msra.mxu0 %v3265
    %3377 = vmatprep.subr.bf16.mxu0 0
    %3378 = vmatpush1.bf16.msra.mxu0 %v3266
    %3379 = vmatprep.mubr.bf16.mxu0 %v2958
    %3380 = vmatmul.mubr.bf16.gmra.mrb[0].mxu0 %v2957
    %v3381 = vpop.f32.mrb[0].mxu0
    %v3382 = vadd.f32 0.0, %v3381
    %v3383 = vpop.f32.mrb[0].mxu0
    %v3384 = vpop.f32.mrb[0].mxu0
    %v3385 = vpop.f32.mrb[0].mxu0
    %3386 = vdwg.mxu0
    %3387 = vmatprep.subr.bf16.mxu0 0
    %3388 = vmatpush1.bf16.msra.mxu0 %v3267
    %3389 = vmatprep.subr.bf16.mxu0 0
    %3390 = vmatpush1.bf16.msra.mxu0 %v3268
    %3391 = vmatprep.subr.bf16.mxu0 0
    %3392 = vmatpush1.bf16.msra.mxu0 %v3269
    %3393 = vmatprep.subr.bf16.mxu0 0
    %3394 = vmatpush1.bf16.msra.mxu0 %v3270
    %3395 = vmatprep.subr.bf16.mxu0 0
    %3396 = vmatpush1.bf16.msra.mxu0 %v3271
    %3397 = vmatprep.subr.bf16.mxu0 0
    %3398 = vmatpush1.bf16.msra.mxu0 %v3272
    %3399 = vmatprep.subr.bf16.mxu0 0
    %3400 = vmatpush1.bf16.msra.mxu0 %v3273
    %3401 = vmatprep.subr.bf16.mxu0 0
    %3402 = vmatpush1.bf16.msra.mxu0 %v3274
    %3403 = vmatprep.subr.bf16.mxu0 0
    %3404 = vmatpush1.bf16.msra.mxu0 %v3275
    %3405 = vmatprep.subr.bf16.mxu0 0
    %3406 = vmatpush1.bf16.msra.mxu0 %v3276
    %3407 = vmatprep.subr.bf16.mxu0 0
    %3408 = vmatpush1.bf16.msra.mxu0 %v3277
    %3409 = vmatprep.subr.bf16.mxu0 0
    %3410 = vmatpush1.bf16.msra.mxu0 %v3278
    %3411 = vmatprep.subr.bf16.mxu0 0
    %3412 = vmatpush1.bf16.msra.mxu0 %v3279
    %3413 = vmatprep.subr.bf16.mxu0 0
    %3414 = vmatpush1.bf16.msra.mxu0 %v3280
    %3415 = vmatprep.subr.bf16.mxu0 0
    %3416 = vmatpush1.bf16.msra.mxu0 %v3281
    %3417 = vmatprep.subr.bf16.mxu0 0
    %3418 = vmatpush1.bf16.msra.mxu0 %v3282
    %3419 = vmatprep.mubr.bf16.mxu0 %v2960
    %3420 = vmatmul.mubr.bf16.gmra.mrb[0].mxu0 %v2959
    %v3421 = vpop.f32.mrb[0].mxu0
    %v3422 = vadd.f32 %v3382, %v3421
    %v3423 = vpop.f32.mrb[0].mxu0
    %v3424 = vpop.f32.mrb[0].mxu0
    %v3425 = vpop.f32.mrb[0].mxu0
    %3426 = vdwg.mxu0
    %3427 = vmatprep.subr.bf16.mxu0 0
    %3428 = vmatpush1.bf16.msra.mxu0 %v3283
    %3429 = vmatprep.subr.bf16.mxu0 0
    %3430 = vmatpush1.bf16.msra.mxu0 %v3284
    %3431 = vmatprep.subr.bf16.mxu0 0
    %3432 = vmatpush1.bf16.msra.mxu0 %v3285
    %3433 = vmatprep.subr.bf16.mxu0 0
    %3434 = vmatpush1.bf16.msra.mxu0 %v3286
    %3435 = vmatprep.subr.bf16.mxu0 0
    %3436 = vmatpush1.bf16.msra.mxu0 %v3287
    %3437 = vmatprep.subr.bf16.mxu0 0
    %3438 = vmatpush1.bf16.msra.mxu0 %v3288
    %3439 = vmatprep.subr.bf16.mxu0 0
    %3440 = vmatpush1.bf16.msra.mxu0 %v3289
    %3441 = vmatprep.subr.bf16.mxu0 0
    %3442 = vmatpush1.bf16.msra.mxu0 %v3290
    %3443 = vmatprep.subr.bf16.mxu0 0
    %3444 = vmatpush1.bf16.msra.mxu0 %v3291
    %3445 = vmatprep.subr.bf16.mxu0 0
    %3446 = vmatpush1.bf16.msra.mxu0 %v3292
    %3447 = vmatprep.subr.bf16.mxu0 0
    %3448 = vmatpush1.bf16.msra.mxu0 %v3293
    %3449 = vmatprep.subr.bf16.mxu0 0
    %3450 = vmatpush1.bf16.msra.mxu0 %v3294
    %3451 = vmatprep.subr.bf16.mxu0 0
    %3452 = vmatpush1.bf16.msra.mxu0 %v3295
    %3453 = vmatprep.subr.bf16.mxu0 0
    %3454 = vmatpush1.bf16.msra.mxu0 %v3296
    %3455 = vmatprep.subr.bf16.mxu0 0
    %3456 = vmatpush1.bf16.msra.mxu0 %v3297
    %3457 = vmatprep.subr.bf16.mxu0 0
    %3458 = vmatpush1.bf16.msra.mxu0 %v3298
    %3459 = vmatprep.mubr.bf16.mxu0 %v2962
    %3460 = vmatmul.mubr.bf16.gmra.mrb[0].mxu0 %v2961
    %v3461 = vpop.f32.mrb[0].mxu0
    %v3462 = vadd.f32 %v3422, %v3461
    %v3463 = vpop.f32.mrb[0].mxu0
    %v3464 = vpop.f32.mrb[0].mxu0
    %v3465 = vpop.f32.mrb[0].mxu0
    %3466 = vdwg.mxu0
    %v3627 = vunpack.c.l.b16 %v2797
    %v3628 = vunpack.c.l.b16 %v2798
    %v3629 = vunpack.c.l.b16 %v2799
    %v3630 = vunpack.c.l.b16 %v2800
    %v3631 = vunpack.c.l.b16 %v2801
    %v3632 = vunpack.c.l.b16 %v2802
    %v3633 = vunpack.c.l.b16 %v2803
    %v3634 = vunpack.c.l.b16 %v2804
    %v3635 = vunpack.c.l.b16 %v2805
    %v3636 = vunpack.c.l.b16 %v2806
    %v3637 = vunpack.c.l.b16 %v2807
    %v3638 = vunpack.c.l.b16 %v2808
    %v3639 = vunpack.c.l.b16 %v2809
    %v3640 = vunpack.c.l.b16 %v2810
    %v3641 = vunpack.c.l.b16 %v2811
    %v3642 = vunpack.c.l.b16 %v2812
    %v3643 = vunpack.c.l.b16 %v2813
    %v3644 = vunpack.c.l.b16 %v2814
    %v3645 = vunpack.c.l.b16 %v2815
    %v3646 = vunpack.c.l.b16 %v2816
    %v3647 = vunpack.c.l.b16 %v2817
    %v3648 = vunpack.c.l.b16 %v2818
    %v3649 = vunpack.c.l.b16 %v2819
    %v3650 = vunpack.c.l.b16 %v2820
    %v3651 = vunpack.c.l.b16 %v2821
    %v3652 = vunpack.c.l.b16 %v2822
    %v3653 = vunpack.c.l.b16 %v2823
    %v3654 = vunpack.c.l.b16 %v2824
    %v3655 = vunpack.c.l.b16 %v2825
    %v3656 = vunpack.c.l.b16 %v2826
    %v3657 = vunpack.c.l.b16 %v2827
    %v3658 = vunpack.c.l.b16 %v2828
    %v3659 = vunpack.c.l.b16 %v2829
    %v3660 = vunpack.c.l.b16 %v2830
    %v3661 = vunpack.c.l.b16 %v2831
    %v3662 = vunpack.c.l.b16 %v2832
    %v3663 = vunpack.c.l.b16 %v2833
    %v3664 = vunpack.c.l.b16 %v2834
    %v3665 = vunpack.c.l.b16 %v2835
    %v3666 = vunpack.c.l.b16 %v2836
    %v3667 = vunpack.c.l.b16 %v2837
    %v3668 = vunpack.c.l.b16 %v2838
    %v3669 = vunpack.c.l.b16 %v2839
    %v3670 = vunpack.c.l.b16 %v2840
    %v3671 = vunpack.c.l.b16 %v2841
    %v3672 = vunpack.c.l.b16 %v2842
    %v3673 = vunpack.c.l.b16 %v2843
    %v3674 = vunpack.c.l.b16 %v2844
    %v3675 = vunpack.c.l.b16 %v2845
    %v3676 = vunpack.c.l.b16 %v2846
    %v3677 = vunpack.c.l.b16 %v2847
    %v3678 = vunpack.c.l.b16 %v2848
    %v3679 = vunpack.c.l.b16 %v2849
    %v3680 = vunpack.c.l.b16 %v2850
    %v3681 = vunpack.c.l.b16 %v2851
    %v3682 = vunpack.c.l.b16 %v2852
    %v3683 = vunpack.c.l.b16 %v2853
    %v3684 = vunpack.c.l.b16 %v2854
    %v3685 = vunpack.c.l.b16 %v2855
    %v3686 = vunpack.c.l.b16 %v2856
    %v3687 = vunpack.c.l.b16 %v2857
    %v3688 = vunpack.c.l.b16 %v2858
    %v3689 = vunpack.c.l.b16 %v2859
    %v3690 = vunpack.c.l.b16 %v2860
    %v3691 = vunpack.c.l.b16 %v2861
    %v3692 = vunpack.c.l.b16 %v2862
    %v3693 = vunpack.c.l.b16 %v2863
    %v3694 = vunpack.c.l.b16 %v2864
    %v3695 = vunpack.c.l.b16 %v2865
    %v3696 = vunpack.c.l.b16 %v2866
    %v3697 = vunpack.c.l.b16 %v2867
    %v3698 = vunpack.c.l.b16 %v2868
    %v3699 = vunpack.c.l.b16 %v2869
    %v3700 = vunpack.c.l.b16 %v2870
    %v3701 = vunpack.c.l.b16 %v2871
    %v3702 = vunpack.c.l.b16 %v2872
    %v3703 = vunpack.c.l.b16 %v2873
    %v3704 = vunpack.c.l.b16 %v2874
    %v3705 = vunpack.c.l.b16 %v2875
    %v3706 = vunpack.c.l.b16 %v2876
    %v3707 = vunpack.c.l.b16 %v2877
    %v3708 = vunpack.c.l.b16 %v2878
    %v3709 = vunpack.c.l.b16 %v2879
    %v3710 = vunpack.c.l.b16 %v2880
    %v3711 = vunpack.c.l.b16 %v2881
    %v3712 = vunpack.c.l.b16 %v2882
    %v3713 = vunpack.c.l.b16 %v2883
    %v3714 = vunpack.c.l.b16 %v2884
    %v3715 = vunpack.c.l.b16 %v2885
    %v3716 = vunpack.c.l.b16 %v2886
    %v3717 = vunpack.c.l.b16 %v2887
    %v3718 = vunpack.c.l.b16 %v2888
    %v3719 = vunpack.c.l.b16 %v2889
    %v3720 = vunpack.c.l.b16 %v2890
    %v3721 = vunpack.c.l.b16 %v2891
    %v3722 = vunpack.c.l.b16 %v2892
    %v3723 = vunpack.c.l.b16 %v2893
    %v3724 = vunpack.c.l.b16 %v2894
    %v3725 = vunpack.c.l.b16 %v2895
    %v3726 = vunpack.c.l.b16 %v2896
    %v3727 = vunpack.c.l.b16 %v2897
    %v3728 = vunpack.c.l.b16 %v2898
    %v3729 = vunpack.c.l.b16 %v2899
    %v3730 = vunpack.c.l.b16 %v2900
    %v3731 = vunpack.c.l.b16 %v2901
    %v3732 = vunpack.c.l.b16 %v2902
    %v3733 = vunpack.c.l.b16 %v2903
    %v3734 = vunpack.c.l.b16 %v2904
    %v3735 = vunpack.c.l.b16 %v2905
    %v3736 = vunpack.c.l.b16 %v2906
    %v3737 = vunpack.c.l.b16 %v2907
    %v3738 = vunpack.c.l.b16 %v2908
    %v3739 = vunpack.c.l.b16 %v2909
    %v3740 = vunpack.c.l.b16 %v2910
    %v3741 = vunpack.c.l.b16 %v2911
    %v3742 = vunpack.c.l.b16 %v2912
    %v3743 = vunpack.c.l.b16 %v2913
    %v3744 = vunpack.c.l.b16 %v2914
    %v3745 = vunpack.c.l.b16 %v2915
    %v3746 = vunpack.c.l.b16 %v2916
    %v3747 = vunpack.c.l.b16 %v2917
    %v3748 = vunpack.c.l.b16 %v2918
    %v3749 = vunpack.c.l.b16 %v2919
    %v3750 = vunpack.c.l.b16 %v2920
    %v3751 = vunpack.c.l.b16 %v2921
    %v3752 = vunpack.c.l.b16 %v2922
    %v3753 = vunpack.c.l.b16 %v2923
    %v3754 = vunpack.c.l.b16 %v2924
    %v3755 = vunpack.c.l.b16 %v2925
    %v3756 = vunpack.c.l.b16 %v2926
    %v3757 = vunpack.c.l.b16 %v2927
    %v3758 = vunpack.c.l.b16 %v2928
    %v3759 = vunpack.c.l.b16 %v2929
    %v3760 = vunpack.c.l.b16 %v2930
    %v3761 = vunpack.c.l.b16 %v2931
    %v3762 = vunpack.c.l.b16 %v2932
    %v3763 = vunpack.c.l.b16 %v2933
    %v3764 = vunpack.c.l.b16 %v2934
    %v3765 = vunpack.c.l.b16 %v2935
    %v3766 = vunpack.c.l.b16 %v2936
    %v3767 = vunpack.c.l.b16 %v2937
    %v3768 = vunpack.c.l.b16 %v2938
    %v3769 = vunpack.c.l.b16 %v2939
    %v3770 = vunpack.c.l.b16 %v2940
    %v3771 = vunpack.c.l.b16 %v2941
    %v3772 = vunpack.c.l.b16 %v2942
    %v3773 = vunpack.c.l.b16 %v2943
    %v3774 = vunpack.c.l.b16 %v2944
    %v3775 = vunpack.c.l.b16 %v2945
    %v3776 = vunpack.c.l.b16 %v2946
    %v3777 = vunpack.c.l.b16 %v2947
    %v3778 = vunpack.c.l.b16 %v2948
    %v3779 = vunpack.c.l.b16 %v2949
    %v3780 = vunpack.c.l.b16 %v2950
    %v3781 = vunpack.c.l.b16 %v2951
    %v3782 = vunpack.c.l.b16 %v2952
    %v3783 = vunpack.c.l.b16 %v2953
    %v3784 = vunpack.c.l.b16 %v2954
    %v3785 = vunpack.c.l.b16 %v2955
    %v3786 = vunpack.c.l.b16 %v2956
    %v3787 = vpack.c.b16 %v3628, %v3627
    %v3788 = vpack.c.b16 %v3630, %v3629
    %v3789 = vpack.c.b16 %v3632, %v3631
    %v3790 = vpack.c.b16 %v3634, %v3633
    %v3791 = vpack.c.b16 %v3636, %v3635
    %v3792 = vpack.c.b16 %v3638, %v3637
    %v3793 = vpack.c.b16 %v3640, %v3639
    %v3794 = vpack.c.b16 %v3642, %v3641
    %v3795 = vpack.c.b16 %v3644, %v3643
    %v3796 = vpack.c.b16 %v3646, %v3645
    %v3797 = vpack.c.b16 %v3648, %v3647
    %v3798 = vpack.c.b16 %v3650, %v3649
    %v3799 = vpack.c.b16 %v3652, %v3651
    %v3800 = vpack.c.b16 %v3654, %v3653
    %v3801 = vpack.c.b16 %v3656, %v3655
    %v3802 = vpack.c.b16 %v3658, %v3657
    %v3803 = vpack.c.b16 %v3660, %v3659
    %v3804 = vpack.c.b16 %v3662, %v3661
    %v3805 = vpack.c.b16 %v3664, %v3663
    %v3806 = vpack.c.b16 %v3666, %v3665
    %v3807 = vpack.c.b16 %v3668, %v3667
    %v3808 = vpack.c.b16 %v3670, %v3669
    %v3809 = vpack.c.b16 %v3672, %v3671
    %v3810 = vpack.c.b16 %v3674, %v3673
    %v3811 = vpack.c.b16 %v3676, %v3675
    %v3812 = vpack.c.b16 %v3678, %v3677
    %v3813 = vpack.c.b16 %v3680, %v3679
    %v3814 = vpack.c.b16 %v3682, %v3681
    %v3815 = vpack.c.b16 %v3684, %v3683
    %v3816 = vpack.c.b16 %v3686, %v3685
    %v3817 = vpack.c.b16 %v3688, %v3687
    %v3818 = vpack.c.b16 %v3690, %v3689
    %v3819 = vpack.c.b16 %v3692, %v3691
    %v3820 = vpack.c.b16 %v3694, %v3693
    %v3821 = vpack.c.b16 %v3696, %v3695
    %v3822 = vpack.c.b16 %v3698, %v3697
    %v3823 = vpack.c.b16 %v3700, %v3699
    %v3824 = vpack.c.b16 %v3702, %v3701
    %v3825 = vpack.c.b16 %v3704, %v3703
    %v3826 = vpack.c.b16 %v3706, %v3705
    %v3827 = vpack.c.b16 %v3708, %v3707
    %v3828 = vpack.c.b16 %v3710, %v3709
    %v3829 = vpack.c.b16 %v3712, %v3711
    %v3830 = vpack.c.b16 %v3714, %v3713
    %v3831 = vpack.c.b16 %v3716, %v3715
    %v3832 = vpack.c.b16 %v3718, %v3717
    %v3833 = vpack.c.b16 %v3720, %v3719
    %v3834 = vpack.c.b16 %v3722, %v3721
    %v3835 = vpack.c.b16 %v3724, %v3723
    %v3836 = vpack.c.b16 %v3726, %v3725
    %v3837 = vpack.c.b16 %v3728, %v3727
    %v3838 = vpack.c.b16 %v3730, %v3729
    %v3839 = vpack.c.b16 %v3732, %v3731
    %v3840 = vpack.c.b16 %v3734, %v3733
    %v3841 = vpack.c.b16 %v3736, %v3735
    %v3842 = vpack.c.b16 %v3738, %v3737
    %v3843 = vpack.c.b16 %v3740, %v3739
    %v3844 = vpack.c.b16 %v3742, %v3741
    %v3845 = vpack.c.b16 %v3744, %v3743
    %v3846 = vpack.c.b16 %v3746, %v3745
    %v3847 = vpack.c.b16 %v3748, %v3747
    %v3848 = vpack.c.b16 %v3750, %v3749
    %v3849 = vpack.c.b16 %v3752, %v3751
    %v3850 = vpack.c.b16 %v3754, %v3753
    %v3851 = vpack.c.b16 %v3756, %v3755
    %v3852 = vpack.c.b16 %v3758, %v3757
    %v3853 = vpack.c.b16 %v3760, %v3759
    %v3854 = vpack.c.b16 %v3762, %v3761
    %v3855 = vpack.c.b16 %v3764, %v3763
    %v3856 = vpack.c.b16 %v3766, %v3765
    %v3857 = vpack.c.b16 %v3768, %v3767
    %v3858 = vpack.c.b16 %v3770, %v3769
    %v3859 = vpack.c.b16 %v3772, %v3771
    %v3860 = vpack.c.b16 %v3774, %v3773
    %v3861 = vpack.c.b16 %v3776, %v3775
    %v3862 = vpack.c.b16 %v3778, %v3777
    %v3863 = vpack.c.b16 %v3780, %v3779
    %v3864 = vpack.c.b16 %v3782, %v3781
    %v3865 = vpack.c.b16 %v3784, %v3783
    %v3866 = vpack.c.b16 %v3786, %v3785
    %3947 = vmatprep.subr.bf16.mxu0 0
    %3948 = vmatpush1.bf16.msra.mxu0 %v3787
    %3949 = vmatprep.subr.bf16.mxu0 0
    %3950 = vmatpush1.bf16.msra.mxu0 %v3788
    %3951 = vmatprep.subr.bf16.mxu0 0
    %3952 = vmatpush1.bf16.msra.mxu0 %v3789
    %3953 = vmatprep.subr.bf16.mxu0 0
    %3954 = vmatpush1.bf16.msra.mxu0 %v3790
    %3955 = vmatprep.subr.bf16.mxu0 0
    %3956 = vmatpush1.bf16.msra.mxu0 %v3791
    %3957 = vmatprep.subr.bf16.mxu0 0
    %3958 = vmatpush1.bf16.msra.mxu0 %v3792
    %3959 = vmatprep.subr.bf16.mxu0 0
    %3960 = vmatpush1.bf16.msra.mxu0 %v3793
    %3961 = vmatprep.subr.bf16.mxu0 0
    %3962 = vmatpush1.bf16.msra.mxu0 %v3794
    %3963 = vmatprep.subr.bf16.mxu0 0
    %3964 = vmatpush1.bf16.msra.mxu0 %v3795
    %3965 = vmatprep.subr.bf16.mxu0 0
    %3966 = vmatpush1.bf16.msra.mxu0 %v3796
    %3967 = vmatprep.subr.bf16.mxu0 0
    %3968 = vmatpush1.bf16.msra.mxu0 %v3797
    %3969 = vmatprep.subr.bf16.mxu0 0
    %3970 = vmatpush1.bf16.msra.mxu0 %v3798
    %3971 = vmatprep.subr.bf16.mxu0 0
    %3972 = vmatpush1.bf16.msra.mxu0 %v3799
    %3973 = vmatprep.subr.bf16.mxu0 0
    %3974 = vmatpush1.bf16.msra.mxu0 %v3800
    %3975 = vmatprep.subr.bf16.mxu0 0
    %3976 = vmatpush1.bf16.msra.mxu0 %v3801
    %3977 = vmatprep.subr.bf16.mxu0 0
    %3978 = vmatpush1.bf16.msra.mxu0 %v3802
    %3979 = vmatprep.mubr.bf16.mxu0 %v2788
    %3980 = vmatmul.mubr.bf16.gmra.mrb[0].mxu0 %v2787
    %v3981 = vpop.f32.mrb[0].mxu0
    %v3982 = vadd.f32 %v3462, %v3981
    %v3983 = vpop.f32.mrb[0].mxu0
    %v3984 = vpop.f32.mrb[0].mxu0
    %v3985 = vpop.f32.mrb[0].mxu0
    %3986 = vdwg.mxu0
    %3987 = vmatprep.subr.bf16.mxu0 0
    %3988 = vmatpush1.bf16.msra.mxu0 %v3803
    %3989 = vmatprep.subr.bf16.mxu0 0
    %3990 = vmatpush1.bf16.msra.mxu0 %v3804
    %3991 = vmatprep.subr.bf16.mxu0 0
    %3992 = vmatpush1.bf16.msra.mxu0 %v3805
    %3993 = vmatprep.subr.bf16.mxu0 0
    %3994 = vmatpush1.bf16.msra.mxu0 %v3806
    %3995 = vmatprep.subr.bf16.mxu0 0
    %3996 = vmatpush1.bf16.msra.mxu0 %v3807
    %3997 = vmatprep.subr.bf16.mxu0 0
    %3998 = vmatpush1.bf16.msra.mxu0 %v3808
    %3999 = vmatprep.subr.bf16.mxu0 0
    %4000 = vmatpush1.bf16.msra.mxu0 %v3809
    %4001 = vmatprep.subr.bf16.mxu0 0
    %4002 = vmatpush1.bf16.msra.mxu0 %v3810
    %4003 = vmatprep.subr.bf16.mxu0 0
    %4004 = vmatpush1.bf16.msra.mxu0 %v3811
    %4005 = vmatprep.subr.bf16.mxu0 0
    %4006 = vmatpush1.bf16.msra.mxu0 %v3812
    %4007 = vmatprep.subr.bf16.mxu0 0
    %4008 = vmatpush1.bf16.msra.mxu0 %v3813
    %4009 = vmatprep.subr.bf16.mxu0 0
    %4010 = vmatpush1.bf16.msra.mxu0 %v3814
    %4011 = vmatprep.subr.bf16.mxu0 0
    %4012 = vmatpush1.bf16.msra.mxu0 %v3815
    %4013 = vmatprep.subr.bf16.mxu0 0
    %4014 = vmatpush1.bf16.msra.mxu0 %v3816
    %4015 = vmatprep.subr.bf16.mxu0 0
    %4016 = vmatpush1.bf16.msra.mxu0 %v3817
    %4017 = vmatprep.subr.bf16.mxu0 0
    %4018 = vmatpush1.bf16.msra.mxu0 %v3818
    %4019 = vmatprep.mubr.bf16.mxu0 %v2790
    %4020 = vmatmul.mubr.bf16.gmra.mrb[0].mxu0 %v2789
    %v4021 = vpop.f32.mrb[0].mxu0
    %v4022 = vadd.f32 %v3982, %v4021
    %v4023 = vpop.f32.mrb[0].mxu0
    %v4024 = vpop.f32.mrb[0].mxu0
    %v4025 = vpop.f32.mrb[0].mxu0
    %4026 = vdwg.mxu0
    %4027 = vmatprep.subr.bf16.mxu0 0
    %4028 = vmatpush1.bf16.msra.mxu0 %v3819
    %4029 = vmatprep.subr.bf16.mxu0 0
    %4030 = vmatpush1.bf16.msra.mxu0 %v3820
    %4031 = vmatprep.subr.bf16.mxu0 0
    %4032 = vmatpush1.bf16.msra.mxu0 %v3821
    %4033 = vmatprep.subr.bf16.mxu0 0
    %4034 = vmatpush1.bf16.msra.mxu0 %v3822
    %4035 = vmatprep.subr.bf16.mxu0 0
    %4036 = vmatpush1.bf16.msra.mxu0 %v3823
    %4037 = vmatprep.subr.bf16.mxu0 0
    %4038 = vmatpush1.bf16.msra.mxu0 %v3824
    %4039 = vmatprep.subr.bf16.mxu0 0
    %4040 = vmatpush1.bf16.msra.mxu0 %v3825
    %4041 = vmatprep.subr.bf16.mxu0 0
    %4042 = vmatpush1.bf16.msra.mxu0 %v3826
    %4043 = vmatprep.subr.bf16.mxu0 0
    %4044 = vmatpush1.bf16.msra.mxu0 %v3827
    %4045 = vmatprep.subr.bf16.mxu0 0
    %4046 = vmatpush1.bf16.msra.mxu0 %v3828
    %4047 = vmatprep.subr.bf16.mxu0 0
    %4048 = vmatpush1.bf16.msra.mxu0 %v3829
    %4049 = vmatprep.subr.bf16.mxu0 0
    %4050 = vmatpush1.bf16.msra.mxu0 %v3830
    %4051 = vmatprep.subr.bf16.mxu0 0
    %4052 = vmatpush1.bf16.msra.mxu0 %v3831
    %4053 = vmatprep.subr.bf16.mxu0 0
    %4054 = vmatpush1.bf16.msra.mxu0 %v3832
    %4055 = vmatprep.subr.bf16.mxu0 0
    %4056 = vmatpush1.bf16.msra.mxu0 %v3833
    %4057 = vmatprep.subr.bf16.mxu0 0
    %4058 = vmatpush1.bf16.msra.mxu0 %v3834
    %4059 = vmatprep.mubr.bf16.mxu0 %v2792
    %4060 = vmatmul.mubr.bf16.gmra.mrb[0].mxu0 %v2791
    %v4061 = vpop.f32.mrb[0].mxu0
    %v4062 = vadd.f32 %v4022, %v4061
    %v4063 = vpop.f32.mrb[0].mxu0
    %v4064 = vpop.f32.mrb[0].mxu0
    %v4065 = vpop.f32.mrb[0].mxu0
    %4066 = vdwg.mxu0
    %4067 = vmatprep.subr.bf16.mxu0 0
    %4068 = vmatpush1.bf16.msra.mxu0 %v3835
    %4069 = vmatprep.subr.bf16.mxu0 0
    %4070 = vmatpush1.bf16.msra.mxu0 %v3836
    %4071 = vmatprep.subr.bf16.mxu0 0
    %4072 = vmatpush1.bf16.msra.mxu0 %v3837
    %4073 = vmatprep.subr.bf16.mxu0 0
    %4074 = vmatpush1.bf16.msra.mxu0 %v3838
    %4075 = vmatprep.subr.bf16.mxu0 0
    %4076 = vmatpush1.bf16.msra.mxu0 %v3839
    %4077 = vmatprep.subr.bf16.mxu0 0
    %4078 = vmatpush1.bf16.msra.mxu0 %v3840
    %4079 = vmatprep.subr.bf16.mxu0 0
    %4080 = vmatpush1.bf16.msra.mxu0 %v3841
    %4081 = vmatprep.subr.bf16.mxu0 0
    %4082 = vmatpush1.bf16.msra.mxu0 %v3842
    %4083 = vmatprep.subr.bf16.mxu0 0
    %4084 = vmatpush1.bf16.msra.mxu0 %v3843
    %4085 = vmatprep.subr.bf16.mxu0 0
    %4086 = vmatpush1.bf16.msra.mxu0 %v3844
    %4087 = vmatprep.subr.bf16.mxu0 0
    %4088 = vmatpush1.bf16.msra.mxu0 %v3845
    %4089 = vmatprep.subr.bf16.mxu0 0
    %4090 = vmatpush1.bf16.msra.mxu0 %v3846
    %4091 = vmatprep.subr.bf16.mxu0 0
    %4092 = vmatpush1.bf16.msra.mxu0 %v3847
    %4093 = vmatprep.subr.bf16.mxu0 0
    %4094 = vmatpush1.bf16.msra.mxu0 %v3848
    %4095 = vmatprep.subr.bf16.mxu0 0
    %4096 = vmatpush1.bf16.msra.mxu0 %v3849
    %4097 = vmatprep.subr.bf16.mxu0 0
    %4098 = vmatpush1.bf16.msra.mxu0 %v3850
    %4099 = vmatprep.mubr.bf16.mxu0 %v2794
    %4100 = vmatmul.mubr.bf16.gmra.mrb[0].mxu0 %v2793
    %v4101 = vpop.f32.mrb[0].mxu0
    %v4102 = vadd.f32 %v4062, %v4101
    %v4103 = vpop.f32.mrb[0].mxu0
    %v4104 = vpop.f32.mrb[0].mxu0
    %v4105 = vpop.f32.mrb[0].mxu0
    %4106 = vdwg.mxu0
    %4107 = vmatprep.subr.bf16.mxu0 0
    %4108 = vmatpush1.bf16.msra.mxu0 %v3851
    %4109 = vmatprep.subr.bf16.mxu0 0
    %4110 = vmatpush1.bf16.msra.mxu0 %v3852
    %4111 = vmatprep.subr.bf16.mxu0 0
    %4112 = vmatpush1.bf16.msra.mxu0 %v3853
    %4113 = vmatprep.subr.bf16.mxu0 0
    %4114 = vmatpush1.bf16.msra.mxu0 %v3854
    %4115 = vmatprep.subr.bf16.mxu0 0
    %4116 = vmatpush1.bf16.msra.mxu0 %v3855
    %4117 = vmatprep.subr.bf16.mxu0 0
    %4118 = vmatpush1.bf16.msra.mxu0 %v3856
    %4119 = vmatprep.subr.bf16.mxu0 0
    %4120 = vmatpush1.bf16.msra.mxu0 %v3857
    %4121 = vmatprep.subr.bf16.mxu0 0
    %4122 = vmatpush1.bf16.msra.mxu0 %v3858
    %4123 = vmatprep.subr.bf16.mxu0 0
    %4124 = vmatpush1.bf16.msra.mxu0 %v3859
    %4125 = vmatprep.subr.bf16.mxu0 0
    %4126 = vmatpush1.bf16.msra.mxu0 %v3860
    %4127 = vmatprep.subr.bf16.mxu0 0
    %4128 = vmatpush1.bf16.msra.mxu0 %v3861
    %4129 = vmatprep.subr.bf16.mxu0 0
    %4130 = vmatpush1.bf16.msra.mxu0 %v3862
    %4131 = vmatprep.subr.bf16.mxu0 0
    %4132 = vmatpush1.bf16.msra.mxu0 %v3863
    %4133 = vmatprep.subr.bf16.mxu0 0
    %4134 = vmatpush1.bf16.msra.mxu0 %v3864
    %4135 = vmatprep.subr.bf16.mxu0 0
    %4136 = vmatpush1.bf16.msra.mxu0 %v3865
    %4137 = vmatprep.subr.bf16.mxu0 0
    %4138 = vmatpush1.bf16.msra.mxu0 %v3866
    %4139 = vmatprep.mubr.bf16.mxu0 %v2796
    %4140 = vmatmul.mubr.bf16.gmra.mrb[0].mxu0 %v2795
    %v4141 = vpop.f32.mrb[0].mxu0
    %v4142 = vadd.f32 %v4102, %v4141
    %v4143 = vpop.f32.mrb[0].mxu0
    %v4144 = vpop.f32.mrb[0].mxu0
    %v4145 = vpop.f32.mrb[0].mxu0
    %4146 = vdwg.mxu0
    %v4147 = vld [vmem:[#allocation14] sm:$0x1]
    %v4149 = vlaneseq
    %v4150 = vshrl.u32 %v4149, 7
    %v4151 = vsub.s32 0, %v4150
    %v4152 = vrot.slane %v4147, %v4151
    %v4154 = vadd.f32 %v4142, %v4152
    %4155 = vst [vmem:[#allocation16] sm:$0x3] %v4154
    // Predicated region
    $region66: #{tpu_custom_call.1} parent=1 // pred_check
      _
    $region67: #{tpu_custom_call.1} parent=1 // pred_check_branch
      %4157 = sbr.rel (0) target = $region69
    $region68: #{tpu_custom_call.1} parent=1 // pred_region
      %s4159 = ssub.s32 32, 32
      %4160 = vsyncadd [#allocation4], %s4159
      %s4162 = sshll.u32 [#allocation16], 4
      %s4163 = int_to_ptr.vmem [resolvable:$true] %s4162
      %4165 = dma.vmem_to_hbm [thread:$0]  %s4163, 32, %s8, [#allocation4]
    $region69: #{tpu_custom_call.1} parent=1 // pred_fallthru
      _
    // Predicated region
    $region70: #{tpu_custom_call.1} parent=1 // pred_check
      _
    $region71: #{tpu_custom_call.1} parent=1 // pred_check_branch
      %4167 = sbr.rel (0) target = $region73
    $region72: #{tpu_custom_call.1} parent=1 // pred_region
      %4168 = dma.done [#allocation4], 32
    $region73: #{tpu_custom_call.1} parent=1 // pred_fallthru
      _
    %4169 = vsyncpa [#allocation3], 1
    %4170 = vsyncpa [#allocation6], 1
    %4171 = vsyncpa [#allocation9], 1
    %4172 = vsyncpa [#allocation12], 1
    %4173 = vsyncpa [#allocation15], 1
    %4174 = vsyncpa [#allocation4], 1

</llo_original>
